<compile_context>
chip_gen: v6e
topology: v6e:2x2x1
jax: 0.10.0
libtpu: 0.0.40
codegen_flags: <defaults>
</compile_context>

<pallas_src>
import numpy as np
import jax
import jax.numpy as jnp
from jax.experimental import pallas as pl
from jax.experimental.pallas import tpu as pltpu


def _vmem_tile_bytes(shape, itemsize):
    """Rough VMEM footprint of one tile (lane dim padded to 128, sublanes to 8/16)."""
    shape = tuple(int(s) for s in shape)
    if len(shape) == 1:
        shape = (1,) + shape
    lead, sub, lane = shape[:-2], shape[-2], shape[-1]
    sub_al = 16 if itemsize == 2 else 8
    sub_p = -(-sub // sub_al) * sub_al
    lane_p = -(-lane // 128) * 128
    n_lead = 1
    for s in lead:
        n_lead *= s
    return n_lead * sub_p * lane_p * itemsize


def _vmem_limit_bytes():
    """Per-generation scoped-VMEM budget: 48 MiB on 64-MiB parts (v7x), 96 MiB on 128-MiB parts."""
    cap = 64 * 1024 * 1024  # conservative fallback (v7x-sized)
    try:
        cap = int(pltpu.get_tpu_info().vmem_capacity_bytes)
    except Exception:
        pass
    if cap <= 64 * 1024 * 1024:
        return 48 * 1024 * 1024
    return 96 * 1024 * 1024


def _make_concat_kernel(offsets, q, cin, relu):
    """Single-dot kernel: the KH*KW taps are packed into the contraction dim."""

    def kernel(x_ref, w_ref, shift_ref, o_ref, xcat_ref):
        # x_ref:     [1, L_in, Cin]            bf16  flattened padded row-tile (+halo)
        # w_ref:     [KH*KW*Cin, Cout_blk]     bf16  BN-scale-folded weights
        # shift_ref: [1, Cout_blk]             f32   BN shift
        # o_ref:     [1, Q, Cout_blk]          out dtype
        # xcat_ref:  [Q, KH*KW*Cin]            bf16  VMEM scratch (packed operand)
        for idx, off in enumerate(offsets):                      # static, unrolled
            xcat_ref[:, idx * cin:(idx + 1) * cin] = x_ref[0, pl.ds(off, q), :]
        y = jnp.dot(xcat_ref[...], w_ref[...], preferred_element_type=jnp.float32)
        y = y + shift_ref[...]
        if relu:
            y = jnp.maximum(y, 0.0)
        o_ref[0] = y.astype(o_ref.dtype)

    return kernel


def _make_pertap_kernel(offsets, q, relu):
    """Per-tap dots with register (jnp value) accumulation — used for large Cin."""

    def kernel(x_ref, w_ref, shift_ref, o_ref):
        # x_ref:     [1, L_in, Cin]           bf16
        # w_ref:     [KH*KW, Cin, Cout_blk]   bf16
        # shift_ref: [1, Cout_blk]            f32
        # o_ref:     [1, Q, Cout_blk]
        acc = jnp.dot(x_ref[0, pl.ds(offsets[0], q), :], w_ref[0],
                      preferred_element_type=jnp.float32)
        for idx in range(1, len(offsets)):                       # static, unrolled
            acc = acc + jnp.dot(x_ref[0, pl.ds(offsets[idx], q), :], w_ref[idx],
                                preferred_element_type=jnp.float32)
        y = acc + shift_ref[...]
        if relu:
            y = jnp.maximum(y, 0.0)
        o_ref[0] = y.astype(o_ref.dtype)

    return kernel


def basic_conv(x, weight, gamma, beta, running_mean, running_var, *,
               stride=1, padding=0, dilation=1, groups=1, eps=1e-5,
               relu=True, out_dtype=None):
    """BasicConv forward (Conv2d(bias=False) -> BatchNorm2d(inference) -> ReLU).

    x:      [N, Cin, H, W]        (NCHW, like PyTorch)
    weight: [Cout, Cin, KH, KW]   (PyTorch OIHW layout)
    gamma, beta, running_mean, running_var: [Cout]
    Returns [N, Cout, OH, OW] in `out_dtype` (default: x.dtype).
    """
    # TODO(synk): groups > 1 (grouped conv) is not implemented in the Pallas path.
    assert groups == 1, "grouped conv not supported"

    n, cin, h, w = x.shape
    cout, cin_w, kh, kw = weight.shape
    assert cin_w == cin
    out_dtype = x.dtype if out_dtype is None else out_dtype
    out_itemsize = jnp.dtype(out_dtype).itemsize

    kh_eff = (kh - 1) * dilation + 1
    kw_eff = (kw - 1) * dilation + 1
    hp, wp = h + 2 * padding, w + 2 * padding
    oh_k = hp - kh_eff + 1                 # stride-1 output height on padded input
    ow_k = wp - kw_eff + 1                 # stride-1 output width
    assert oh_k >= 1 and ow_k >= 1
    kk = kh * kw

    # ---- Cout padding / tiling ------------------------------------------------
    # Small Cout: keep it unpadded (masked stores beat 4-16x HBM write amplification).
    # Large Cout: pad to a 128 multiple and tile it on its own grid axis.
    if cout % 128 == 0 or cout <= 32:
        cout_pad = cout
    else:
        cout_pad = ((cout + 127) // 128) * 128
    cout_blk = 128 if cout_pad % 128 == 0 else cout_pad
    n_cb = cout_pad // cout_blk

    # Single-dot (packed K) path for small/medium Cin; register-acc per-tap path otherwise.
    use_concat = kk * cin <= 1024

    # ---- row-tile sizing (per-generation VMEM budget) --------------------------
    budget = _vmem_limit_bytes()
    if use_concat:
        q_target = 4096 if budget > 64 * 1024 * 1024 else 2048
    else:
        # keep the register accumulator (Q x Cout_blk f32) around <= 128 KiB
        q_target = max(wp, (128 * 1024) // (4 * cout_blk))
    toh = max(1, min(oh_k, q_target // wp))

    def _est(toh_):
        q_ = toh_ * wp
        l_in_ = (toh_ + (kh - 1) * dilation + 1) * wp
        tot = 2 * _vmem_tile_bytes((1, l_in_, cin), 2)            # input, double-buffered
        if use_concat:
            tot += 2 * _vmem_tile_bytes((kk * cin, cout_blk), 2)  # weights
            tot += _vmem_tile_bytes((q_, kk * cin), 2)            # packed-operand scratch
        else:
            tot += 2 * _vmem_tile_bytes((kk, cin, cout_blk), 2)
        tot += 2 * _vmem_tile_bytes((1, cout_blk), 4)             # BN shift
        tot += 2 * _vmem_tile_bytes((1, q_, cout_blk), out_itemsize)  # output
        return tot

    while toh > 1 and _est(toh) > int(0.75 * budget):
        toh = max(1, toh // 2)

    # Keep both v7x TensorCores busy on tiny problems: at least 2 grid steps.
    if n * (-(-oh_k // toh)) < 2 and oh_k >= 2:
        toh = -(-oh_k // 2)

    # Prefer Q = toh*Wp to be sublane-aligned (multiple of 8) — free alignment tweak.
    for t in range(toh, 0, -1):
        if (t * wp) % 8 == 0:
            toh = t
            break

    n_tiles = -(-oh_k // toh)              # cdiv
    q = toh * wp
    span = toh + (kh - 1) * dilation + 1   # halo rows + 1 spare so flat slices stay in-bounds
    l_in = span * wp
    g = n * n_tiles

    # ---- XLA-side prep ----------------------------------------------------------
    x_nhwc = jnp.transpose(x, (0, 2, 3, 1)).astype(jnp.bfloat16)       # [N,H,W,Cin]
    hp_ext = n_tiles * toh + (kh - 1) * dilation + 1
    xp = jnp.pad(x_nhwc, ((0, 0),
                          (padding, padding + (hp_ext - hp)),
                          (padding, padding),
                          (0, 0)))                                      # [N,Hp_ext,Wp,Cin]
    if n_tiles == 1:
        x_flat = xp.reshape(n, l_in, cin)                               # no extra HBM copy
    else:
        # TODO(synk): this halo gather materializes an extra copy of the activation in
        # HBM; a pl.ANY + manual-DMA window fetch would avoid the extra pass.
        rows = np.arange(n_tiles)[:, None] * toh + np.arange(span)[None, :]
        x_flat = xp[:, rows].reshape(g, l_in, cin)

    # Fold BatchNorm (inference, running stats) into weight scale + shift.
    scale = (gamma / jnp.sqrt(running_var + eps)).astype(jnp.float32)   # [Cout]
    shift = (beta - running_mean * scale).astype(jnp.float32)           # [Cout]
    w_t = jnp.transpose(weight, (2, 3, 1, 0)) * scale[None, None, None, :]   # [KH,KW,Cin,Cout]
    w_t = jnp.pad(w_t.astype(jnp.bfloat16),
                  ((0, 0), (0, 0), (0, 0), (0, cout_pad - cout)))
    shift_p = jnp.pad(shift, (0, cout_pad - cout)).reshape(1, cout_pad).astype(jnp.float32)

    # Static flat offsets of each (kh, kw) tap on the row-major padded grid.
    offsets = tuple(i * dilation * wp + j * dilation
                    for i in range(kh) for j in range(kw))

    if use_concat:
        kernel = _make_concat_kernel(offsets, q, cin, relu)
        w_arg = w_t.reshape(kk * cin, cout_pad)
        w_spec = pl.BlockSpec((kk * cin, cout_blk), lambda i, c: (0, c))
        scratch = [pltpu.VMEM((q, kk * cin), jnp.bfloat16)]
    else:
        kernel = _make_pertap_kernel(offsets, q, relu)
        w_arg = w_t.reshape(kk, cin, cout_pad)
        w_spec = pl.BlockSpec((kk, cin, cout_blk), lambda i, c: (0, 0, c))
        scratch = []

    out_flat = pl.pallas_call(
        kernel,
        grid=(g, n_cb),
        out_shape=jax.ShapeDtypeStruct((g, q, cout_pad), out_dtype),
        in_specs=[
            pl.BlockSpec((1, l_in, cin), lambda i, c: (i, 0, 0)),
            w_spec,
            pl.BlockSpec((1, cout_blk), lambda i, c: (0, c)),
        ],
        out_specs=pl.BlockSpec((1, q, cout_blk), lambda i, c: (i, 0, c)),
        scratch_shapes=scratch,
        compiler_params=pltpu.CompilerParams(
            dimension_semantics=("parallel", "parallel"),
            vmem_limit_bytes=budget,
        ),
    )(x_flat, w_arg, shift_p)

    # [G, Q, Cout_pad] -> [N, rows, Wp, Cout_pad] -> valid NCHW output.
    out = out_flat.reshape(n, n_tiles * toh, wp, cout_pad)
    out = out[:, :oh_k, :ow_k, :cout]
    out = jnp.transpose(out, (0, 3, 1, 2))       # NCHW (stride-1 grid)
    if stride > 1:
        # TODO(synk): native strided conv; currently computes the stride-1 grid and subsamples.
        out = out[:, :, ::stride, ::stride]
    return out.astype(out_dtype)


if __name__ == "__main__":
    key = jax.random.PRNGKey(0)

    def run_case(N, Cin, H, W, Cout, K, pad):
        keys = jax.random.split(key, 6)
        x = jax.random.normal(keys[0], (N, Cin, H, W), dtype=jnp.float32)
        weight = jax.random.normal(keys[1], (Cout, Cin, K, K), dtype=jnp.float32) * 0.1
        gamma = jax.random.normal(keys[2], (Cout,), dtype=jnp.float32) * 0.1 + 1.0
        beta = jax.random.normal(keys[3], (Cout,), dtype=jnp.float32) * 0.1
        mean = jax.random.normal(keys[4], (Cout,), dtype=jnp.float32) * 0.1
        var = jnp.abs(jax.random.normal(keys[5], (Cout,), dtype=jnp.float32)) * 0.1 + 1.0

        out = basic_conv(x, weight, gamma, beta, mean, var,
                         stride=1, padding=pad, eps=1e-5, relu=True)
        jax.block_until_ready(out)

        # Reference: identical math (BN folded into bf16 weights, bf16-rounded input)
        # with a plain-JAX conv, then shift + ReLU.
        scale = gamma / jnp.sqrt(var + 1e-5)
        shift = beta - mean * scale
        w_f = (weight * scale[:, None, None, None]).astype(jnp.bfloat16).astype(jnp.float32)
        x_bf = x.astype(jnp.bfloat16).astype(jnp.float32)
        ref = jax.lax.conv_general_dilated(
            x_bf, w_f, window_strides=(1, 1), padding=((pad, pad), (pad, pad)),
            dimension_numbers=("NCHW", "OIHW", "NCHW"))
        ref = jnp.maximum(ref + shift.reshape(1, Cout, 1, 1), 0.0)

        assert out.shape == ref.shape, (out.shape, ref.shape)
        err = float(jnp.max(jnp.abs(out - ref)))
        assert err < 2e-2, err

    # BasicConv(4, 8, kernel_size=3, stride=1, padding=1): packed-K single-dot path.
    run_case(2, 4, 16, 16, 8, 3, 1)
    # Larger-Cin layer: exercises the per-tap register-accumulation path + row tiling.
    run_case(1, 256, 8, 8, 32, 3, 1)

    print("KERNEL_OK")
</pallas_src>

<mosaic_0001>
module attributes {stable_mosaic.version = 11 : i64} {
  func.func @kernel(%arg0: i32, %arg1: i32, %arg2: memref<1x342x4xbf16, #tpu.memory_space<vmem>>, %arg3: memref<36x8xbf16, #tpu.memory_space<vmem>>, %arg4: memref<1x8xf32, #tpu.memory_space<vmem>>, %arg5: memref<1x288x8xf32, #tpu.memory_space<vmem>>, %arg6: memref<288x36xbf16, #tpu.memory_space<vmem>>) attributes {dimension_semantics = [#tpu.dimension_semantics<parallel>, #tpu.dimension_semantics<parallel>], iteration_bounds = array<i64: 2, 1>, scalar_prefetch = 0 : i64, scratch_operands = 1 : i64, tpu.core_type = #tpu.core_type<tc>, window_params = [{transform_indices = @transform_0, window_bounds = array<i64: 1, 342, 4>}, {transform_indices = @transform_1, window_bounds = array<i64: 36, 8>}, {transform_indices = @transform_2, window_bounds = array<i64: 1, 8>}, {transform_indices = @transform_3, window_bounds = array<i64: 1, 288, 8>}]} {
    %c0 = arith.constant 0 : index
    %c0_0 = arith.constant 0 : index
    %c0_1 = arith.constant 0 : index
    %0 = vector.load %arg2[%c0, %c0_0, %c0_1] : memref<1x342x4xbf16, #tpu.memory_space<vmem>>, vector<1x288x4xbf16>
    %1 = vector.shape_cast %0 : vector<1x288x4xbf16> to vector<288x4xbf16>
    %c0_2 = arith.constant 0 : index
    %c0_3 = arith.constant 0 : index
    %2 = vector.load %arg6[%c0_2, %c0_3] : memref<288x36xbf16, #tpu.memory_space<vmem>>, vector<288x4xbf16>
    tpu.vector_store %arg6[%c0_2, %c0_3], %1 {strides = array<i32>} : memref<288x36xbf16, #tpu.memory_space<vmem>>, vector<288x4xbf16>,
    %c0_4 = arith.constant 0 : index
    %c1 = arith.constant 1 : index
    %c0_5 = arith.constant 0 : index
    %3 = vector.load %arg2[%c0_4, %c1, %c0_5] : memref<1x342x4xbf16, #tpu.memory_space<vmem>>, vector<1x288x4xbf16>
    %4 = vector.shape_cast %3 : vector<1x288x4xbf16> to vector<288x4xbf16>
    %c0_6 = arith.constant 0 : index
    %c4 = arith.constant 4 : index
    %5 = vector.load %arg6[%c0_6, %c4] : memref<288x36xbf16, #tpu.memory_space<vmem>>, vector<288x4xbf16>
    tpu.vector_store %arg6[%c0_6, %c4], %4 {strides = array<i32>} : memref<288x36xbf16, #tpu.memory_space<vmem>>, vector<288x4xbf16>,
    %c0_7 = arith.constant 0 : index
    %c2 = arith.constant 2 : index
    %c0_8 = arith.constant 0 : index
    %6 = vector.load %arg2[%c0_7, %c2, %c0_8] : memref<1x342x4xbf16, #tpu.memory_space<vmem>>, vector<1x288x4xbf16>
    %7 = vector.shape_cast %6 : vector<1x288x4xbf16> to vector<288x4xbf16>
    %c0_9 = arith.constant 0 : index
    %c8 = arith.constant 8 : index
    %8 = vector.load %arg6[%c0_9, %c8] : memref<288x36xbf16, #tpu.memory_space<vmem>>, vector<288x4xbf16>
    tpu.vector_store %arg6[%c0_9, %c8], %7 {strides = array<i32>} : memref<288x36xbf16, #tpu.memory_space<vmem>>, vector<288x4xbf16>,
    %c0_10 = arith.constant 0 : index
    %c18 = arith.constant 18 : index
    %c0_11 = arith.constant 0 : index
    %9 = vector.load %arg2[%c0_10, %c18, %c0_11] : memref<1x342x4xbf16, #tpu.memory_space<vmem>>, vector<1x288x4xbf16>
    %10 = vector.shape_cast %9 : vector<1x288x4xbf16> to vector<288x4xbf16>
    %c0_12 = arith.constant 0 : index
    %c12 = arith.constant 12 : index
    %11 = vector.load %arg6[%c0_12, %c12] : memref<288x36xbf16, #tpu.memory_space<vmem>>, vector<288x4xbf16>
    tpu.vector_store %arg6[%c0_12, %c12], %10 {strides = array<i32>} : memref<288x36xbf16, #tpu.memory_space<vmem>>, vector<288x4xbf16>,
    %c0_13 = arith.constant 0 : index
    %c19 = arith.constant 19 : index
    %c0_14 = arith.constant 0 : index
    %12 = vector.load %arg2[%c0_13, %c19, %c0_14] : memref<1x342x4xbf16, #tpu.memory_space<vmem>>, vector<1x288x4xbf16>
    %13 = vector.shape_cast %12 : vector<1x288x4xbf16> to vector<288x4xbf16>
    %c0_15 = arith.constant 0 : index
    %c16 = arith.constant 16 : index
    %14 = vector.load %arg6[%c0_15, %c16] : memref<288x36xbf16, #tpu.memory_space<vmem>>, vector<288x4xbf16>
    tpu.vector_store %arg6[%c0_15, %c16], %13 {strides = array<i32>} : memref<288x36xbf16, #tpu.memory_space<vmem>>, vector<288x4xbf16>,
    %c0_16 = arith.constant 0 : index
    %c20 = arith.constant 20 : index
    %c0_17 = arith.constant 0 : index
    %15 = vector.load %arg2[%c0_16, %c20, %c0_17] : memref<1x342x4xbf16, #tpu.memory_space<vmem>>, vector<1x288x4xbf16>
    %16 = vector.shape_cast %15 : vector<1x288x4xbf16> to vector<288x4xbf16>
    %c0_18 = arith.constant 0 : index
    %c20_19 = arith.constant 20 : index
    %17 = vector.load %arg6[%c0_18, %c20_19] : memref<288x36xbf16, #tpu.memory_space<vmem>>, vector<288x4xbf16>
    tpu.vector_store %arg6[%c0_18, %c20_19], %16 {strides = array<i32>} : memref<288x36xbf16, #tpu.memory_space<vmem>>, vector<288x4xbf16>,
    %c0_20 = arith.constant 0 : index
    %c36 = arith.constant 36 : index
    %c0_21 = arith.constant 0 : index
    %18 = vector.load %arg2[%c0_20, %c36, %c0_21] : memref<1x342x4xbf16, #tpu.memory_space<vmem>>, vector<1x288x4xbf16>
    %19 = vector.shape_cast %18 : vector<1x288x4xbf16> to vector<288x4xbf16>
    %c0_22 = arith.constant 0 : index
    %c24 = arith.constant 24 : index
    %20 = vector.load %arg6[%c0_22, %c24] : memref<288x36xbf16, #tpu.memory_space<vmem>>, vector<288x4xbf16>
    tpu.vector_store %arg6[%c0_22, %c24], %19 {strides = array<i32>} : memref<288x36xbf16, #tpu.memory_space<vmem>>, vector<288x4xbf16>,
    %c0_23 = arith.constant 0 : index
    %c37 = arith.constant 37 : index
    %c0_24 = arith.constant 0 : index
    %21 = vector.load %arg2[%c0_23, %c37, %c0_24] : memref<1x342x4xbf16, #tpu.memory_space<vmem>>, vector<1x288x4xbf16>
    %22 = vector.shape_cast %21 : vector<1x288x4xbf16> to vector<288x4xbf16>
    %c0_25 = arith.constant 0 : index
    %c28 = arith.constant 28 : index
    %23 = vector.load %arg6[%c0_25, %c28] : memref<288x36xbf16, #tpu.memory_space<vmem>>, vector<288x4xbf16>
    tpu.vector_store %arg6[%c0_25, %c28], %22 {strides = array<i32>} : memref<288x36xbf16, #tpu.memory_space<vmem>>, vector<288x4xbf16>,
    %c0_26 = arith.constant 0 : index
    %c38 = arith.constant 38 : index
    %c0_27 = arith.constant 0 : index
    %24 = vector.load %arg2[%c0_26, %c38, %c0_27] : memref<1x342x4xbf16, #tpu.memory_space<vmem>>, vector<1x288x4xbf16>
    %25 = vector.shape_cast %24 : vector<1x288x4xbf16> to vector<288x4xbf16>
    %c0_28 = arith.constant 0 : index
    %c32 = arith.constant 32 : index
    %26 = vector.load %arg6[%c0_28, %c32] : memref<288x36xbf16, #tpu.memory_space<vmem>>, vector<288x4xbf16>
    tpu.vector_store %arg6[%c0_28, %c32], %25 {strides = array<i32>} : memref<288x36xbf16, #tpu.memory_space<vmem>>, vector<288x4xbf16>,
    %c0_29 = arith.constant 0 : index
    %c0_30 = arith.constant 0 : index
    %27 = vector.load %arg6[%c0_29, %c0_30] : memref<288x36xbf16, #tpu.memory_space<vmem>>, vector<288x36xbf16>
    %c0_31 = arith.constant 0 : index
    %c0_32 = arith.constant 0 : index
    %28 = vector.load %arg3[%c0_31, %c0_32] : memref<36x8xbf16, #tpu.memory_space<vmem>>, vector<36x8xbf16>
    %cst = arith.constant dense<0.000000e+00> : vector<288x8xf32>
    %29 = tpu.matmul %27, %28, %cst {dimension_numbers = #tpu.dot_dimension_numbers<[1], [0], [0], [1], [0, 0, 1, 1], [], []>} : vector<288x36xbf16>, vector<36x8xbf16>, vector<288x8xf32> -> vector<288x8xf32>
    %c0_33 = arith.constant 0 : index
    %c0_34 = arith.constant 0 : index
    %30 = vector.load %arg4[%c0_33, %c0_34] : memref<1x8xf32, #tpu.memory_space<vmem>>, vector<1x8xf32>
    %31 = vector.broadcast %30 : vector<1x8xf32> to vector<288x8xf32>
    %32 = arith.addf %29, %31 : vector<288x8xf32>
    %cst_35 = arith.constant 0.000000e+00 : f32
    %33 = vector.broadcast %cst_35 : f32 to vector<288x8xf32>
    %34 = arith.maximumf %32, %33 : vector<288x8xf32>
    %c0_36 = arith.constant 0 : index
    %c0_37 = arith.constant 0 : index
    %c0_38 = arith.constant 0 : index
    %35 = vector.load %arg5[%c0_36, %c0_37, %c0_38] : memref<1x288x8xf32, #tpu.memory_space<vmem>>, vector<1x288x8xf32>
    %36 = vector.shape_cast %35 : vector<1x288x8xf32> to vector<288x8xf32>
    %37 = vector.shape_cast %34 : vector<288x8xf32> to vector<1x288x8xf32>
    tpu.vector_store %arg5[%c0_36, %c0_37, %c0_38], %37 {strides = array<i32>} : memref<1x288x8xf32, #tpu.memory_space<vmem>>, vector<1x288x8xf32>,
    return
  }
  func.func @transform_0(%arg0: i32, %arg1: i32) -> (i32, i32, i32) {
    %c0_i32 = arith.constant 0 : i32
    %c0_i32_0 = arith.constant 0 : i32
    %c0_i32_1 = arith.constant 0 : i32
    return %arg0, %c0_i32, %c0_i32_0 : i32, i32, i32
  }
  func.func @transform_1(%arg0: i32, %arg1: i32) -> (i32, i32) {
    %c0_i32 = arith.constant 0 : i32
    %c0_i32_0 = arith.constant 0 : i32
    return %c0_i32, %arg1 : i32, i32
  }
  func.func @transform_2(%arg0: i32, %arg1: i32) -> (i32, i32) {
    %c0_i32 = arith.constant 0 : i32
    %c0_i32_0 = arith.constant 0 : i32
    return %c0_i32, %arg1 : i32, i32
  }
  func.func @transform_3(%arg0: i32, %arg1: i32) -> (i32, i32, i32) {
    %c0_i32 = arith.constant 0 : i32
    %c0_i32_0 = arith.constant 0 : i32
    return %arg0, %c0_i32, %arg1 : i32, i32, i32
  }
}

</mosaic_0001>

<llo_original>
// kernel: tpu_custom_call.1
$region0: #{tpu_custom_call.1}
  #allocation0 [shape = 'u32[]', space=smem, size = 0x4, offset = 0x4, fixed_abs, tag = 'smem constant byte address 0x4 - core index']
  #allocation1 [shape = 'u32[144,128]{1,0:T(1,128)}', space=vmem, size = 0x12000, scoped, tag = 'internal scratch']
  #allocation2 [shape = 'bf16[288,36]{1,0:T(8,128)(2,1)}', space=vmem, size = 0x12000, scoped, tag = 'scratch operand']
  %s0 = inlined_call_operand.vmem [shape: bf16[2,342,4], index: 0, kind: input, shape index: {}]
  %s1 = inlined_call_operand.vmem [shape: bf16[36,8], index: 1, kind: input, shape index: {}]
  %s2 = inlined_call_operand.vmem [shape: f32[1,8], index: 2, kind: input, shape index: {}]
  %s3 = inlined_call_operand.vmem [shape: f32[2,288,8], index: 3, kind: output, shape index: {}]
  %s4 = sld [smem:[#allocation0]]
  $region45: #{tpu_custom_call.1} parent=0
    _
  %s6 = ssub.s32 1, %s4
  %s7 = scalar_select 0, %s6, %s4
  loop: start=0, step=1, limit=4
  $region2: #{tpu_custom_call.1} parent=0 // loop_pre_header
    _
  $region3: #{tpu_custom_call.1} parent=0 // loop_header
    %s9 = sphi 0, %s13
    %p10 = scmp.ge.s32.totalorder %s9, 4
    %s16 = sphi 0, %s28
    %s17 = sphi 0, %s24
    %s18 = sphi 0, %s16
    %s19 = sphi 0, %s17
    %s20 = sphi 0, %s18
    %s21 = sphi 0, %s19
    %s31 = sphi 0, %s33
    %s34 = sphi 0, %s31
    %s35 = sphi 0, %s34
    %s51 = sphi 0, %s35
    %s57 = sphi 0, %s59
    %s60 = sphi 0, %s57
    %s61 = sphi 0, %s60
    %s77 = sphi 0, %s61
    %s83 = sphi 0, %s85
    %s86 = sphi 0, %s83
    %s87 = sphi 0, %s86
    %s103 = sphi 0, %s87
    %s111 = sphi 0, %s113
    %s114 = sphi 0, %s111
    %s115 = sphi 0, %s114
    %s131 = sphi 0, %s115
  $region4: #{tpu_custom_call.1} parent=0 // loop_header_branch
    %12 = sbr.rel (%p10) target = $region8
  $region5: #{tpu_custom_call.1} parent=0 // loop_body
    %s14 = ssub.s32 %s9, 1
    %s15 = ssub.s32 %s9, 2
    %s22 = sadd.s32 1, %s17
    %p23 = scmp.ge.s32.totalorder %s22, 1
    %s24 = scalar_select %p23, 0, %s22
    %s25 = sadd.s32 1, %s16
    %s26 = scalar_select %p23, %s25, %s16
    %p27 = scmp.ge.s32.totalorder %s26, 2
    %s28 = scalar_select %p27, 0, %s26
    %s29 = ssub.s32 %s16, %s28
    %p30 = scmp.eq.s32.totalorder %s29, 0
    %s32 = sadd.s32 %s31, 1
    %s33 = scalar_select %p30, %s31, %s32
    %p36 = pneg %p30
    %p37 = scmp.eq.s32.totalorder %s9, 1
    %p38 = por %p36, %p37
    %p39 = scmp.ne.s32.totalorder %s31, %s34
    %p40 = scmp.eq.s32.totalorder %s9, 0
    %p41 = por %p39, %p40
    %p42 = scmp.ne.s32.totalorder %s31, %s34
    %p43 = scmp.eq.s32.totalorder %s14, 1
    %p44 = por %p42, %p43
    %p45 = scmp.ne.s32.totalorder %s34, %s35
    %p46 = scmp.eq.s32.totalorder %s14, 0
    %p47 = por %p45, %p46
    %p48 = scmp.ne.s32.totalorder %s34, %s35
    %p49 = scmp.eq.s32.totalorder %s15, 1
    %p50 = por %p48, %p49
    %p52 = scmp.ne.s32.totalorder %s35, %s51
    %p53 = scmp.eq.s32.totalorder %s15, 0
    %p54 = por %p52, %p53
    %s55 = ssub.s32 %s17, %s24
    %p56 = scmp.eq.s32.totalorder %s55, 0
    %s58 = sadd.s32 %s57, 1
    %s59 = scalar_select %p56, %s57, %s58
    %p62 = pneg %p56
    %p63 = scmp.eq.s32.totalorder %s9, 1
    %p64 = por %p62, %p63
    %p65 = scmp.ne.s32.totalorder %s57, %s60
    %p66 = scmp.eq.s32.totalorder %s9, 0
    %p67 = por %p65, %p66
    %p68 = scmp.ne.s32.totalorder %s57, %s60
    %p69 = scmp.eq.s32.totalorder %s14, 1
    %p70 = por %p68, %p69
    %p71 = scmp.ne.s32.totalorder %s60, %s61
    %p72 = scmp.eq.s32.totalorder %s14, 0
    %p73 = por %p71, %p72
    %p74 = scmp.ne.s32.totalorder %s60, %s61
    %p75 = scmp.eq.s32.totalorder %s15, 1
    %p76 = por %p74, %p75
    %p78 = scmp.ne.s32.totalorder %s61, %s77
    %p79 = scmp.eq.s32.totalorder %s15, 0
    %p80 = por %p78, %p79
    %s81 = ssub.s32 %s17, %s24
    %p82 = scmp.eq.s32.totalorder %s81, 0
    %s84 = sadd.s32 %s83, 1
    %s85 = scalar_select %p82, %s83, %s84
    %p88 = pneg %p82
    %p89 = scmp.eq.s32.totalorder %s9, 1
    %p90 = por %p88, %p89
    %p91 = scmp.ne.s32.totalorder %s83, %s86
    %p92 = scmp.eq.s32.totalorder %s9, 0
    %p93 = por %p91, %p92
    %p94 = scmp.ne.s32.totalorder %s83, %s86
    %p95 = scmp.eq.s32.totalorder %s14, 1
    %p96 = por %p94, %p95
    %p97 = scmp.ne.s32.totalorder %s86, %s87
    %p98 = scmp.eq.s32.totalorder %s14, 0
    %p99 = por %p97, %p98
    %p100 = scmp.ne.s32.totalorder %s86, %s87
    %p101 = scmp.eq.s32.totalorder %s15, 1
    %p102 = por %p100, %p101
    %p104 = scmp.ne.s32.totalorder %s87, %s103
    %p105 = scmp.eq.s32.totalorder %s15, 0
    %p106 = por %p104, %p105
    %s107 = ssub.s32 %s16, %s28
    %s108 = ssub.s32 %s17, %s24
    %s109 = sor.u32 %s107, %s108
    %p110 = scmp.eq.s32.totalorder %s109, 0
    %s112 = sadd.s32 %s111, 1
    %s113 = scalar_select %p110, %s111, %s112
    %p116 = pneg %p110
    %p117 = scmp.eq.s32.totalorder %s9, 1
    %p118 = por %p116, %p117
    %p119 = scmp.ne.s32.totalorder %s111, %s114
    %p120 = scmp.eq.s32.totalorder %s9, 0
    %p121 = por %p119, %p120
    %p122 = scmp.ne.s32.totalorder %s111, %s114
    %p123 = scmp.eq.s32.totalorder %s14, 1
    %p124 = por %p122, %p123
    %p125 = scmp.ne.s32.totalorder %s114, %s115
    %p126 = scmp.eq.s32.totalorder %s14, 0
    %p127 = por %p125, %p126
    %p128 = scmp.ne.s32.totalorder %s114, %s115
    %p129 = scmp.eq.s32.totalorder %s15, 1
    %p130 = por %p128, %p129
    %p132 = scmp.ne.s32.totalorder %s115, %s131
    %p133 = scmp.eq.s32.totalorder %s15, 0
    %p134 = por %p132, %p133
    %p135 = scmp.le.s32.totalorder 1, %s9
    %p136 = scmp.lt.s32.totalorder %s9, 3
    %p137 = pnand %p135, %p136
    %p138 = pneg %p137
    // Predicated region
    $region9: #{tpu_custom_call.1} parent=5 // pred_check
      _
    $region10: #{tpu_custom_call.1} parent=5 // pred_check_branch
      %140 = sbr.rel (%p137) target = $region12
    $region11: #{tpu_custom_call.1} parent=5 // pred_region
      %s141 = ssub.s32 %s9, 1
      // Predicated region
      $region13: #{tpu_custom_call.1} parent=11 // pred_check
        %p142 = pneg %p73
      $region14: #{tpu_custom_call.1} parent=11 // pred_check_branch
        %144 = sbr.rel (%p142) target = $region16
      $region15: #{tpu_custom_call.1} parent=11 // pred_region
        %p145 = scmp.lt.s32.totalorder %s19, 0
        %s146 = scalar_select %p145, %s19, 0
        %s147 = smul.addr %s146, 4
        %s148 = scalar_lea.vmem %s1, %s147
      $region16: #{tpu_custom_call.1} parent=11 // pred_fallthru
        _
      // Predicated region
      $region17: #{tpu_custom_call.1} parent=11 // pred_check
        %p149 = pneg %p99
      $region18: #{tpu_custom_call.1} parent=11 // pred_check_branch
        %151 = sbr.rel (%p149) target = $region20
      $region19: #{tpu_custom_call.1} parent=11 // pred_region
        %p152 = scmp.lt.s32.totalorder %s19, 0
        %s153 = scalar_select %p152, %s19, 0
        %s154 = scalar_lea.vmem %s2, %s153
      $region20: #{tpu_custom_call.1} parent=11 // pred_fallthru
        _
    $region12: #{tpu_custom_call.1} parent=5 // pred_fallthru
      _
    %p155 = scmp.lt.s32.totalorder %s9, 2
    // Predicated region
    $region21: #{tpu_custom_call.1} parent=5 // pred_check
      %p156 = pneg %p155
    $region22: #{tpu_custom_call.1} parent=5 // pred_check_branch
      %158 = sbr.rel (%p156) target = $region24
    $region23: #{tpu_custom_call.1} parent=5 // pred_region
      // Predicated region
      $region25: #{tpu_custom_call.1} parent=23 // pred_check
        %p159 = pneg %p41
      $region26: #{tpu_custom_call.1} parent=23 // pred_check_branch
        %161 = sbr.rel (%p159) target = $region28
      $region27: #{tpu_custom_call.1} parent=23 // pred_region
        %p162 = scmp.lt.s32.totalorder %s16, 1
        %s163 = scalar_select %p162, %s16, 1
        %s164 = smul.addr %s163, 43
        %s165 = smul.addr %s164, 4
        %s166 = scalar_lea.vmem %s0, %s165
      $region28: #{tpu_custom_call.1} parent=23 // pred_fallthru
        _
    $region24: #{tpu_custom_call.1} parent=5 // pred_fallthru
      _
    %p167 = scmp.le.s32.totalorder 1, %s9
    %p168 = scmp.lt.s32.totalorder %s9, 3
    %p169 = pnand %p167, %p168
    %p170 = pneg %p169
    // Predicated region
    $region29: #{tpu_custom_call.1} parent=5 // pred_check
      _
    $region30: #{tpu_custom_call.1} parent=5 // pred_check_branch
      %172 = sbr.rel (%p169) target = $region32
    $region31: #{tpu_custom_call.1} parent=5 // pred_region
      %s173 = ssub.s32 %s9, 1
      %p174 = scmp.lt.s32.totalorder %s18, 1
      %s175 = scalar_select %p174, %s18, 1
      %s176 = smul.addr %s175, 43
      %s177 = smul.addr %s176, 4
      %s178 = scalar_lea.vmem %s0, %s177
      %p179 = pneg %p47
      %p180 = pneg %p44
      %p181 = scmp.lt.s32.totalorder %s19, 0
      %s182 = scalar_select %p181, %s19, 0
      %s183 = smul.addr %s182, 4
      %s184 = scalar_lea.vmem %s1, %s183
      %p185 = pneg %p73
      %p186 = pneg %p70
      %p187 = scmp.lt.s32.totalorder %s19, 0
      %s188 = scalar_select %p187, %s19, 0
      %s189 = scalar_lea.vmem %s2, %s188
      %p190 = pneg %p99
      %p191 = pneg %p96
      %p192 = pneg %p127
      %p193 = pneg %p124
      %p194 = scmp.lt.s32.totalorder %s18, 1
      %s195 = scalar_select %p194, %s18, 1
      %p196 = scmp.lt.s32.totalorder %s19, 0
      %s197 = scalar_select %p196, %s19, 0
      %s198 = smul.addr %s195, 36
      %s199 = sadd.s32 %s197, %s198
      %s200 = smul.addr %s199, 8
      %s201 = scalar_lea.vmem %s3, %s200
      %p202 = scmp.lt.s32.totalorder %s18, 1
      %s203 = scalar_select %p202, %s18, 1
      %s204 = smul.addr %s203, 43
      %s205 = smul.addr %s204, 4
      %s206 = scalar_lea.vmem %s0, %s205
      %p207 = scmp.lt.s32.totalorder %s19, 0
      %s208 = scalar_select %p207, %s19, 0
      %s209 = smul.addr %s208, 4
      %s210 = scalar_lea.vmem %s1, %s209
      %p211 = scmp.lt.s32.totalorder %s19, 0
      %s212 = scalar_select %p211, %s19, 0
      %s213 = scalar_lea.vmem %s2, %s212
      %p214 = scmp.lt.s32.totalorder %s18, 1
      %s215 = scalar_select %p214, %s18, 1
      %p216 = scmp.lt.s32.totalorder %s19, 0
      %s217 = scalar_select %p216, %s19, 0
      %s218 = smul.addr %s215, 36
      %s219 = sadd.s32 %s217, %s218
      %s220 = smul.addr %s219, 8
      %s221 = scalar_lea.vmem %s3, %s220
      %v223 = vld [vmem:[%s206] sm:$0xf]
      %v224 = vld [vmem:[%s206 + $0x4] sm:$0xf]
      %v225 = vld [vmem:[%s206 + $0x8] sm:$0xf]
      %v226 = vld [vmem:[%s206 + $0xc] sm:$0xf]
      %v227 = vld [vmem:[%s206 + $0x10] sm:$0xf]
      %v228 = vld [vmem:[%s206 + $0x14] sm:$0xf]
      %v229 = vld [vmem:[%s206 + $0x18] sm:$0xf]
      %v230 = vld [vmem:[%s206 + $0x1c] sm:$0xf]
      %v231 = vld [vmem:[%s206 + $0x20] sm:$0xf]
      %v232 = vld [vmem:[%s206 + $0x24] sm:$0xf]
      %v233 = vld [vmem:[%s206 + $0x28] sm:$0xf]
      %v234 = vld [vmem:[%s206 + $0x2c] sm:$0xf]
      %v235 = vld [vmem:[%s206 + $0x30] sm:$0xf]
      %v236 = vld [vmem:[%s206 + $0x34] sm:$0xf]
      %v237 = vld [vmem:[%s206 + $0x38] sm:$0xf]
      %v238 = vld [vmem:[%s206 + $0x3c] sm:$0xf]
      %v239 = vld [vmem:[%s206 + $0x40] sm:$0xf]
      %v240 = vld [vmem:[%s206 + $0x44] sm:$0xf]
      %v241 = vld [vmem:[%s206 + $0x48] sm:$0xf]
      %v242 = vld [vmem:[%s206 + $0x4c] sm:$0xf]
      %v243 = vld [vmem:[%s206 + $0x50] sm:$0xf]
      %v244 = vld [vmem:[%s206 + $0x54] sm:$0xf]
      %v245 = vld [vmem:[%s206 + $0x58] sm:$0xf]
      %v246 = vld [vmem:[%s206 + $0x5c] sm:$0xf]
      %v247 = vld [vmem:[%s206 + $0x60] sm:$0xf]
      %v248 = vld [vmem:[%s206 + $0x64] sm:$0xf]
      %v249 = vld [vmem:[%s206 + $0x68] sm:$0xf]
      %v250 = vld [vmem:[%s206 + $0x6c] sm:$0xf]
      %v251 = vld [vmem:[%s206 + $0x70] sm:$0xf]
      %v252 = vld [vmem:[%s206 + $0x74] sm:$0xf]
      %v253 = vld [vmem:[%s206 + $0x78] sm:$0xf]
      %v254 = vld [vmem:[%s206 + $0x7c] sm:$0xf]
      %v255 = vld [vmem:[%s206 + $0x80] sm:$0xf]
      %v256 = vld [vmem:[%s206 + $0x84] sm:$0xf]
      %v257 = vld [vmem:[%s206 + $0x88] sm:$0xf]
      %v258 = vld [vmem:[%s206 + $0x8c] sm:$0xf]
      %vm259 = vcmask 27648
      %260 = vst.msk [vmem:[#allocation2] sm:$0xf] %vm259, %v223
      %261 = vst.msk [vmem:[#allocation2 + $0x4] sm:$0xf] %vm259, %v224
      %262 = vst.msk [vmem:[#allocation2 + $0x8] sm:$0xf] %vm259, %v225
      %263 = vst.msk [vmem:[#allocation2 + $0xc] sm:$0xf] %vm259, %v226
      %264 = vst.msk [vmem:[#allocation2 + $0x10] sm:$0xf] %vm259, %v227
      %265 = vst.msk [vmem:[#allocation2 + $0x14] sm:$0xf] %vm259, %v228
      %266 = vst.msk [vmem:[#allocation2 + $0x18] sm:$0xf] %vm259, %v229
      %267 = vst.msk [vmem:[#allocation2 + $0x1c] sm:$0xf] %vm259, %v230
      %268 = vst.msk [vmem:[#allocation2 + $0x20] sm:$0xf] %vm259, %v231
      %269 = vst.msk [vmem:[#allocation2 + $0x24] sm:$0xf] %vm259, %v232
      %270 = vst.msk [vmem:[#allocation2 + $0x28] sm:$0xf] %vm259, %v233
      %271 = vst.msk [vmem:[#allocation2 + $0x2c] sm:$0xf] %vm259, %v234
      %272 = vst.msk [vmem:[#allocation2 + $0x30] sm:$0xf] %vm259, %v235
      %273 = vst.msk [vmem:[#allocation2 + $0x34] sm:$0xf] %vm259, %v236
      %274 = vst.msk [vmem:[#allocation2 + $0x38] sm:$0xf] %vm259, %v237
      %275 = vst.msk [vmem:[#allocation2 + $0x3c] sm:$0xf] %vm259, %v238
      %276 = vst.msk [vmem:[#allocation2 + $0x40] sm:$0xf] %vm259, %v239
      %277 = vst.msk [vmem:[#allocation2 + $0x44] sm:$0xf] %vm259, %v240
      %278 = vst.msk [vmem:[#allocation2 + $0x48] sm:$0xf] %vm259, %v241
      %279 = vst.msk [vmem:[#allocation2 + $0x4c] sm:$0xf] %vm259, %v242
      %280 = vst.msk [vmem:[#allocation2 + $0x50] sm:$0xf] %vm259, %v243
      %281 = vst.msk [vmem:[#allocation2 + $0x54] sm:$0xf] %vm259, %v244
      %282 = vst.msk [vmem:[#allocation2 + $0x58] sm:$0xf] %vm259, %v245
      %283 = vst.msk [vmem:[#allocation2 + $0x5c] sm:$0xf] %vm259, %v246
      %284 = vst.msk [vmem:[#allocation2 + $0x60] sm:$0xf] %vm259, %v247
      %285 = vst.msk [vmem:[#allocation2 + $0x64] sm:$0xf] %vm259, %v248
      %286 = vst.msk [vmem:[#allocation2 + $0x68] sm:$0xf] %vm259, %v249
      %287 = vst.msk [vmem:[#allocation2 + $0x6c] sm:$0xf] %vm259, %v250
      %288 = vst.msk [vmem:[#allocation2 + $0x70] sm:$0xf] %vm259, %v251
      %289 = vst.msk [vmem:[#allocation2 + $0x74] sm:$0xf] %vm259, %v252
      %290 = vst.msk [vmem:[#allocation2 + $0x78] sm:$0xf] %vm259, %v253
      %291 = vst.msk [vmem:[#allocation2 + $0x7c] sm:$0xf] %vm259, %v254
      %292 = vst.msk [vmem:[#allocation2 + $0x80] sm:$0xf] %vm259, %v255
      %293 = vst.msk [vmem:[#allocation2 + $0x84] sm:$0xf] %vm259, %v256
      %294 = vst.msk [vmem:[#allocation2 + $0x88] sm:$0xf] %vm259, %v257
      %295 = vst.msk [vmem:[#allocation2 + $0x8c] sm:$0xf] %vm259, %v258
      %v296 = vld [vmem:[%s206] sm:$0xf]
      %v297 = vld [vmem:[%s206 + $0x4] sm:$0xf]
      %v298 = vld [vmem:[%s206 + $0x8] sm:$0xf]
      %v299 = vld [vmem:[%s206 + $0xc] sm:$0xf]
      %v300 = vld [vmem:[%s206 + $0x10] sm:$0xf]
      %v301 = vld [vmem:[%s206 + $0x14] sm:$0xf]
      %v302 = vld [vmem:[%s206 + $0x18] sm:$0xf]
      %v303 = vld [vmem:[%s206 + $0x1c] sm:$0xf]
      %v304 = vld [vmem:[%s206 + $0x20] sm:$0xf]
      %v305 = vld [vmem:[%s206 + $0x24] sm:$0xf]
      %v306 = vld [vmem:[%s206 + $0x28] sm:$0xf]
      %v307 = vld [vmem:[%s206 + $0x2c] sm:$0xf]
      %v308 = vld [vmem:[%s206 + $0x30] sm:$0xf]
      %v309 = vld [vmem:[%s206 + $0x34] sm:$0xf]
      %v310 = vld [vmem:[%s206 + $0x38] sm:$0xf]
      %v311 = vld [vmem:[%s206 + $0x3c] sm:$0xf]
      %v312 = vld [vmem:[%s206 + $0x40] sm:$0xf]
      %v313 = vld [vmem:[%s206 + $0x44] sm:$0xf]
      %v314 = vld [vmem:[%s206 + $0x48] sm:$0xf]
      %v315 = vld [vmem:[%s206 + $0x4c] sm:$0xf]
      %v316 = vld [vmem:[%s206 + $0x50] sm:$0xf]
      %v317 = vld [vmem:[%s206 + $0x54] sm:$0xf]
      %v318 = vld [vmem:[%s206 + $0x58] sm:$0xf]
      %v319 = vld [vmem:[%s206 + $0x5c] sm:$0xf]
      %v320 = vld [vmem:[%s206 + $0x60] sm:$0xf]
      %v321 = vld [vmem:[%s206 + $0x64] sm:$0xf]
      %v322 = vld [vmem:[%s206 + $0x68] sm:$0xf]
      %v323 = vld [vmem:[%s206 + $0x6c] sm:$0xf]
      %v324 = vld [vmem:[%s206 + $0x70] sm:$0xf]
      %v325 = vld [vmem:[%s206 + $0x74] sm:$0xf]
      %v326 = vld [vmem:[%s206 + $0x78] sm:$0xf]
      %v327 = vld [vmem:[%s206 + $0x7c] sm:$0xf]
      %v328 = vld [vmem:[%s206 + $0x80] sm:$0xf]
      %v329 = vld [vmem:[%s206 + $0x84] sm:$0xf]
      %v330 = vld [vmem:[%s206 + $0x88] sm:$0xf]
      %v331 = vld [vmem:[%s206 + $0x8c] sm:$0xf]
      %v332 = vld [vmem:[%s206 + $0x90] sm:$0x1]
      %vm333 = vsmask.f32 3328
      %vm334 = vsmask.f32 7440
      %vm335 = vmor %vm333, %vm334
      %v337 = vshrl.u32 %v296, 16
      %v339 = vrot.slane %v337, 4
      %v340 = vshll.u32 %v296, 16
      %v342 = vrot.slane %v340, 5
      %v343 = vor.u32 %v339, %v342
      %v344 = vrot.slane %v343, 4
      %v346 = vshll.u32 %v297, 16
      %v348 = vrot.slane %v346, 5
      %v349 = vsel %vm335, %v344, %v348
      %v350 = vshrl.u32 %v297, 16
      %v352 = vrot.slane %v350, 4
      %v353 = vor.u32 %v352, %v348
      %v354 = vrot.slane %v353, 4
      %v356 = vshll.u32 %v298, 16
      %v358 = vrot.slane %v356, 5
      %v359 = vsel %vm335, %v354, %v358
      %v360 = vshrl.u32 %v298, 16
      %v362 = vrot.slane %v360, 4
      %v363 = vor.u32 %v362, %v358
      %v364 = vrot.slane %v363, 4
      %v366 = vshll.u32 %v299, 16
      %v368 = vrot.slane %v366, 5
      %v369 = vsel %vm335, %v364, %v368
      %v370 = vshrl.u32 %v299, 16
      %v372 = vrot.slane %v370, 4
      %v373 = vor.u32 %v372, %v368
      %v374 = vrot.slane %v373, 4
      %v376 = vshll.u32 %v300, 16
      %v378 = vrot.slane %v376, 5
      %v379 = vsel %vm335, %v374, %v378
      %v380 = vshrl.u32 %v300, 16
      %v382 = vrot.slane %v380, 4
      %v383 = vor.u32 %v382, %v378
      %v384 = vrot.slane %v383, 4
      %v386 = vshll.u32 %v301, 16
      %v388 = vrot.slane %v386, 5
      %v389 = vsel %vm335, %v384, %v388
      %v390 = vshrl.u32 %v301, 16
      %v392 = vrot.slane %v390, 4
      %v393 = vor.u32 %v392, %v388
      %v394 = vrot.slane %v393, 4
      %v396 = vshll.u32 %v302, 16
      %v398 = vrot.slane %v396, 5
      %v399 = vsel %vm335, %v394, %v398
      %v400 = vshrl.u32 %v302, 16
      %v402 = vrot.slane %v400, 4
      %v403 = vor.u32 %v402, %v398
      %v404 = vrot.slane %v403, 4
      %v406 = vshll.u32 %v303, 16
      %v408 = vrot.slane %v406, 5
      %v409 = vsel %vm335, %v404, %v408
      %v410 = vshrl.u32 %v303, 16
      %v412 = vrot.slane %v410, 4
      %v413 = vor.u32 %v412, %v408
      %v414 = vrot.slane %v413, 4
      %v416 = vshll.u32 %v304, 16
      %v418 = vrot.slane %v416, 5
      %v419 = vsel %vm335, %v414, %v418
      %v420 = vshrl.u32 %v304, 16
      %v422 = vrot.slane %v420, 4
      %v423 = vor.u32 %v422, %v418
      %v424 = vrot.slane %v423, 4
      %v426 = vshll.u32 %v305, 16
      %v428 = vrot.slane %v426, 5
      %v429 = vsel %vm335, %v424, %v428
      %v430 = vshrl.u32 %v305, 16
      %v432 = vrot.slane %v430, 4
      %v433 = vor.u32 %v432, %v428
      %v434 = vrot.slane %v433, 4
      %v436 = vshll.u32 %v306, 16
      %v438 = vrot.slane %v436, 5
      %v439 = vsel %vm335, %v434, %v438
      %v440 = vshrl.u32 %v306, 16
      %v442 = vrot.slane %v440, 4
      %v443 = vor.u32 %v442, %v438
      %v444 = vrot.slane %v443, 4
      %v446 = vshll.u32 %v307, 16
      %v448 = vrot.slane %v446, 5
      %v449 = vsel %vm335, %v444, %v448
      %v450 = vshrl.u32 %v307, 16
      %v452 = vrot.slane %v450, 4
      %v453 = vor.u32 %v452, %v448
      %v454 = vrot.slane %v453, 4
      %v456 = vshll.u32 %v308, 16
      %v458 = vrot.slane %v456, 5
      %v459 = vsel %vm335, %v454, %v458
      %v460 = vshrl.u32 %v308, 16
      %v462 = vrot.slane %v460, 4
      %v463 = vor.u32 %v462, %v458
      %v464 = vrot.slane %v463, 4
      %v466 = vshll.u32 %v309, 16
      %v468 = vrot.slane %v466, 5
      %v469 = vsel %vm335, %v464, %v468
      %v470 = vshrl.u32 %v309, 16
      %v472 = vrot.slane %v470, 4
      %v473 = vor.u32 %v472, %v468
      %v474 = vrot.slane %v473, 4
      %v476 = vshll.u32 %v310, 16
      %v478 = vrot.slane %v476, 5
      %v479 = vsel %vm335, %v474, %v478
      %v480 = vshrl.u32 %v310, 16
      %v482 = vrot.slane %v480, 4
      %v483 = vor.u32 %v482, %v478
      %v484 = vrot.slane %v483, 4
      %v486 = vshll.u32 %v311, 16
      %v488 = vrot.slane %v486, 5
      %v489 = vsel %vm335, %v484, %v488
      %v490 = vshrl.u32 %v311, 16
      %v492 = vrot.slane %v490, 4
      %v493 = vor.u32 %v492, %v488
      %v494 = vrot.slane %v493, 4
      %v496 = vshll.u32 %v312, 16
      %v498 = vrot.slane %v496, 5
      %v499 = vsel %vm335, %v494, %v498
      %v500 = vshrl.u32 %v312, 16
      %v502 = vrot.slane %v500, 4
      %v503 = vor.u32 %v502, %v498
      %v504 = vrot.slane %v503, 4
      %v506 = vshll.u32 %v313, 16
      %v508 = vrot.slane %v506, 5
      %v509 = vsel %vm335, %v504, %v508
      %v510 = vshrl.u32 %v313, 16
      %v512 = vrot.slane %v510, 4
      %v513 = vor.u32 %v512, %v508
      %v514 = vrot.slane %v513, 4
      %v516 = vshll.u32 %v314, 16
      %v518 = vrot.slane %v516, 5
      %v519 = vsel %vm335, %v514, %v518
      %v520 = vshrl.u32 %v314, 16
      %v522 = vrot.slane %v520, 4
      %v523 = vor.u32 %v522, %v518
      %v524 = vrot.slane %v523, 4
      %v526 = vshll.u32 %v315, 16
      %v528 = vrot.slane %v526, 5
      %v529 = vsel %vm335, %v524, %v528
      %v530 = vshrl.u32 %v315, 16
      %v532 = vrot.slane %v530, 4
      %v533 = vor.u32 %v532, %v528
      %v534 = vrot.slane %v533, 4
      %v536 = vshll.u32 %v316, 16
      %v538 = vrot.slane %v536, 5
      %v539 = vsel %vm335, %v534, %v538
      %v540 = vshrl.u32 %v316, 16
      %v542 = vrot.slane %v540, 4
      %v543 = vor.u32 %v542, %v538
      %v544 = vrot.slane %v543, 4
      %v546 = vshll.u32 %v317, 16
      %v548 = vrot.slane %v546, 5
      %v549 = vsel %vm335, %v544, %v548
      %v550 = vshrl.u32 %v317, 16
      %v552 = vrot.slane %v550, 4
      %v553 = vor.u32 %v552, %v548
      %v554 = vrot.slane %v553, 4
      %v556 = vshll.u32 %v318, 16
      %v558 = vrot.slane %v556, 5
      %v559 = vsel %vm335, %v554, %v558
      %v560 = vshrl.u32 %v318, 16
      %v562 = vrot.slane %v560, 4
      %v563 = vor.u32 %v562, %v558
      %v564 = vrot.slane %v563, 4
      %v566 = vshll.u32 %v319, 16
      %v568 = vrot.slane %v566, 5
      %v569 = vsel %vm335, %v564, %v568
      %v570 = vshrl.u32 %v319, 16
      %v572 = vrot.slane %v570, 4
      %v573 = vor.u32 %v572, %v568
      %v574 = vrot.slane %v573, 4
      %v576 = vshll.u32 %v320, 16
      %v578 = vrot.slane %v576, 5
      %v579 = vsel %vm335, %v574, %v578
      %v580 = vshrl.u32 %v320, 16
      %v582 = vrot.slane %v580, 4
      %v583 = vor.u32 %v582, %v578
      %v584 = vrot.slane %v583, 4
      %v586 = vshll.u32 %v321, 16
      %v588 = vrot.slane %v586, 5
      %v589 = vsel %vm335, %v584, %v588
      %v590 = vshrl.u32 %v321, 16
      %v592 = vrot.slane %v590, 4
      %v593 = vor.u32 %v592, %v588
      %v594 = vrot.slane %v593, 4
      %v596 = vshll.u32 %v322, 16
      %v598 = vrot.slane %v596, 5
      %v599 = vsel %vm335, %v594, %v598
      %v600 = vshrl.u32 %v322, 16
      %v602 = vrot.slane %v600, 4
      %v603 = vor.u32 %v602, %v598
      %v604 = vrot.slane %v603, 4
      %v606 = vshll.u32 %v323, 16
      %v608 = vrot.slane %v606, 5
      %v609 = vsel %vm335, %v604, %v608
      %v610 = vshrl.u32 %v323, 16
      %v612 = vrot.slane %v610, 4
      %v613 = vor.u32 %v612, %v608
      %v614 = vrot.slane %v613, 4
      %v616 = vshll.u32 %v324, 16
      %v618 = vrot.slane %v616, 5
      %v619 = vsel %vm335, %v614, %v618
      %v620 = vshrl.u32 %v324, 16
      %v622 = vrot.slane %v620, 4
      %v623 = vor.u32 %v622, %v618
      %v624 = vrot.slane %v623, 4
      %v626 = vshll.u32 %v325, 16
      %v628 = vrot.slane %v626, 5
      %v629 = vsel %vm335, %v624, %v628
      %v630 = vshrl.u32 %v325, 16
      %v632 = vrot.slane %v630, 4
      %v633 = vor.u32 %v632, %v628
      %v634 = vrot.slane %v633, 4
      %v636 = vshll.u32 %v326, 16
      %v638 = vrot.slane %v636, 5
      %v639 = vsel %vm335, %v634, %v638
      %v640 = vshrl.u32 %v326, 16
      %v642 = vrot.slane %v640, 4
      %v643 = vor.u32 %v642, %v638
      %v644 = vrot.slane %v643, 4
      %v646 = vshll.u32 %v327, 16
      %v648 = vrot.slane %v646, 5
      %v649 = vsel %vm335, %v644, %v648
      %v650 = vshrl.u32 %v327, 16
      %v652 = vrot.slane %v650, 4
      %v653 = vor.u32 %v652, %v648
      %v654 = vrot.slane %v653, 4
      %v656 = vshll.u32 %v328, 16
      %v658 = vrot.slane %v656, 5
      %v659 = vsel %vm335, %v654, %v658
      %v660 = vshrl.u32 %v328, 16
      %v662 = vrot.slane %v660, 4
      %v663 = vor.u32 %v662, %v658
      %v664 = vrot.slane %v663, 4
      %v666 = vshll.u32 %v329, 16
      %v668 = vrot.slane %v666, 5
      %v669 = vsel %vm335, %v664, %v668
      %v670 = vshrl.u32 %v329, 16
      %v672 = vrot.slane %v670, 4
      %v673 = vor.u32 %v672, %v668
      %v674 = vrot.slane %v673, 4
      %v676 = vshll.u32 %v330, 16
      %v678 = vrot.slane %v676, 5
      %v679 = vsel %vm335, %v674, %v678
      %v680 = vshrl.u32 %v330, 16
      %v682 = vrot.slane %v680, 4
      %v683 = vor.u32 %v682, %v678
      %v684 = vrot.slane %v683, 4
      %v686 = vshll.u32 %v331, 16
      %v688 = vrot.slane %v686, 5
      %v689 = vsel %vm335, %v684, %v688
      %v690 = vshrl.u32 %v331, 16
      %v692 = vrot.slane %v690, 4
      %v693 = vor.u32 %v692, %v688
      %v694 = vrot.slane %v693, 4
      %v696 = vshll.u32 %v332, 16
      %v698 = vrot.slane %v696, 5
      %v699 = vsel %vm335, %v694, %v698
      %700 = vrot.lane.b32.xlu0 %v349, 4
      %v701 = vpop.permute.xlu0 %700
      %702 = vrot.lane.b32.xlu0 %v359, 4
      %v703 = vpop.permute.xlu0 %702
      %704 = vrot.lane.b32.xlu0 %v369, 4
      %v705 = vpop.permute.xlu0 %704
      %706 = vrot.lane.b32.xlu0 %v379, 4
      %v707 = vpop.permute.xlu0 %706
      %708 = vrot.lane.b32.xlu0 %v389, 4
      %v709 = vpop.permute.xlu0 %708
      %710 = vrot.lane.b32.xlu0 %v399, 4
      %v711 = vpop.permute.xlu0 %710
      %712 = vrot.lane.b32.xlu0 %v409, 4
      %v713 = vpop.permute.xlu0 %712
      %714 = vrot.lane.b32.xlu0 %v419, 4
      %v715 = vpop.permute.xlu0 %714
      %716 = vrot.lane.b32.xlu0 %v429, 4
      %v717 = vpop.permute.xlu0 %716
      %718 = vrot.lane.b32.xlu0 %v439, 4
      %v719 = vpop.permute.xlu0 %718
      %720 = vrot.lane.b32.xlu0 %v449, 4
      %v721 = vpop.permute.xlu0 %720
      %722 = vrot.lane.b32.xlu0 %v459, 4
      %v723 = vpop.permute.xlu0 %722
      %724 = vrot.lane.b32.xlu0 %v469, 4
      %v725 = vpop.permute.xlu0 %724
      %726 = vrot.lane.b32.xlu0 %v479, 4
      %v727 = vpop.permute.xlu0 %726
      %728 = vrot.lane.b32.xlu0 %v489, 4
      %v729 = vpop.permute.xlu0 %728
      %730 = vrot.lane.b32.xlu0 %v499, 4
      %v731 = vpop.permute.xlu0 %730
      %732 = vrot.lane.b32.xlu0 %v509, 4
      %v733 = vpop.permute.xlu0 %732
      %734 = vrot.lane.b32.xlu0 %v519, 4
      %v735 = vpop.permute.xlu0 %734
      %736 = vrot.lane.b32.xlu0 %v529, 4
      %v737 = vpop.permute.xlu0 %736
      %738 = vrot.lane.b32.xlu0 %v539, 4
      %v739 = vpop.permute.xlu0 %738
      %740 = vrot.lane.b32.xlu0 %v549, 4
      %v741 = vpop.permute.xlu0 %740
      %742 = vrot.lane.b32.xlu0 %v559, 4
      %v743 = vpop.permute.xlu0 %742
      %744 = vrot.lane.b32.xlu0 %v569, 4
      %v745 = vpop.permute.xlu0 %744
      %746 = vrot.lane.b32.xlu0 %v579, 4
      %v747 = vpop.permute.xlu0 %746
      %748 = vrot.lane.b32.xlu0 %v589, 4
      %v749 = vpop.permute.xlu0 %748
      %750 = vrot.lane.b32.xlu0 %v599, 4
      %v751 = vpop.permute.xlu0 %750
      %752 = vrot.lane.b32.xlu0 %v609, 4
      %v753 = vpop.permute.xlu0 %752
      %754 = vrot.lane.b32.xlu0 %v619, 4
      %v755 = vpop.permute.xlu0 %754
      %756 = vrot.lane.b32.xlu0 %v629, 4
      %v757 = vpop.permute.xlu0 %756
      %758 = vrot.lane.b32.xlu0 %v639, 4
      %v759 = vpop.permute.xlu0 %758
      %760 = vrot.lane.b32.xlu0 %v649, 4
      %v761 = vpop.permute.xlu0 %760
      %762 = vrot.lane.b32.xlu0 %v659, 4
      %v763 = vpop.permute.xlu0 %762
      %764 = vrot.lane.b32.xlu0 %v669, 4
      %v765 = vpop.permute.xlu0 %764
      %766 = vrot.lane.b32.xlu0 %v679, 4
      %v767 = vpop.permute.xlu0 %766
      %768 = vrot.lane.b32.xlu0 %v689, 4
      %v769 = vpop.permute.xlu0 %768
      %770 = vrot.lane.b32.xlu0 %v699, 4
      %v771 = vpop.permute.xlu0 %770
      %vm808 = vcmask 60448
      %809 = vst.msk [vmem:[#allocation2] sm:$0xf] %vm808, %v701
      %810 = vst.msk [vmem:[#allocation2 + $0x4] sm:$0xf] %vm808, %v703
      %811 = vst.msk [vmem:[#allocation2 + $0x8] sm:$0xf] %vm808, %v705
      %812 = vst.msk [vmem:[#allocation2 + $0xc] sm:$0xf] %vm808, %v707
      %813 = vst.msk [vmem:[#allocation2 + $0x10] sm:$0xf] %vm808, %v709
      %814 = vst.msk [vmem:[#allocation2 + $0x14] sm:$0xf] %vm808, %v711
      %815 = vst.msk [vmem:[#allocation2 + $0x18] sm:$0xf] %vm808, %v713
      %816 = vst.msk [vmem:[#allocation2 + $0x1c] sm:$0xf] %vm808, %v715
      %817 = vst.msk [vmem:[#allocation2 + $0x20] sm:$0xf] %vm808, %v717
      %818 = vst.msk [vmem:[#allocation2 + $0x24] sm:$0xf] %vm808, %v719
      %819 = vst.msk [vmem:[#allocation2 + $0x28] sm:$0xf] %vm808, %v721
      %820 = vst.msk [vmem:[#allocation2 + $0x2c] sm:$0xf] %vm808, %v723
      %821 = vst.msk [vmem:[#allocation2 + $0x30] sm:$0xf] %vm808, %v725
      %822 = vst.msk [vmem:[#allocation2 + $0x34] sm:$0xf] %vm808, %v727
      %823 = vst.msk [vmem:[#allocation2 + $0x38] sm:$0xf] %vm808, %v729
      %824 = vst.msk [vmem:[#allocation2 + $0x3c] sm:$0xf] %vm808, %v731
      %825 = vst.msk [vmem:[#allocation2 + $0x40] sm:$0xf] %vm808, %v733
      %826 = vst.msk [vmem:[#allocation2 + $0x44] sm:$0xf] %vm808, %v735
      %827 = vst.msk [vmem:[#allocation2 + $0x48] sm:$0xf] %vm808, %v737
      %828 = vst.msk [vmem:[#allocation2 + $0x4c] sm:$0xf] %vm808, %v739
      %829 = vst.msk [vmem:[#allocation2 + $0x50] sm:$0xf] %vm808, %v741
      %830 = vst.msk [vmem:[#allocation2 + $0x54] sm:$0xf] %vm808, %v743
      %831 = vst.msk [vmem:[#allocation2 + $0x58] sm:$0xf] %vm808, %v745
      %832 = vst.msk [vmem:[#allocation2 + $0x5c] sm:$0xf] %vm808, %v747
      %833 = vst.msk [vmem:[#allocation2 + $0x60] sm:$0xf] %vm808, %v749
      %834 = vst.msk [vmem:[#allocation2 + $0x64] sm:$0xf] %vm808, %v751
      %835 = vst.msk [vmem:[#allocation2 + $0x68] sm:$0xf] %vm808, %v753
      %836 = vst.msk [vmem:[#allocation2 + $0x6c] sm:$0xf] %vm808, %v755
      %837 = vst.msk [vmem:[#allocation2 + $0x70] sm:$0xf] %vm808, %v757
      %838 = vst.msk [vmem:[#allocation2 + $0x74] sm:$0xf] %vm808, %v759
      %839 = vst.msk [vmem:[#allocation2 + $0x78] sm:$0xf] %vm808, %v761
      %840 = vst.msk [vmem:[#allocation2 + $0x7c] sm:$0xf] %vm808, %v763
      %841 = vst.msk [vmem:[#allocation2 + $0x80] sm:$0xf] %vm808, %v765
      %842 = vst.msk [vmem:[#allocation2 + $0x84] sm:$0xf] %vm808, %v767
      %843 = vst.msk [vmem:[#allocation2 + $0x88] sm:$0xf] %vm808, %v769
      %844 = vst.msk [vmem:[#allocation2 + $0x8c] sm:$0xf] %vm808, %v771
      %v845 = vld [vmem:[%s206] sm:$0xe]
      %v846 = vld [vmem:[%s206 + $0x4] sm:$0xf]
      %v847 = vld [vmem:[%s206 + $0x8] sm:$0xf]
      %v848 = vld [vmem:[%s206 + $0xc] sm:$0xf]
      %v849 = vld [vmem:[%s206 + $0x10] sm:$0xf]
      %v850 = vld [vmem:[%s206 + $0x14] sm:$0xf]
      %v851 = vld [vmem:[%s206 + $0x18] sm:$0xf]
      %v852 = vld [vmem:[%s206 + $0x1c] sm:$0xf]
      %v853 = vld [vmem:[%s206 + $0x20] sm:$0xf]
      %v854 = vld [vmem:[%s206 + $0x24] sm:$0xf]
      %v855 = vld [vmem:[%s206 + $0x28] sm:$0xf]
      %v856 = vld [vmem:[%s206 + $0x2c] sm:$0xf]
      %v857 = vld [vmem:[%s206 + $0x30] sm:$0xf]
      %v858 = vld [vmem:[%s206 + $0x34] sm:$0xf]
      %v859 = vld [vmem:[%s206 + $0x38] sm:$0xf]
      %v860 = vld [vmem:[%s206 + $0x3c] sm:$0xf]
      %v861 = vld [vmem:[%s206 + $0x40] sm:$0xf]
      %v862 = vld [vmem:[%s206 + $0x44] sm:$0xf]
      %v863 = vld [vmem:[%s206 + $0x48] sm:$0xf]
      %v864 = vld [vmem:[%s206 + $0x4c] sm:$0xf]
      %v865 = vld [vmem:[%s206 + $0x50] sm:$0xf]
      %v866 = vld [vmem:[%s206 + $0x54] sm:$0xf]
      %v867 = vld [vmem:[%s206 + $0x58] sm:$0xf]
      %v868 = vld [vmem:[%s206 + $0x5c] sm:$0xf]
      %v869 = vld [vmem:[%s206 + $0x60] sm:$0xf]
      %v870 = vld [vmem:[%s206 + $0x64] sm:$0xf]
      %v871 = vld [vmem:[%s206 + $0x68] sm:$0xf]
      %v872 = vld [vmem:[%s206 + $0x6c] sm:$0xf]
      %v873 = vld [vmem:[%s206 + $0x70] sm:$0xf]
      %v874 = vld [vmem:[%s206 + $0x74] sm:$0xf]
      %v875 = vld [vmem:[%s206 + $0x78] sm:$0xf]
      %v876 = vld [vmem:[%s206 + $0x7c] sm:$0xf]
      %v877 = vld [vmem:[%s206 + $0x80] sm:$0xf]
      %v878 = vld [vmem:[%s206 + $0x84] sm:$0xf]
      %v879 = vld [vmem:[%s206 + $0x88] sm:$0xf]
      %v880 = vld [vmem:[%s206 + $0x8c] sm:$0xf]
      %v881 = vld [vmem:[%s206 + $0x90] sm:$0x1]
      %vm919 = vcmask 1042432
      %vm920 = vcmask 1046532
      %vm921 = vmor %vm919, %vm920
      %v922 = vrot.slane %v845, 5
      %v923 = vrot.slane %v922, 4
      %v924 = vrot.slane %v846, 5
      %v925 = vsel %vm921, %v923, %v924
      %v926 = vrot.slane %v924, 4
      %v927 = vrot.slane %v847, 5
      %v928 = vsel %vm921, %v926, %v927
      %v929 = vrot.slane %v927, 4
      %v930 = vrot.slane %v848, 5
      %v931 = vsel %vm921, %v929, %v930
      %v932 = vrot.slane %v930, 4
      %v933 = vrot.slane %v849, 5
      %v934 = vsel %vm921, %v932, %v933
      %v935 = vrot.slane %v933, 4
      %v936 = vrot.slane %v850, 5
      %v937 = vsel %vm921, %v935, %v936
      %v938 = vrot.slane %v936, 4
      %v939 = vrot.slane %v851, 5
      %v940 = vsel %vm921, %v938, %v939
      %v941 = vrot.slane %v939, 4
      %v942 = vrot.slane %v852, 5
      %v943 = vsel %vm921, %v941, %v942
      %v944 = vrot.slane %v942, 4
      %v945 = vrot.slane %v853, 5
      %v946 = vsel %vm921, %v944, %v945
      %v947 = vrot.slane %v945, 4
      %v948 = vrot.slane %v854, 5
      %v949 = vsel %vm921, %v947, %v948
      %v950 = vrot.slane %v948, 4
      %v951 = vrot.slane %v855, 5
      %v952 = vsel %vm921, %v950, %v951
      %v953 = vrot.slane %v951, 4
      %v954 = vrot.slane %v856, 5
      %v955 = vsel %vm921, %v953, %v954
      %v956 = vrot.slane %v954, 4
      %v957 = vrot.slane %v857, 5
      %v958 = vsel %vm921, %v956, %v957
      %v959 = vrot.slane %v957, 4
      %v960 = vrot.slane %v858, 5
      %v961 = vsel %vm921, %v959, %v960
      %v962 = vrot.slane %v960, 4
      %v963 = vrot.slane %v859, 5
      %v964 = vsel %vm921, %v962, %v963
      %v965 = vrot.slane %v963, 4
      %v966 = vrot.slane %v860, 5
      %v967 = vsel %vm921, %v965, %v966
      %v968 = vrot.slane %v966, 4
      %v969 = vrot.slane %v861, 5
      %v970 = vsel %vm921, %v968, %v969
      %v971 = vrot.slane %v969, 4
      %v972 = vrot.slane %v862, 5
      %v973 = vsel %vm921, %v971, %v972
      %v974 = vrot.slane %v972, 4
      %v975 = vrot.slane %v863, 5
      %v976 = vsel %vm921, %v974, %v975
      %v977 = vrot.slane %v975, 4
      %v978 = vrot.slane %v864, 5
      %v979 = vsel %vm921, %v977, %v978
      %v980 = vrot.slane %v978, 4
      %v981 = vrot.slane %v865, 5
      %v982 = vsel %vm921, %v980, %v981
      %v983 = vrot.slane %v981, 4
      %v984 = vrot.slane %v866, 5
      %v985 = vsel %vm921, %v983, %v984
      %v986 = vrot.slane %v984, 4
      %v987 = vrot.slane %v867, 5
      %v988 = vsel %vm921, %v986, %v987
      %v989 = vrot.slane %v987, 4
      %v990 = vrot.slane %v868, 5
      %v991 = vsel %vm921, %v989, %v990
      %v992 = vrot.slane %v990, 4
      %v993 = vrot.slane %v869, 5
      %v994 = vsel %vm921, %v992, %v993
      %v995 = vrot.slane %v993, 4
      %v996 = vrot.slane %v870, 5
      %v997 = vsel %vm921, %v995, %v996
      %v998 = vrot.slane %v996, 4
      %v999 = vrot.slane %v871, 5
      %v1000 = vsel %vm921, %v998, %v999
      %v1001 = vrot.slane %v999, 4
      %v1002 = vrot.slane %v872, 5
      %v1003 = vsel %vm921, %v1001, %v1002
      %v1004 = vrot.slane %v1002, 4
      %v1005 = vrot.slane %v873, 5
      %v1006 = vsel %vm921, %v1004, %v1005
      %v1007 = vrot.slane %v1005, 4
      %v1008 = vrot.slane %v874, 5
      %v1009 = vsel %vm921, %v1007, %v1008
      %v1010 = vrot.slane %v1008, 4
      %v1011 = vrot.slane %v875, 5
      %v1012 = vsel %vm921, %v1010, %v1011
      %v1013 = vrot.slane %v1011, 4
      %v1014 = vrot.slane %v876, 5
      %v1015 = vsel %vm921, %v1013, %v1014
      %v1016 = vrot.slane %v1014, 4
      %v1017 = vrot.slane %v877, 5
      %v1018 = vsel %vm921, %v1016, %v1017
      %v1019 = vrot.slane %v1017, 4
      %v1020 = vrot.slane %v878, 5
      %v1021 = vsel %vm921, %v1019, %v1020
      %v1022 = vrot.slane %v1020, 4
      %v1023 = vrot.slane %v879, 5
      %v1024 = vsel %vm921, %v1022, %v1023
      %v1025 = vrot.slane %v1023, 4
      %v1026 = vrot.slane %v880, 5
      %v1027 = vsel %vm921, %v1025, %v1026
      %v1028 = vrot.slane %v1026, 4
      %v1029 = vrot.slane %v881, 5
      %v1030 = vsel %vm921, %v1028, %v1029
      %1031 = vrot.lane.b32.xlu0 %v925, 8
      %v1032 = vpop.permute.xlu0 %1031
      %1033 = vrot.lane.b32.xlu0 %v928, 8
      %v1034 = vpop.permute.xlu0 %1033
      %1035 = vrot.lane.b32.xlu0 %v931, 8
      %v1036 = vpop.permute.xlu0 %1035
      %1037 = vrot.lane.b32.xlu0 %v934, 8
      %v1038 = vpop.permute.xlu0 %1037
      %1039 = vrot.lane.b32.xlu0 %v937, 8
      %v1040 = vpop.permute.xlu0 %1039
      %1041 = vrot.lane.b32.xlu0 %v940, 8
      %v1042 = vpop.permute.xlu0 %1041
      %1043 = vrot.lane.b32.xlu0 %v943, 8
      %v1044 = vpop.permute.xlu0 %1043
      %1045 = vrot.lane.b32.xlu0 %v946, 8
      %v1046 = vpop.permute.xlu0 %1045
      %1047 = vrot.lane.b32.xlu0 %v949, 8
      %v1048 = vpop.permute.xlu0 %1047
      %1049 = vrot.lane.b32.xlu0 %v952, 8
      %v1050 = vpop.permute.xlu0 %1049
      %1051 = vrot.lane.b32.xlu0 %v955, 8
      %v1052 = vpop.permute.xlu0 %1051
      %1053 = vrot.lane.b32.xlu0 %v958, 8
      %v1054 = vpop.permute.xlu0 %1053
      %1055 = vrot.lane.b32.xlu0 %v961, 8
      %v1056 = vpop.permute.xlu0 %1055
      %1057 = vrot.lane.b32.xlu0 %v964, 8
      %v1058 = vpop.permute.xlu0 %1057
      %1059 = vrot.lane.b32.xlu0 %v967, 8
      %v1060 = vpop.permute.xlu0 %1059
      %1061 = vrot.lane.b32.xlu0 %v970, 8
      %v1062 = vpop.permute.xlu0 %1061
      %1063 = vrot.lane.b32.xlu0 %v973, 8
      %v1064 = vpop.permute.xlu0 %1063
      %1065 = vrot.lane.b32.xlu0 %v976, 8
      %v1066 = vpop.permute.xlu0 %1065
      %1067 = vrot.lane.b32.xlu0 %v979, 8
      %v1068 = vpop.permute.xlu0 %1067
      %1069 = vrot.lane.b32.xlu0 %v982, 8
      %v1070 = vpop.permute.xlu0 %1069
      %1071 = vrot.lane.b32.xlu0 %v985, 8
      %v1072 = vpop.permute.xlu0 %1071
      %1073 = vrot.lane.b32.xlu0 %v988, 8
      %v1074 = vpop.permute.xlu0 %1073
      %1075 = vrot.lane.b32.xlu0 %v991, 8
      %v1076 = vpop.permute.xlu0 %1075
      %1077 = vrot.lane.b32.xlu0 %v994, 8
      %v1078 = vpop.permute.xlu0 %1077
      %1079 = vrot.lane.b32.xlu0 %v997, 8
      %v1080 = vpop.permute.xlu0 %1079
      %1081 = vrot.lane.b32.xlu0 %v1000, 8
      %v1082 = vpop.permute.xlu0 %1081
      %1083 = vrot.lane.b32.xlu0 %v1003, 8
      %v1084 = vpop.permute.xlu0 %1083
      %1085 = vrot.lane.b32.xlu0 %v1006, 8
      %v1086 = vpop.permute.xlu0 %1085
      %1087 = vrot.lane.b32.xlu0 %v1009, 8
      %v1088 = vpop.permute.xlu0 %1087
      %1089 = vrot.lane.b32.xlu0 %v1012, 8
      %v1090 = vpop.permute.xlu0 %1089
      %1091 = vrot.lane.b32.xlu0 %v1015, 8
      %v1092 = vpop.permute.xlu0 %1091
      %1093 = vrot.lane.b32.xlu0 %v1018, 8
      %v1094 = vpop.permute.xlu0 %1093
      %1095 = vrot.lane.b32.xlu0 %v1021, 8
      %v1096 = vpop.permute.xlu0 %1095
      %1097 = vrot.lane.b32.xlu0 %v1024, 8
      %v1098 = vpop.permute.xlu0 %1097
      %1099 = vrot.lane.b32.xlu0 %v1027, 8
      %v1100 = vpop.permute.xlu0 %1099
      %1101 = vrot.lane.b32.xlu0 %v1030, 8
      %v1102 = vpop.permute.xlu0 %1101
      %vm1139 = vcmask 93248
      %1140 = vst.msk [vmem:[#allocation2] sm:$0xf] %vm1139, %v1032
      %1141 = vst.msk [vmem:[#allocation2 + $0x4] sm:$0xf] %vm1139, %v1034
      %1142 = vst.msk [vmem:[#allocation2 + $0x8] sm:$0xf] %vm1139, %v1036
      %1143 = vst.msk [vmem:[#allocation2 + $0xc] sm:$0xf] %vm1139, %v1038
      %1144 = vst.msk [vmem:[#allocation2 + $0x10] sm:$0xf] %vm1139, %v1040
      %1145 = vst.msk [vmem:[#allocation2 + $0x14] sm:$0xf] %vm1139, %v1042
      %1146 = vst.msk [vmem:[#allocation2 + $0x18] sm:$0xf] %vm1139, %v1044
      %1147 = vst.msk [vmem:[#allocation2 + $0x1c] sm:$0xf] %vm1139, %v1046
      %1148 = vst.msk [vmem:[#allocation2 + $0x20] sm:$0xf] %vm1139, %v1048
      %1149 = vst.msk [vmem:[#allocation2 + $0x24] sm:$0xf] %vm1139, %v1050
      %1150 = vst.msk [vmem:[#allocation2 + $0x28] sm:$0xf] %vm1139, %v1052
      %1151 = vst.msk [vmem:[#allocation2 + $0x2c] sm:$0xf] %vm1139, %v1054
      %1152 = vst.msk [vmem:[#allocation2 + $0x30] sm:$0xf] %vm1139, %v1056
      %1153 = vst.msk [vmem:[#allocation2 + $0x34] sm:$0xf] %vm1139, %v1058
      %1154 = vst.msk [vmem:[#allocation2 + $0x38] sm:$0xf] %vm1139, %v1060
      %1155 = vst.msk [vmem:[#allocation2 + $0x3c] sm:$0xf] %vm1139, %v1062
      %1156 = vst.msk [vmem:[#allocation2 + $0x40] sm:$0xf] %vm1139, %v1064
      %1157 = vst.msk [vmem:[#allocation2 + $0x44] sm:$0xf] %vm1139, %v1066
      %1158 = vst.msk [vmem:[#allocation2 + $0x48] sm:$0xf] %vm1139, %v1068
      %1159 = vst.msk [vmem:[#allocation2 + $0x4c] sm:$0xf] %vm1139, %v1070
      %1160 = vst.msk [vmem:[#allocation2 + $0x50] sm:$0xf] %vm1139, %v1072
      %1161 = vst.msk [vmem:[#allocation2 + $0x54] sm:$0xf] %vm1139, %v1074
      %1162 = vst.msk [vmem:[#allocation2 + $0x58] sm:$0xf] %vm1139, %v1076
      %1163 = vst.msk [vmem:[#allocation2 + $0x5c] sm:$0xf] %vm1139, %v1078
      %1164 = vst.msk [vmem:[#allocation2 + $0x60] sm:$0xf] %vm1139, %v1080
      %1165 = vst.msk [vmem:[#allocation2 + $0x64] sm:$0xf] %vm1139, %v1082
      %1166 = vst.msk [vmem:[#allocation2 + $0x68] sm:$0xf] %vm1139, %v1084
      %1167 = vst.msk [vmem:[#allocation2 + $0x6c] sm:$0xf] %vm1139, %v1086
      %1168 = vst.msk [vmem:[#allocation2 + $0x70] sm:$0xf] %vm1139, %v1088
      %1169 = vst.msk [vmem:[#allocation2 + $0x74] sm:$0xf] %vm1139, %v1090
      %1170 = vst.msk [vmem:[#allocation2 + $0x78] sm:$0xf] %vm1139, %v1092
      %1171 = vst.msk [vmem:[#allocation2 + $0x7c] sm:$0xf] %vm1139, %v1094
      %1172 = vst.msk [vmem:[#allocation2 + $0x80] sm:$0xf] %vm1139, %v1096
      %1173 = vst.msk [vmem:[#allocation2 + $0x84] sm:$0xf] %vm1139, %v1098
      %1174 = vst.msk [vmem:[#allocation2 + $0x88] sm:$0xf] %vm1139, %v1100
      %1175 = vst.msk [vmem:[#allocation2 + $0x8c] sm:$0xf] %vm1139, %v1102
      %v1176 = vld [vmem:[%s206 + $0x8] sm:$0xe]
      %v1177 = vld [vmem:[%s206 + $0xc] sm:$0xf]
      %v1178 = vld [vmem:[%s206 + $0x10] sm:$0xf]
      %v1179 = vld [vmem:[%s206 + $0x14] sm:$0xf]
      %v1180 = vld [vmem:[%s206 + $0x18] sm:$0xf]
      %v1181 = vld [vmem:[%s206 + $0x1c] sm:$0xf]
      %v1182 = vld [vmem:[%s206 + $0x20] sm:$0xf]
      %v1183 = vld [vmem:[%s206 + $0x24] sm:$0xf]
      %v1184 = vld [vmem:[%s206 + $0x28] sm:$0xf]
      %v1185 = vld [vmem:[%s206 + $0x2c] sm:$0xf]
      %v1186 = vld [vmem:[%s206 + $0x30] sm:$0xf]
      %v1187 = vld [vmem:[%s206 + $0x34] sm:$0xf]
      %v1188 = vld [vmem:[%s206 + $0x38] sm:$0xf]
      %v1189 = vld [vmem:[%s206 + $0x3c] sm:$0xf]
      %v1190 = vld [vmem:[%s206 + $0x40] sm:$0xf]
      %v1191 = vld [vmem:[%s206 + $0x44] sm:$0xf]
      %v1192 = vld [vmem:[%s206 + $0x48] sm:$0xf]
      %v1193 = vld [vmem:[%s206 + $0x4c] sm:$0xf]
      %v1194 = vld [vmem:[%s206 + $0x50] sm:$0xf]
      %v1195 = vld [vmem:[%s206 + $0x54] sm:$0xf]
      %v1196 = vld [vmem:[%s206 + $0x58] sm:$0xf]
      %v1197 = vld [vmem:[%s206 + $0x5c] sm:$0xf]
      %v1198 = vld [vmem:[%s206 + $0x60] sm:$0xf]
      %v1199 = vld [vmem:[%s206 + $0x64] sm:$0xf]
      %v1200 = vld [vmem:[%s206 + $0x68] sm:$0xf]
      %v1201 = vld [vmem:[%s206 + $0x6c] sm:$0xf]
      %v1202 = vld [vmem:[%s206 + $0x70] sm:$0xf]
      %v1203 = vld [vmem:[%s206 + $0x74] sm:$0xf]
      %v1204 = vld [vmem:[%s206 + $0x78] sm:$0xf]
      %v1205 = vld [vmem:[%s206 + $0x7c] sm:$0xf]
      %v1206 = vld [vmem:[%s206 + $0x80] sm:$0xf]
      %v1207 = vld [vmem:[%s206 + $0x84] sm:$0xf]
      %v1208 = vld [vmem:[%s206 + $0x88] sm:$0xf]
      %v1209 = vld [vmem:[%s206 + $0x8c] sm:$0xf]
      %v1210 = vld [vmem:[%s206 + $0x90] sm:$0xf]
      %v1211 = vld [vmem:[%s206 + $0x94] sm:$0xf]
      %v1212 = vld [vmem:[%s206 + $0x98] sm:$0x1]
      %v1250 = vrot.slane %v1176, 5
      %v1251 = vrot.slane %v1250, 4
      %v1252 = vrot.slane %v1177, 5
      %v1253 = vsel %vm921, %v1251, %v1252
      %v1254 = vrot.slane %v1252, 4
      %v1255 = vrot.slane %v1178, 5
      %v1256 = vsel %vm921, %v1254, %v1255
      %v1257 = vrot.slane %v1255, 4
      %v1258 = vrot.slane %v1179, 5
      %v1259 = vsel %vm921, %v1257, %v1258
      %v1260 = vrot.slane %v1258, 4
      %v1261 = vrot.slane %v1180, 5
      %v1262 = vsel %vm921, %v1260, %v1261
      %v1263 = vrot.slane %v1261, 4
      %v1264 = vrot.slane %v1181, 5
      %v1265 = vsel %vm921, %v1263, %v1264
      %v1266 = vrot.slane %v1264, 4
      %v1267 = vrot.slane %v1182, 5
      %v1268 = vsel %vm921, %v1266, %v1267
      %v1269 = vrot.slane %v1267, 4
      %v1270 = vrot.slane %v1183, 5
      %v1271 = vsel %vm921, %v1269, %v1270
      %v1272 = vrot.slane %v1270, 4
      %v1273 = vrot.slane %v1184, 5
      %v1274 = vsel %vm921, %v1272, %v1273
      %v1275 = vrot.slane %v1273, 4
      %v1276 = vrot.slane %v1185, 5
      %v1277 = vsel %vm921, %v1275, %v1276
      %v1278 = vrot.slane %v1276, 4
      %v1279 = vrot.slane %v1186, 5
      %v1280 = vsel %vm921, %v1278, %v1279
      %v1281 = vrot.slane %v1279, 4
      %v1282 = vrot.slane %v1187, 5
      %v1283 = vsel %vm921, %v1281, %v1282
      %v1284 = vrot.slane %v1282, 4
      %v1285 = vrot.slane %v1188, 5
      %v1286 = vsel %vm921, %v1284, %v1285
      %v1287 = vrot.slane %v1285, 4
      %v1288 = vrot.slane %v1189, 5
      %v1289 = vsel %vm921, %v1287, %v1288
      %v1290 = vrot.slane %v1288, 4
      %v1291 = vrot.slane %v1190, 5
      %v1292 = vsel %vm921, %v1290, %v1291
      %v1293 = vrot.slane %v1291, 4
      %v1294 = vrot.slane %v1191, 5
      %v1295 = vsel %vm921, %v1293, %v1294
      %v1296 = vrot.slane %v1294, 4
      %v1297 = vrot.slane %v1192, 5
      %v1298 = vsel %vm921, %v1296, %v1297
      %v1299 = vrot.slane %v1297, 4
      %v1300 = vrot.slane %v1193, 5
      %v1301 = vsel %vm921, %v1299, %v1300
      %v1302 = vrot.slane %v1300, 4
      %v1303 = vrot.slane %v1194, 5
      %v1304 = vsel %vm921, %v1302, %v1303
      %v1305 = vrot.slane %v1303, 4
      %v1306 = vrot.slane %v1195, 5
      %v1307 = vsel %vm921, %v1305, %v1306
      %v1308 = vrot.slane %v1306, 4
      %v1309 = vrot.slane %v1196, 5
      %v1310 = vsel %vm921, %v1308, %v1309
      %v1311 = vrot.slane %v1309, 4
      %v1312 = vrot.slane %v1197, 5
      %v1313 = vsel %vm921, %v1311, %v1312
      %v1314 = vrot.slane %v1312, 4
      %v1315 = vrot.slane %v1198, 5
      %v1316 = vsel %vm921, %v1314, %v1315
      %v1317 = vrot.slane %v1315, 4
      %v1318 = vrot.slane %v1199, 5
      %v1319 = vsel %vm921, %v1317, %v1318
      %v1320 = vrot.slane %v1318, 4
      %v1321 = vrot.slane %v1200, 5
      %v1322 = vsel %vm921, %v1320, %v1321
      %v1323 = vrot.slane %v1321, 4
      %v1324 = vrot.slane %v1201, 5
      %v1325 = vsel %vm921, %v1323, %v1324
      %v1326 = vrot.slane %v1324, 4
      %v1327 = vrot.slane %v1202, 5
      %v1328 = vsel %vm921, %v1326, %v1327
      %v1329 = vrot.slane %v1327, 4
      %v1330 = vrot.slane %v1203, 5
      %v1331 = vsel %vm921, %v1329, %v1330
      %v1332 = vrot.slane %v1330, 4
      %v1333 = vrot.slane %v1204, 5
      %v1334 = vsel %vm921, %v1332, %v1333
      %v1335 = vrot.slane %v1333, 4
      %v1336 = vrot.slane %v1205, 5
      %v1337 = vsel %vm921, %v1335, %v1336
      %v1338 = vrot.slane %v1336, 4
      %v1339 = vrot.slane %v1206, 5
      %v1340 = vsel %vm921, %v1338, %v1339
      %v1341 = vrot.slane %v1339, 4
      %v1342 = vrot.slane %v1207, 5
      %v1343 = vsel %vm921, %v1341, %v1342
      %v1344 = vrot.slane %v1342, 4
      %v1345 = vrot.slane %v1208, 5
      %v1346 = vsel %vm921, %v1344, %v1345
      %v1347 = vrot.slane %v1345, 4
      %v1348 = vrot.slane %v1209, 5
      %v1349 = vsel %vm921, %v1347, %v1348
      %v1350 = vrot.slane %v1348, 4
      %v1351 = vrot.slane %v1210, 5
      %v1352 = vsel %vm921, %v1350, %v1351
      %v1353 = vrot.slane %v1351, 4
      %v1354 = vrot.slane %v1211, 5
      %v1355 = vsel %vm921, %v1353, %v1354
      %v1356 = vrot.slane %v1354, 4
      %v1357 = vrot.slane %v1212, 5
      %v1358 = vsel %vm921, %v1356, %v1357
      %1359 = vrot.lane.b32.xlu0 %v1253, 12
      %v1360 = vpop.permute.xlu0 %1359
      %1361 = vrot.lane.b32.xlu0 %v1256, 12
      %v1362 = vpop.permute.xlu0 %1361
      %1363 = vrot.lane.b32.xlu0 %v1259, 12
      %v1364 = vpop.permute.xlu0 %1363
      %1365 = vrot.lane.b32.xlu0 %v1262, 12
      %v1366 = vpop.permute.xlu0 %1365
      %1367 = vrot.lane.b32.xlu0 %v1265, 12
      %v1368 = vpop.permute.xlu0 %1367
      %1369 = vrot.lane.b32.xlu0 %v1268, 12
      %v1370 = vpop.permute.xlu0 %1369
      %1371 = vrot.lane.b32.xlu0 %v1271, 12
      %v1372 = vpop.permute.xlu0 %1371
      %1373 = vrot.lane.b32.xlu0 %v1274, 12
      %v1374 = vpop.permute.xlu0 %1373
      %1375 = vrot.lane.b32.xlu0 %v1277, 12
      %v1376 = vpop.permute.xlu0 %1375
      %1377 = vrot.lane.b32.xlu0 %v1280, 12
      %v1378 = vpop.permute.xlu0 %1377
      %1379 = vrot.lane.b32.xlu0 %v1283, 12
      %v1380 = vpop.permute.xlu0 %1379
      %1381 = vrot.lane.b32.xlu0 %v1286, 12
      %v1382 = vpop.permute.xlu0 %1381
      %1383 = vrot.lane.b32.xlu0 %v1289, 12
      %v1384 = vpop.permute.xlu0 %1383
      %1385 = vrot.lane.b32.xlu0 %v1292, 12
      %v1386 = vpop.permute.xlu0 %1385
      %1387 = vrot.lane.b32.xlu0 %v1295, 12
      %v1388 = vpop.permute.xlu0 %1387
      %1389 = vrot.lane.b32.xlu0 %v1298, 12
      %v1390 = vpop.permute.xlu0 %1389
      %1391 = vrot.lane.b32.xlu0 %v1301, 12
      %v1392 = vpop.permute.xlu0 %1391
      %1393 = vrot.lane.b32.xlu0 %v1304, 12
      %v1394 = vpop.permute.xlu0 %1393
      %1395 = vrot.lane.b32.xlu0 %v1307, 12
      %v1396 = vpop.permute.xlu0 %1395
      %1397 = vrot.lane.b32.xlu0 %v1310, 12
      %v1398 = vpop.permute.xlu0 %1397
      %1399 = vrot.lane.b32.xlu0 %v1313, 12
      %v1400 = vpop.permute.xlu0 %1399
      %1401 = vrot.lane.b32.xlu0 %v1316, 12
      %v1402 = vpop.permute.xlu0 %1401
      %1403 = vrot.lane.b32.xlu0 %v1319, 12
      %v1404 = vpop.permute.xlu0 %1403
      %1405 = vrot.lane.b32.xlu0 %v1322, 12
      %v1406 = vpop.permute.xlu0 %1405
      %1407 = vrot.lane.b32.xlu0 %v1325, 12
      %v1408 = vpop.permute.xlu0 %1407
      %1409 = vrot.lane.b32.xlu0 %v1328, 12
      %v1410 = vpop.permute.xlu0 %1409
      %1411 = vrot.lane.b32.xlu0 %v1331, 12
      %v1412 = vpop.permute.xlu0 %1411
      %1413 = vrot.lane.b32.xlu0 %v1334, 12
      %v1414 = vpop.permute.xlu0 %1413
      %1415 = vrot.lane.b32.xlu0 %v1337, 12
      %v1416 = vpop.permute.xlu0 %1415
      %1417 = vrot.lane.b32.xlu0 %v1340, 12
      %v1418 = vpop.permute.xlu0 %1417
      %1419 = vrot.lane.b32.xlu0 %v1343, 12
      %v1420 = vpop.permute.xlu0 %1419
      %1421 = vrot.lane.b32.xlu0 %v1346, 12
      %v1422 = vpop.permute.xlu0 %1421
      %1423 = vrot.lane.b32.xlu0 %v1349, 12
      %v1424 = vpop.permute.xlu0 %1423
      %1425 = vrot.lane.b32.xlu0 %v1352, 12
      %v1426 = vpop.permute.xlu0 %1425
      %1427 = vrot.lane.b32.xlu0 %v1355, 12
      %v1428 = vpop.permute.xlu0 %1427
      %1429 = vrot.lane.b32.xlu0 %v1358, 12
      %v1430 = vpop.permute.xlu0 %1429
      %vm1467 = vcmask 126048
      %1468 = vst.msk [vmem:[#allocation2] sm:$0xf] %vm1467, %v1360
      %1469 = vst.msk [vmem:[#allocation2 + $0x4] sm:$0xf] %vm1467, %v1362
      %1470 = vst.msk [vmem:[#allocation2 + $0x8] sm:$0xf] %vm1467, %v1364
      %1471 = vst.msk [vmem:[#allocation2 + $0xc] sm:$0xf] %vm1467, %v1366
      %1472 = vst.msk [vmem:[#allocation2 + $0x10] sm:$0xf] %vm1467, %v1368
      %1473 = vst.msk [vmem:[#allocation2 + $0x14] sm:$0xf] %vm1467, %v1370
      %1474 = vst.msk [vmem:[#allocation2 + $0x18] sm:$0xf] %vm1467, %v1372
      %1475 = vst.msk [vmem:[#allocation2 + $0x1c] sm:$0xf] %vm1467, %v1374
      %1476 = vst.msk [vmem:[#allocation2 + $0x20] sm:$0xf] %vm1467, %v1376
      %1477 = vst.msk [vmem:[#allocation2 + $0x24] sm:$0xf] %vm1467, %v1378
      %1478 = vst.msk [vmem:[#allocation2 + $0x28] sm:$0xf] %vm1467, %v1380
      %1479 = vst.msk [vmem:[#allocation2 + $0x2c] sm:$0xf] %vm1467, %v1382
      %1480 = vst.msk [vmem:[#allocation2 + $0x30] sm:$0xf] %vm1467, %v1384
      %1481 = vst.msk [vmem:[#allocation2 + $0x34] sm:$0xf] %vm1467, %v1386
      %1482 = vst.msk [vmem:[#allocation2 + $0x38] sm:$0xf] %vm1467, %v1388
      %1483 = vst.msk [vmem:[#allocation2 + $0x3c] sm:$0xf] %vm1467, %v1390
      %1484 = vst.msk [vmem:[#allocation2 + $0x40] sm:$0xf] %vm1467, %v1392
      %1485 = vst.msk [vmem:[#allocation2 + $0x44] sm:$0xf] %vm1467, %v1394
      %1486 = vst.msk [vmem:[#allocation2 + $0x48] sm:$0xf] %vm1467, %v1396
      %1487 = vst.msk [vmem:[#allocation2 + $0x4c] sm:$0xf] %vm1467, %v1398
      %1488 = vst.msk [vmem:[#allocation2 + $0x50] sm:$0xf] %vm1467, %v1400
      %1489 = vst.msk [vmem:[#allocation2 + $0x54] sm:$0xf] %vm1467, %v1402
      %1490 = vst.msk [vmem:[#allocation2 + $0x58] sm:$0xf] %vm1467, %v1404
      %1491 = vst.msk [vmem:[#allocation2 + $0x5c] sm:$0xf] %vm1467, %v1406
      %1492 = vst.msk [vmem:[#allocation2 + $0x60] sm:$0xf] %vm1467, %v1408
      %1493 = vst.msk [vmem:[#allocation2 + $0x64] sm:$0xf] %vm1467, %v1410
      %1494 = vst.msk [vmem:[#allocation2 + $0x68] sm:$0xf] %vm1467, %v1412
      %1495 = vst.msk [vmem:[#allocation2 + $0x6c] sm:$0xf] %vm1467, %v1414
      %1496 = vst.msk [vmem:[#allocation2 + $0x70] sm:$0xf] %vm1467, %v1416
      %1497 = vst.msk [vmem:[#allocation2 + $0x74] sm:$0xf] %vm1467, %v1418
      %1498 = vst.msk [vmem:[#allocation2 + $0x78] sm:$0xf] %vm1467, %v1420
      %1499 = vst.msk [vmem:[#allocation2 + $0x7c] sm:$0xf] %vm1467, %v1422
      %1500 = vst.msk [vmem:[#allocation2 + $0x80] sm:$0xf] %vm1467, %v1424
      %1501 = vst.msk [vmem:[#allocation2 + $0x84] sm:$0xf] %vm1467, %v1426
      %1502 = vst.msk [vmem:[#allocation2 + $0x88] sm:$0xf] %vm1467, %v1428
      %1503 = vst.msk [vmem:[#allocation2 + $0x8c] sm:$0xf] %vm1467, %v1430
      %v1504 = vld [vmem:[%s206 + $0x8] sm:$0xe]
      %v1505 = vld [vmem:[%s206 + $0xc] sm:$0xf]
      %v1506 = vld [vmem:[%s206 + $0x10] sm:$0xf]
      %v1507 = vld [vmem:[%s206 + $0x14] sm:$0xf]
      %v1508 = vld [vmem:[%s206 + $0x18] sm:$0xf]
      %v1509 = vld [vmem:[%s206 + $0x1c] sm:$0xf]
      %v1510 = vld [vmem:[%s206 + $0x20] sm:$0xf]
      %v1511 = vld [vmem:[%s206 + $0x24] sm:$0xf]
      %v1512 = vld [vmem:[%s206 + $0x28] sm:$0xf]
      %v1513 = vld [vmem:[%s206 + $0x2c] sm:$0xf]
      %v1514 = vld [vmem:[%s206 + $0x30] sm:$0xf]
      %v1515 = vld [vmem:[%s206 + $0x34] sm:$0xf]
      %v1516 = vld [vmem:[%s206 + $0x38] sm:$0xf]
      %v1517 = vld [vmem:[%s206 + $0x3c] sm:$0xf]
      %v1518 = vld [vmem:[%s206 + $0x40] sm:$0xf]
      %v1519 = vld [vmem:[%s206 + $0x44] sm:$0xf]
      %v1520 = vld [vmem:[%s206 + $0x48] sm:$0xf]
      %v1521 = vld [vmem:[%s206 + $0x4c] sm:$0xf]
      %v1522 = vld [vmem:[%s206 + $0x50] sm:$0xf]
      %v1523 = vld [vmem:[%s206 + $0x54] sm:$0xf]
      %v1524 = vld [vmem:[%s206 + $0x58] sm:$0xf]
      %v1525 = vld [vmem:[%s206 + $0x5c] sm:$0xf]
      %v1526 = vld [vmem:[%s206 + $0x60] sm:$0xf]
      %v1527 = vld [vmem:[%s206 + $0x64] sm:$0xf]
      %v1528 = vld [vmem:[%s206 + $0x68] sm:$0xf]
      %v1529 = vld [vmem:[%s206 + $0x6c] sm:$0xf]
      %v1530 = vld [vmem:[%s206 + $0x70] sm:$0xf]
      %v1531 = vld [vmem:[%s206 + $0x74] sm:$0xf]
      %v1532 = vld [vmem:[%s206 + $0x78] sm:$0xf]
      %v1533 = vld [vmem:[%s206 + $0x7c] sm:$0xf]
      %v1534 = vld [vmem:[%s206 + $0x80] sm:$0xf]
      %v1535 = vld [vmem:[%s206 + $0x84] sm:$0xf]
      %v1536 = vld [vmem:[%s206 + $0x88] sm:$0xf]
      %v1537 = vld [vmem:[%s206 + $0x8c] sm:$0xf]
      %v1538 = vld [vmem:[%s206 + $0x90] sm:$0xf]
      %v1539 = vld [vmem:[%s206 + $0x94] sm:$0xf]
      %v1540 = vld [vmem:[%s206 + $0x98] sm:$0x3]
      %vm1541 = vsmask.f32 2304
      %vm1542 = vsmask.f32 6416
      %vm1543 = vmor %vm1541, %vm1542
      %v1545 = vshrl.u32 %v1504, 16
      %v1547 = vrot.slane %v1545, 5
      %v1548 = vshll.u32 %v1504, 16
      %v1550 = vrot.slane %v1548, 6
      %v1551 = vor.u32 %v1547, %v1550
      %v1552 = vrot.slane %v1551, 4
      %v1554 = vshrl.u32 %v1505, 16
      %v1556 = vrot.slane %v1554, 5
      %v1557 = vshll.u32 %v1505, 16
      %v1559 = vrot.slane %v1557, 6
      %v1560 = vor.u32 %v1556, %v1559
      %v1561 = vsel %vm1543, %v1552, %v1560
      %v1562 = vrot.slane %v1560, 4
      %v1564 = vshrl.u32 %v1506, 16
      %v1566 = vrot.slane %v1564, 5
      %v1567 = vshll.u32 %v1506, 16
      %v1569 = vrot.slane %v1567, 6
      %v1570 = vor.u32 %v1566, %v1569
      %v1571 = vsel %vm1543, %v1562, %v1570
      %v1572 = vrot.slane %v1570, 4
      %v1574 = vshrl.u32 %v1507, 16
      %v1576 = vrot.slane %v1574, 5
      %v1577 = vshll.u32 %v1507, 16
      %v1579 = vrot.slane %v1577, 6
      %v1580 = vor.u32 %v1576, %v1579
      %v1581 = vsel %vm1543, %v1572, %v1580
      %v1582 = vrot.slane %v1580, 4
      %v1584 = vshrl.u32 %v1508, 16
      %v1586 = vrot.slane %v1584, 5
      %v1587 = vshll.u32 %v1508, 16
      %v1589 = vrot.slane %v1587, 6
      %v1590 = vor.u32 %v1586, %v1589
      %v1591 = vsel %vm1543, %v1582, %v1590
      %v1592 = vrot.slane %v1590, 4
      %v1594 = vshrl.u32 %v1509, 16
      %v1596 = vrot.slane %v1594, 5
      %v1597 = vshll.u32 %v1509, 16
      %v1599 = vrot.slane %v1597, 6
      %v1600 = vor.u32 %v1596, %v1599
      %v1601 = vsel %vm1543, %v1592, %v1600
      %v1602 = vrot.slane %v1600, 4
      %v1604 = vshrl.u32 %v1510, 16
      %v1606 = vrot.slane %v1604, 5
      %v1607 = vshll.u32 %v1510, 16
      %v1609 = vrot.slane %v1607, 6
      %v1610 = vor.u32 %v1606, %v1609
      %v1611 = vsel %vm1543, %v1602, %v1610
      %v1612 = vrot.slane %v1610, 4
      %v1614 = vshrl.u32 %v1511, 16
      %v1616 = vrot.slane %v1614, 5
      %v1617 = vshll.u32 %v1511, 16
      %v1619 = vrot.slane %v1617, 6
      %v1620 = vor.u32 %v1616, %v1619
      %v1621 = vsel %vm1543, %v1612, %v1620
      %v1622 = vrot.slane %v1620, 4
      %v1624 = vshrl.u32 %v1512, 16
      %v1626 = vrot.slane %v1624, 5
      %v1627 = vshll.u32 %v1512, 16
      %v1629 = vrot.slane %v1627, 6
      %v1630 = vor.u32 %v1626, %v1629
      %v1631 = vsel %vm1543, %v1622, %v1630
      %v1632 = vrot.slane %v1630, 4
      %v1634 = vshrl.u32 %v1513, 16
      %v1636 = vrot.slane %v1634, 5
      %v1637 = vshll.u32 %v1513, 16
      %v1639 = vrot.slane %v1637, 6
      %v1640 = vor.u32 %v1636, %v1639
      %v1641 = vsel %vm1543, %v1632, %v1640
      %v1642 = vrot.slane %v1640, 4
      %v1644 = vshrl.u32 %v1514, 16
      %v1646 = vrot.slane %v1644, 5
      %v1647 = vshll.u32 %v1514, 16
      %v1649 = vrot.slane %v1647, 6
      %v1650 = vor.u32 %v1646, %v1649
      %v1651 = vsel %vm1543, %v1642, %v1650
      %v1652 = vrot.slane %v1650, 4
      %v1654 = vshrl.u32 %v1515, 16
      %v1656 = vrot.slane %v1654, 5
      %v1657 = vshll.u32 %v1515, 16
      %v1659 = vrot.slane %v1657, 6
      %v1660 = vor.u32 %v1656, %v1659
      %v1661 = vsel %vm1543, %v1652, %v1660
      %v1662 = vrot.slane %v1660, 4
      %v1664 = vshrl.u32 %v1516, 16
      %v1666 = vrot.slane %v1664, 5
      %v1667 = vshll.u32 %v1516, 16
      %v1669 = vrot.slane %v1667, 6
      %v1670 = vor.u32 %v1666, %v1669
      %v1671 = vsel %vm1543, %v1662, %v1670
      %v1672 = vrot.slane %v1670, 4
      %v1674 = vshrl.u32 %v1517, 16
      %v1676 = vrot.slane %v1674, 5
      %v1677 = vshll.u32 %v1517, 16
      %v1679 = vrot.slane %v1677, 6
      %v1680 = vor.u32 %v1676, %v1679
      %v1681 = vsel %vm1543, %v1672, %v1680
      %v1682 = vrot.slane %v1680, 4
      %v1684 = vshrl.u32 %v1518, 16
      %v1686 = vrot.slane %v1684, 5
      %v1687 = vshll.u32 %v1518, 16
      %v1689 = vrot.slane %v1687, 6
      %v1690 = vor.u32 %v1686, %v1689
      %v1691 = vsel %vm1543, %v1682, %v1690
      %v1692 = vrot.slane %v1690, 4
      %v1694 = vshrl.u32 %v1519, 16
      %v1696 = vrot.slane %v1694, 5
      %v1697 = vshll.u32 %v1519, 16
      %v1699 = vrot.slane %v1697, 6
      %v1700 = vor.u32 %v1696, %v1699
      %v1701 = vsel %vm1543, %v1692, %v1700
      %v1702 = vrot.slane %v1700, 4
      %v1704 = vshrl.u32 %v1520, 16
      %v1706 = vrot.slane %v1704, 5
      %v1707 = vshll.u32 %v1520, 16
      %v1709 = vrot.slane %v1707, 6
      %v1710 = vor.u32 %v1706, %v1709
      %v1711 = vsel %vm1543, %v1702, %v1710
      %v1712 = vrot.slane %v1710, 4
      %v1714 = vshrl.u32 %v1521, 16
      %v1716 = vrot.slane %v1714, 5
      %v1717 = vshll.u32 %v1521, 16
      %v1719 = vrot.slane %v1717, 6
      %v1720 = vor.u32 %v1716, %v1719
      %v1721 = vsel %vm1543, %v1712, %v1720
      %v1722 = vrot.slane %v1720, 4
      %v1724 = vshrl.u32 %v1522, 16
      %v1726 = vrot.slane %v1724, 5
      %v1727 = vshll.u32 %v1522, 16
      %v1729 = vrot.slane %v1727, 6
      %v1730 = vor.u32 %v1726, %v1729
      %v1731 = vsel %vm1543, %v1722, %v1730
      %v1732 = vrot.slane %v1730, 4
      %v1734 = vshrl.u32 %v1523, 16
      %v1736 = vrot.slane %v1734, 5
      %v1737 = vshll.u32 %v1523, 16
      %v1739 = vrot.slane %v1737, 6
      %v1740 = vor.u32 %v1736, %v1739
      %v1741 = vsel %vm1543, %v1732, %v1740
      %v1742 = vrot.slane %v1740, 4
      %v1744 = vshrl.u32 %v1524, 16
      %v1746 = vrot.slane %v1744, 5
      %v1747 = vshll.u32 %v1524, 16
      %v1749 = vrot.slane %v1747, 6
      %v1750 = vor.u32 %v1746, %v1749
      %v1751 = vsel %vm1543, %v1742, %v1750
      %v1752 = vrot.slane %v1750, 4
      %v1754 = vshrl.u32 %v1525, 16
      %v1756 = vrot.slane %v1754, 5
      %v1757 = vshll.u32 %v1525, 16
      %v1759 = vrot.slane %v1757, 6
      %v1760 = vor.u32 %v1756, %v1759
      %v1761 = vsel %vm1543, %v1752, %v1760
      %v1762 = vrot.slane %v1760, 4
      %v1764 = vshrl.u32 %v1526, 16
      %v1766 = vrot.slane %v1764, 5
      %v1767 = vshll.u32 %v1526, 16
      %v1769 = vrot.slane %v1767, 6
      %v1770 = vor.u32 %v1766, %v1769
      %v1771 = vsel %vm1543, %v1762, %v1770
      %v1772 = vrot.slane %v1770, 4
      %v1774 = vshrl.u32 %v1527, 16
      %v1776 = vrot.slane %v1774, 5
      %v1777 = vshll.u32 %v1527, 16
      %v1779 = vrot.slane %v1777, 6
      %v1780 = vor.u32 %v1776, %v1779
      %v1781 = vsel %vm1543, %v1772, %v1780
      %v1782 = vrot.slane %v1780, 4
      %v1784 = vshrl.u32 %v1528, 16
      %v1786 = vrot.slane %v1784, 5
      %v1787 = vshll.u32 %v1528, 16
      %v1789 = vrot.slane %v1787, 6
      %v1790 = vor.u32 %v1786, %v1789
      %v1791 = vsel %vm1543, %v1782, %v1790
      %v1792 = vrot.slane %v1790, 4
      %v1794 = vshrl.u32 %v1529, 16
      %v1796 = vrot.slane %v1794, 5
      %v1797 = vshll.u32 %v1529, 16
      %v1799 = vrot.slane %v1797, 6
      %v1800 = vor.u32 %v1796, %v1799
      %v1801 = vsel %vm1543, %v1792, %v1800
      %v1802 = vrot.slane %v1800, 4
      %v1804 = vshrl.u32 %v1530, 16
      %v1806 = vrot.slane %v1804, 5
      %v1807 = vshll.u32 %v1530, 16
      %v1809 = vrot.slane %v1807, 6
      %v1810 = vor.u32 %v1806, %v1809
      %v1811 = vsel %vm1543, %v1802, %v1810
      %v1812 = vrot.slane %v1810, 4
      %v1814 = vshrl.u32 %v1531, 16
      %v1816 = vrot.slane %v1814, 5
      %v1817 = vshll.u32 %v1531, 16
      %v1819 = vrot.slane %v1817, 6
      %v1820 = vor.u32 %v1816, %v1819
      %v1821 = vsel %vm1543, %v1812, %v1820
      %v1822 = vrot.slane %v1820, 4
      %v1824 = vshrl.u32 %v1532, 16
      %v1826 = vrot.slane %v1824, 5
      %v1827 = vshll.u32 %v1532, 16
      %v1829 = vrot.slane %v1827, 6
      %v1830 = vor.u32 %v1826, %v1829
      %v1831 = vsel %vm1543, %v1822, %v1830
      %v1832 = vrot.slane %v1830, 4
      %v1834 = vshrl.u32 %v1533, 16
      %v1836 = vrot.slane %v1834, 5
      %v1837 = vshll.u32 %v1533, 16
      %v1839 = vrot.slane %v1837, 6
      %v1840 = vor.u32 %v1836, %v1839
      %v1841 = vsel %vm1543, %v1832, %v1840
      %v1842 = vrot.slane %v1840, 4
      %v1844 = vshrl.u32 %v1534, 16
      %v1846 = vrot.slane %v1844, 5
      %v1847 = vshll.u32 %v1534, 16
      %v1849 = vrot.slane %v1847, 6
      %v1850 = vor.u32 %v1846, %v1849
      %v1851 = vsel %vm1543, %v1842, %v1850
      %v1852 = vrot.slane %v1850, 4
      %v1854 = vshrl.u32 %v1535, 16
      %v1856 = vrot.slane %v1854, 5
      %v1857 = vshll.u32 %v1535, 16
      %v1859 = vrot.slane %v1857, 6
      %v1860 = vor.u32 %v1856, %v1859
      %v1861 = vsel %vm1543, %v1852, %v1860
      %v1862 = vrot.slane %v1860, 4
      %v1864 = vshrl.u32 %v1536, 16
      %v1866 = vrot.slane %v1864, 5
      %v1867 = vshll.u32 %v1536, 16
      %v1869 = vrot.slane %v1867, 6
      %v1870 = vor.u32 %v1866, %v1869
      %v1871 = vsel %vm1543, %v1862, %v1870
      %v1872 = vrot.slane %v1870, 4
      %v1874 = vshrl.u32 %v1537, 16
      %v1876 = vrot.slane %v1874, 5
      %v1877 = vshll.u32 %v1537, 16
      %v1879 = vrot.slane %v1877, 6
      %v1880 = vor.u32 %v1876, %v1879
      %v1881 = vsel %vm1543, %v1872, %v1880
      %v1882 = vrot.slane %v1880, 4
      %v1884 = vshrl.u32 %v1538, 16
      %v1886 = vrot.slane %v1884, 5
      %v1887 = vshll.u32 %v1538, 16
      %v1889 = vrot.slane %v1887, 6
      %v1890 = vor.u32 %v1886, %v1889
      %v1891 = vsel %vm1543, %v1882, %v1890
      %v1892 = vrot.slane %v1890, 4
      %v1894 = vshrl.u32 %v1539, 16
      %v1896 = vrot.slane %v1894, 5
      %v1897 = vshll.u32 %v1539, 16
      %v1899 = vrot.slane %v1897, 6
      %v1900 = vor.u32 %v1896, %v1899
      %v1901 = vsel %vm1543, %v1892, %v1900
      %v1902 = vrot.slane %v1900, 4
      %v1904 = vshrl.u32 %v1540, 16
      %v1906 = vrot.slane %v1904, 5
      %v1907 = vshll.u32 %v1540, 16
      %v1909 = vrot.slane %v1907, 6
      %v1910 = vor.u32 %v1906, %v1909
      %v1911 = vsel %vm1543, %v1902, %v1910
      %1912 = vrot.lane.b32.xlu0 %v1561, 16
      %v1913 = vpop.permute.xlu0 %1912
      %1914 = vrot.lane.b32.xlu0 %v1571, 16
      %v1915 = vpop.permute.xlu0 %1914
      %1916 = vrot.lane.b32.xlu0 %v1581, 16
      %v1917 = vpop.permute.xlu0 %1916
      %1918 = vrot.lane.b32.xlu0 %v1591, 16
      %v1919 = vpop.permute.xlu0 %1918
      %1920 = vrot.lane.b32.xlu0 %v1601, 16
      %v1921 = vpop.permute.xlu0 %1920
      %1922 = vrot.lane.b32.xlu0 %v1611, 16
      %v1923 = vpop.permute.xlu0 %1922
      %1924 = vrot.lane.b32.xlu0 %v1621, 16
      %v1925 = vpop.permute.xlu0 %1924
      %1926 = vrot.lane.b32.xlu0 %v1631, 16
      %v1927 = vpop.permute.xlu0 %1926
      %1928 = vrot.lane.b32.xlu0 %v1641, 16
      %v1929 = vpop.permute.xlu0 %1928
      %1930 = vrot.lane.b32.xlu0 %v1651, 16
      %v1931 = vpop.permute.xlu0 %1930
      %1932 = vrot.lane.b32.xlu0 %v1661, 16
      %v1933 = vpop.permute.xlu0 %1932
      %1934 = vrot.lane.b32.xlu0 %v1671, 16
      %v1935 = vpop.permute.xlu0 %1934
      %1936 = vrot.lane.b32.xlu0 %v1681, 16
      %v1937 = vpop.permute.xlu0 %1936
      %1938 = vrot.lane.b32.xlu0 %v1691, 16
      %v1939 = vpop.permute.xlu0 %1938
      %1940 = vrot.lane.b32.xlu0 %v1701, 16
      %v1941 = vpop.permute.xlu0 %1940
      %1942 = vrot.lane.b32.xlu0 %v1711, 16
      %v1943 = vpop.permute.xlu0 %1942
      %1944 = vrot.lane.b32.xlu0 %v1721, 16
      %v1945 = vpop.permute.xlu0 %1944
      %1946 = vrot.lane.b32.xlu0 %v1731, 16
      %v1947 = vpop.permute.xlu0 %1946
      %1948 = vrot.lane.b32.xlu0 %v1741, 16
      %v1949 = vpop.permute.xlu0 %1948
      %1950 = vrot.lane.b32.xlu0 %v1751, 16
      %v1951 = vpop.permute.xlu0 %1950
      %1952 = vrot.lane.b32.xlu0 %v1761, 16
      %v1953 = vpop.permute.xlu0 %1952
      %1954 = vrot.lane.b32.xlu0 %v1771, 16
      %v1955 = vpop.permute.xlu0 %1954
      %1956 = vrot.lane.b32.xlu0 %v1781, 16
      %v1957 = vpop.permute.xlu0 %1956
      %1958 = vrot.lane.b32.xlu0 %v1791, 16
      %v1959 = vpop.permute.xlu0 %1958
      %1960 = vrot.lane.b32.xlu0 %v1801, 16
      %v1961 = vpop.permute.xlu0 %1960
      %1962 = vrot.lane.b32.xlu0 %v1811, 16
      %v1963 = vpop.permute.xlu0 %1962
      %1964 = vrot.lane.b32.xlu0 %v1821, 16
      %v1965 = vpop.permute.xlu0 %1964
      %1966 = vrot.lane.b32.xlu0 %v1831, 16
      %v1967 = vpop.permute.xlu0 %1966
      %1968 = vrot.lane.b32.xlu0 %v1841, 16
      %v1969 = vpop.permute.xlu0 %1968
      %1970 = vrot.lane.b32.xlu0 %v1851, 16
      %v1971 = vpop.permute.xlu0 %1970
      %1972 = vrot.lane.b32.xlu0 %v1861, 16
      %v1973 = vpop.permute.xlu0 %1972
      %1974 = vrot.lane.b32.xlu0 %v1871, 16
      %v1975 = vpop.permute.xlu0 %1974
      %1976 = vrot.lane.b32.xlu0 %v1881, 16
      %v1977 = vpop.permute.xlu0 %1976
      %1978 = vrot.lane.b32.xlu0 %v1891, 16
      %v1979 = vpop.permute.xlu0 %1978
      %1980 = vrot.lane.b32.xlu0 %v1901, 16
      %v1981 = vpop.permute.xlu0 %1980
      %1982 = vrot.lane.b32.xlu0 %v1911, 16
      %v1983 = vpop.permute.xlu0 %1982
      %vm2020 = vcmask 158848
      %2021 = vst.msk [vmem:[#allocation2] sm:$0xf] %vm2020, %v1913
      %2022 = vst.msk [vmem:[#allocation2 + $0x4] sm:$0xf] %vm2020, %v1915
      %2023 = vst.msk [vmem:[#allocation2 + $0x8] sm:$0xf] %vm2020, %v1917
      %2024 = vst.msk [vmem:[#allocation2 + $0xc] sm:$0xf] %vm2020, %v1919
      %2025 = vst.msk [vmem:[#allocation2 + $0x10] sm:$0xf] %vm2020, %v1921
      %2026 = vst.msk [vmem:[#allocation2 + $0x14] sm:$0xf] %vm2020, %v1923
      %2027 = vst.msk [vmem:[#allocation2 + $0x18] sm:$0xf] %vm2020, %v1925
      %2028 = vst.msk [vmem:[#allocation2 + $0x1c] sm:$0xf] %vm2020, %v1927
      %2029 = vst.msk [vmem:[#allocation2 + $0x20] sm:$0xf] %vm2020, %v1929
      %2030 = vst.msk [vmem:[#allocation2 + $0x24] sm:$0xf] %vm2020, %v1931
      %2031 = vst.msk [vmem:[#allocation2 + $0x28] sm:$0xf] %vm2020, %v1933
      %2032 = vst.msk [vmem:[#allocation2 + $0x2c] sm:$0xf] %vm2020, %v1935
      %2033 = vst.msk [vmem:[#allocation2 + $0x30] sm:$0xf] %vm2020, %v1937
      %2034 = vst.msk [vmem:[#allocation2 + $0x34] sm:$0xf] %vm2020, %v1939
      %2035 = vst.msk [vmem:[#allocation2 + $0x38] sm:$0xf] %vm2020, %v1941
      %2036 = vst.msk [vmem:[#allocation2 + $0x3c] sm:$0xf] %vm2020, %v1943
      %2037 = vst.msk [vmem:[#allocation2 + $0x40] sm:$0xf] %vm2020, %v1945
      %2038 = vst.msk [vmem:[#allocation2 + $0x44] sm:$0xf] %vm2020, %v1947
      %2039 = vst.msk [vmem:[#allocation2 + $0x48] sm:$0xf] %vm2020, %v1949
      %2040 = vst.msk [vmem:[#allocation2 + $0x4c] sm:$0xf] %vm2020, %v1951
      %2041 = vst.msk [vmem:[#allocation2 + $0x50] sm:$0xf] %vm2020, %v1953
      %2042 = vst.msk [vmem:[#allocation2 + $0x54] sm:$0xf] %vm2020, %v1955
      %2043 = vst.msk [vmem:[#allocation2 + $0x58] sm:$0xf] %vm2020, %v1957
      %2044 = vst.msk [vmem:[#allocation2 + $0x5c] sm:$0xf] %vm2020, %v1959
      %2045 = vst.msk [vmem:[#allocation2 + $0x60] sm:$0xf] %vm2020, %v1961
      %2046 = vst.msk [vmem:[#allocation2 + $0x64] sm:$0xf] %vm2020, %v1963
      %2047 = vst.msk [vmem:[#allocation2 + $0x68] sm:$0xf] %vm2020, %v1965
      %2048 = vst.msk [vmem:[#allocation2 + $0x6c] sm:$0xf] %vm2020, %v1967
      %2049 = vst.msk [vmem:[#allocation2 + $0x70] sm:$0xf] %vm2020, %v1969
      %2050 = vst.msk [vmem:[#allocation2 + $0x74] sm:$0xf] %vm2020, %v1971
      %2051 = vst.msk [vmem:[#allocation2 + $0x78] sm:$0xf] %vm2020, %v1973
      %2052 = vst.msk [vmem:[#allocation2 + $0x7c] sm:$0xf] %vm2020, %v1975
      %2053 = vst.msk [vmem:[#allocation2 + $0x80] sm:$0xf] %vm2020, %v1977
      %2054 = vst.msk [vmem:[#allocation2 + $0x84] sm:$0xf] %vm2020, %v1979
      %2055 = vst.msk [vmem:[#allocation2 + $0x88] sm:$0xf] %vm2020, %v1981
      %2056 = vst.msk [vmem:[#allocation2 + $0x8c] sm:$0xf] %vm2020, %v1983
      %v2057 = vld [vmem:[%s206 + $0x8] sm:$0xc]
      %v2058 = vld [vmem:[%s206 + $0xc] sm:$0xf]
      %v2059 = vld [vmem:[%s206 + $0x10] sm:$0xf]
      %v2060 = vld [vmem:[%s206 + $0x14] sm:$0xf]
      %v2061 = vld [vmem:[%s206 + $0x18] sm:$0xf]
      %v2062 = vld [vmem:[%s206 + $0x1c] sm:$0xf]
      %v2063 = vld [vmem:[%s206 + $0x20] sm:$0xf]
      %v2064 = vld [vmem:[%s206 + $0x24] sm:$0xf]
      %v2065 = vld [vmem:[%s206 + $0x28] sm:$0xf]
      %v2066 = vld [vmem:[%s206 + $0x2c] sm:$0xf]
      %v2067 = vld [vmem:[%s206 + $0x30] sm:$0xf]
      %v2068 = vld [vmem:[%s206 + $0x34] sm:$0xf]
      %v2069 = vld [vmem:[%s206 + $0x38] sm:$0xf]
      %v2070 = vld [vmem:[%s206 + $0x3c] sm:$0xf]
      %v2071 = vld [vmem:[%s206 + $0x40] sm:$0xf]
      %v2072 = vld [vmem:[%s206 + $0x44] sm:$0xf]
      %v2073 = vld [vmem:[%s206 + $0x48] sm:$0xf]
      %v2074 = vld [vmem:[%s206 + $0x4c] sm:$0xf]
      %v2075 = vld [vmem:[%s206 + $0x50] sm:$0xf]
      %v2076 = vld [vmem:[%s206 + $0x54] sm:$0xf]
      %v2077 = vld [vmem:[%s206 + $0x58] sm:$0xf]
      %v2078 = vld [vmem:[%s206 + $0x5c] sm:$0xf]
      %v2079 = vld [vmem:[%s206 + $0x60] sm:$0xf]
      %v2080 = vld [vmem:[%s206 + $0x64] sm:$0xf]
      %v2081 = vld [vmem:[%s206 + $0x68] sm:$0xf]
      %v2082 = vld [vmem:[%s206 + $0x6c] sm:$0xf]
      %v2083 = vld [vmem:[%s206 + $0x70] sm:$0xf]
      %v2084 = vld [vmem:[%s206 + $0x74] sm:$0xf]
      %v2085 = vld [vmem:[%s206 + $0x78] sm:$0xf]
      %v2086 = vld [vmem:[%s206 + $0x7c] sm:$0xf]
      %v2087 = vld [vmem:[%s206 + $0x80] sm:$0xf]
      %v2088 = vld [vmem:[%s206 + $0x84] sm:$0xf]
      %v2089 = vld [vmem:[%s206 + $0x88] sm:$0xf]
      %v2090 = vld [vmem:[%s206 + $0x8c] sm:$0xf]
      %v2091 = vld [vmem:[%s206 + $0x90] sm:$0xf]
      %v2092 = vld [vmem:[%s206 + $0x94] sm:$0xf]
      %v2093 = vld [vmem:[%s206 + $0x98] sm:$0x3]
      %vm2131 = vcmask 1041408
      %vm2132 = vcmask 1045508
      %vm2133 = vmor %vm2131, %vm2132
      %v2134 = vrot.slane %v2057, 6
      %v2135 = vrot.slane %v2134, 4
      %v2136 = vrot.slane %v2058, 6
      %v2137 = vsel %vm2133, %v2135, %v2136
      %v2138 = vrot.slane %v2136, 4
      %v2139 = vrot.slane %v2059, 6
      %v2140 = vsel %vm2133, %v2138, %v2139
      %v2141 = vrot.slane %v2139, 4
      %v2142 = vrot.slane %v2060, 6
      %v2143 = vsel %vm2133, %v2141, %v2142
      %v2144 = vrot.slane %v2142, 4
      %v2145 = vrot.slane %v2061, 6
      %v2146 = vsel %vm2133, %v2144, %v2145
      %v2147 = vrot.slane %v2145, 4
      %v2148 = vrot.slane %v2062, 6
      %v2149 = vsel %vm2133, %v2147, %v2148
      %v2150 = vrot.slane %v2148, 4
      %v2151 = vrot.slane %v2063, 6
      %v2152 = vsel %vm2133, %v2150, %v2151
      %v2153 = vrot.slane %v2151, 4
      %v2154 = vrot.slane %v2064, 6
      %v2155 = vsel %vm2133, %v2153, %v2154
      %v2156 = vrot.slane %v2154, 4
      %v2157 = vrot.slane %v2065, 6
      %v2158 = vsel %vm2133, %v2156, %v2157
      %v2159 = vrot.slane %v2157, 4
      %v2160 = vrot.slane %v2066, 6
      %v2161 = vsel %vm2133, %v2159, %v2160
      %v2162 = vrot.slane %v2160, 4
      %v2163 = vrot.slane %v2067, 6
      %v2164 = vsel %vm2133, %v2162, %v2163
      %v2165 = vrot.slane %v2163, 4
      %v2166 = vrot.slane %v2068, 6
      %v2167 = vsel %vm2133, %v2165, %v2166
      %v2168 = vrot.slane %v2166, 4
      %v2169 = vrot.slane %v2069, 6
      %v2170 = vsel %vm2133, %v2168, %v2169
      %v2171 = vrot.slane %v2169, 4
      %v2172 = vrot.slane %v2070, 6
      %v2173 = vsel %vm2133, %v2171, %v2172
      %v2174 = vrot.slane %v2172, 4
      %v2175 = vrot.slane %v2071, 6
      %v2176 = vsel %vm2133, %v2174, %v2175
      %v2177 = vrot.slane %v2175, 4
      %v2178 = vrot.slane %v2072, 6
      %v2179 = vsel %vm2133, %v2177, %v2178
      %v2180 = vrot.slane %v2178, 4
      %v2181 = vrot.slane %v2073, 6
      %v2182 = vsel %vm2133, %v2180, %v2181
      %v2183 = vrot.slane %v2181, 4
      %v2184 = vrot.slane %v2074, 6
      %v2185 = vsel %vm2133, %v2183, %v2184
      %v2186 = vrot.slane %v2184, 4
      %v2187 = vrot.slane %v2075, 6
      %v2188 = vsel %vm2133, %v2186, %v2187
      %v2189 = vrot.slane %v2187, 4
      %v2190 = vrot.slane %v2076, 6
      %v2191 = vsel %vm2133, %v2189, %v2190
      %v2192 = vrot.slane %v2190, 4
      %v2193 = vrot.slane %v2077, 6
      %v2194 = vsel %vm2133, %v2192, %v2193
      %v2195 = vrot.slane %v2193, 4
      %v2196 = vrot.slane %v2078, 6
      %v2197 = vsel %vm2133, %v2195, %v2196
      %v2198 = vrot.slane %v2196, 4
      %v2199 = vrot.slane %v2079, 6
      %v2200 = vsel %vm2133, %v2198, %v2199
      %v2201 = vrot.slane %v2199, 4
      %v2202 = vrot.slane %v2080, 6
      %v2203 = vsel %vm2133, %v2201, %v2202
      %v2204 = vrot.slane %v2202, 4
      %v2205 = vrot.slane %v2081, 6
      %v2206 = vsel %vm2133, %v2204, %v2205
      %v2207 = vrot.slane %v2205, 4
      %v2208 = vrot.slane %v2082, 6
      %v2209 = vsel %vm2133, %v2207, %v2208
      %v2210 = vrot.slane %v2208, 4
      %v2211 = vrot.slane %v2083, 6
      %v2212 = vsel %vm2133, %v2210, %v2211
      %v2213 = vrot.slane %v2211, 4
      %v2214 = vrot.slane %v2084, 6
      %v2215 = vsel %vm2133, %v2213, %v2214
      %v2216 = vrot.slane %v2214, 4
      %v2217 = vrot.slane %v2085, 6
      %v2218 = vsel %vm2133, %v2216, %v2217
      %v2219 = vrot.slane %v2217, 4
      %v2220 = vrot.slane %v2086, 6
      %v2221 = vsel %vm2133, %v2219, %v2220
      %v2222 = vrot.slane %v2220, 4
      %v2223 = vrot.slane %v2087, 6
      %v2224 = vsel %vm2133, %v2222, %v2223
      %v2225 = vrot.slane %v2223, 4
      %v2226 = vrot.slane %v2088, 6
      %v2227 = vsel %vm2133, %v2225, %v2226
      %v2228 = vrot.slane %v2226, 4
      %v2229 = vrot.slane %v2089, 6
      %v2230 = vsel %vm2133, %v2228, %v2229
      %v2231 = vrot.slane %v2229, 4
      %v2232 = vrot.slane %v2090, 6
      %v2233 = vsel %vm2133, %v2231, %v2232
      %v2234 = vrot.slane %v2232, 4
      %v2235 = vrot.slane %v2091, 6
      %v2236 = vsel %vm2133, %v2234, %v2235
      %v2237 = vrot.slane %v2235, 4
      %v2238 = vrot.slane %v2092, 6
      %v2239 = vsel %vm2133, %v2237, %v2238
      %v2240 = vrot.slane %v2238, 4
      %v2241 = vrot.slane %v2093, 6
      %v2242 = vsel %vm2133, %v2240, %v2241
      %2243 = vrot.lane.b32.xlu0 %v2137, 20
      %v2244 = vpop.permute.xlu0 %2243
      %2245 = vrot.lane.b32.xlu0 %v2140, 20
      %v2246 = vpop.permute.xlu0 %2245
      %2247 = vrot.lane.b32.xlu0 %v2143, 20
      %v2248 = vpop.permute.xlu0 %2247
      %2249 = vrot.lane.b32.xlu0 %v2146, 20
      %v2250 = vpop.permute.xlu0 %2249
      %2251 = vrot.lane.b32.xlu0 %v2149, 20
      %v2252 = vpop.permute.xlu0 %2251
      %2253 = vrot.lane.b32.xlu0 %v2152, 20
      %v2254 = vpop.permute.xlu0 %2253
      %2255 = vrot.lane.b32.xlu0 %v2155, 20
      %v2256 = vpop.permute.xlu0 %2255
      %2257 = vrot.lane.b32.xlu0 %v2158, 20
      %v2258 = vpop.permute.xlu0 %2257
      %2259 = vrot.lane.b32.xlu0 %v2161, 20
      %v2260 = vpop.permute.xlu0 %2259
      %2261 = vrot.lane.b32.xlu0 %v2164, 20
      %v2262 = vpop.permute.xlu0 %2261
      %2263 = vrot.lane.b32.xlu0 %v2167, 20
      %v2264 = vpop.permute.xlu0 %2263
      %2265 = vrot.lane.b32.xlu0 %v2170, 20
      %v2266 = vpop.permute.xlu0 %2265
      %2267 = vrot.lane.b32.xlu0 %v2173, 20
      %v2268 = vpop.permute.xlu0 %2267
      %2269 = vrot.lane.b32.xlu0 %v2176, 20
      %v2270 = vpop.permute.xlu0 %2269
      %2271 = vrot.lane.b32.xlu0 %v2179, 20
      %v2272 = vpop.permute.xlu0 %2271
      %2273 = vrot.lane.b32.xlu0 %v2182, 20
      %v2274 = vpop.permute.xlu0 %2273
      %2275 = vrot.lane.b32.xlu0 %v2185, 20
      %v2276 = vpop.permute.xlu0 %2275
      %2277 = vrot.lane.b32.xlu0 %v2188, 20
      %v2278 = vpop.permute.xlu0 %2277
      %2279 = vrot.lane.b32.xlu0 %v2191, 20
      %v2280 = vpop.permute.xlu0 %2279
      %2281 = vrot.lane.b32.xlu0 %v2194, 20
      %v2282 = vpop.permute.xlu0 %2281
      %2283 = vrot.lane.b32.xlu0 %v2197, 20
      %v2284 = vpop.permute.xlu0 %2283
      %2285 = vrot.lane.b32.xlu0 %v2200, 20
      %v2286 = vpop.permute.xlu0 %2285
      %2287 = vrot.lane.b32.xlu0 %v2203, 20
      %v2288 = vpop.permute.xlu0 %2287
      %2289 = vrot.lane.b32.xlu0 %v2206, 20
      %v2290 = vpop.permute.xlu0 %2289
      %2291 = vrot.lane.b32.xlu0 %v2209, 20
      %v2292 = vpop.permute.xlu0 %2291
      %2293 = vrot.lane.b32.xlu0 %v2212, 20
      %v2294 = vpop.permute.xlu0 %2293
      %2295 = vrot.lane.b32.xlu0 %v2215, 20
      %v2296 = vpop.permute.xlu0 %2295
      %2297 = vrot.lane.b32.xlu0 %v2218, 20
      %v2298 = vpop.permute.xlu0 %2297
      %2299 = vrot.lane.b32.xlu0 %v2221, 20
      %v2300 = vpop.permute.xlu0 %2299
      %2301 = vrot.lane.b32.xlu0 %v2224, 20
      %v2302 = vpop.permute.xlu0 %2301
      %2303 = vrot.lane.b32.xlu0 %v2227, 20
      %v2304 = vpop.permute.xlu0 %2303
      %2305 = vrot.lane.b32.xlu0 %v2230, 20
      %v2306 = vpop.permute.xlu0 %2305
      %2307 = vrot.lane.b32.xlu0 %v2233, 20
      %v2308 = vpop.permute.xlu0 %2307
      %2309 = vrot.lane.b32.xlu0 %v2236, 20
      %v2310 = vpop.permute.xlu0 %2309
      %2311 = vrot.lane.b32.xlu0 %v2239, 20
      %v2312 = vpop.permute.xlu0 %2311
      %2313 = vrot.lane.b32.xlu0 %v2242, 20
      %v2314 = vpop.permute.xlu0 %2313
      %vm2351 = vcmask 191648
      %2352 = vst.msk [vmem:[#allocation2] sm:$0xf] %vm2351, %v2244
      %2353 = vst.msk [vmem:[#allocation2 + $0x4] sm:$0xf] %vm2351, %v2246
      %2354 = vst.msk [vmem:[#allocation2 + $0x8] sm:$0xf] %vm2351, %v2248
      %2355 = vst.msk [vmem:[#allocation2 + $0xc] sm:$0xf] %vm2351, %v2250
      %2356 = vst.msk [vmem:[#allocation2 + $0x10] sm:$0xf] %vm2351, %v2252
      %2357 = vst.msk [vmem:[#allocation2 + $0x14] sm:$0xf] %vm2351, %v2254
      %2358 = vst.msk [vmem:[#allocation2 + $0x18] sm:$0xf] %vm2351, %v2256
      %2359 = vst.msk [vmem:[#allocation2 + $0x1c] sm:$0xf] %vm2351, %v2258
      %2360 = vst.msk [vmem:[#allocation2 + $0x20] sm:$0xf] %vm2351, %v2260
      %2361 = vst.msk [vmem:[#allocation2 + $0x24] sm:$0xf] %vm2351, %v2262
      %2362 = vst.msk [vmem:[#allocation2 + $0x28] sm:$0xf] %vm2351, %v2264
      %2363 = vst.msk [vmem:[#allocation2 + $0x2c] sm:$0xf] %vm2351, %v2266
      %2364 = vst.msk [vmem:[#allocation2 + $0x30] sm:$0xf] %vm2351, %v2268
      %2365 = vst.msk [vmem:[#allocation2 + $0x34] sm:$0xf] %vm2351, %v2270
      %2366 = vst.msk [vmem:[#allocation2 + $0x38] sm:$0xf] %vm2351, %v2272
      %2367 = vst.msk [vmem:[#allocation2 + $0x3c] sm:$0xf] %vm2351, %v2274
      %2368 = vst.msk [vmem:[#allocation2 + $0x40] sm:$0xf] %vm2351, %v2276
      %2369 = vst.msk [vmem:[#allocation2 + $0x44] sm:$0xf] %vm2351, %v2278
      %2370 = vst.msk [vmem:[#allocation2 + $0x48] sm:$0xf] %vm2351, %v2280
      %2371 = vst.msk [vmem:[#allocation2 + $0x4c] sm:$0xf] %vm2351, %v2282
      %2372 = vst.msk [vmem:[#allocation2 + $0x50] sm:$0xf] %vm2351, %v2284
      %2373 = vst.msk [vmem:[#allocation2 + $0x54] sm:$0xf] %vm2351, %v2286
      %2374 = vst.msk [vmem:[#allocation2 + $0x58] sm:$0xf] %vm2351, %v2288
      %2375 = vst.msk [vmem:[#allocation2 + $0x5c] sm:$0xf] %vm2351, %v2290
      %2376 = vst.msk [vmem:[#allocation2 + $0x60] sm:$0xf] %vm2351, %v2292
      %2377 = vst.msk [vmem:[#allocation2 + $0x64] sm:$0xf] %vm2351, %v2294
      %2378 = vst.msk [vmem:[#allocation2 + $0x68] sm:$0xf] %vm2351, %v2296
      %2379 = vst.msk [vmem:[#allocation2 + $0x6c] sm:$0xf] %vm2351, %v2298
      %2380 = vst.msk [vmem:[#allocation2 + $0x70] sm:$0xf] %vm2351, %v2300
      %2381 = vst.msk [vmem:[#allocation2 + $0x74] sm:$0xf] %vm2351, %v2302
      %2382 = vst.msk [vmem:[#allocation2 + $0x78] sm:$0xf] %vm2351, %v2304
      %2383 = vst.msk [vmem:[#allocation2 + $0x7c] sm:$0xf] %vm2351, %v2306
      %2384 = vst.msk [vmem:[#allocation2 + $0x80] sm:$0xf] %vm2351, %v2308
      %2385 = vst.msk [vmem:[#allocation2 + $0x84] sm:$0xf] %vm2351, %v2310
      %2386 = vst.msk [vmem:[#allocation2 + $0x88] sm:$0xf] %vm2351, %v2312
      %2387 = vst.msk [vmem:[#allocation2 + $0x8c] sm:$0xf] %vm2351, %v2314
      %v2388 = vld [vmem:[%s206 + $0x10] sm:$0xc]
      %v2389 = vld [vmem:[%s206 + $0x14] sm:$0xf]
      %v2390 = vld [vmem:[%s206 + $0x18] sm:$0xf]
      %v2391 = vld [vmem:[%s206 + $0x1c] sm:$0xf]
      %v2392 = vld [vmem:[%s206 + $0x20] sm:$0xf]
      %v2393 = vld [vmem:[%s206 + $0x24] sm:$0xf]
      %v2394 = vld [vmem:[%s206 + $0x28] sm:$0xf]
      %v2395 = vld [vmem:[%s206 + $0x2c] sm:$0xf]
      %v2396 = vld [vmem:[%s206 + $0x30] sm:$0xf]
      %v2397 = vld [vmem:[%s206 + $0x34] sm:$0xf]
      %v2398 = vld [vmem:[%s206 + $0x38] sm:$0xf]
      %v2399 = vld [vmem:[%s206 + $0x3c] sm:$0xf]
      %v2400 = vld [vmem:[%s206 + $0x40] sm:$0xf]
      %v2401 = vld [vmem:[%s206 + $0x44] sm:$0xf]
      %v2402 = vld [vmem:[%s206 + $0x48] sm:$0xf]
      %v2403 = vld [vmem:[%s206 + $0x4c] sm:$0xf]
      %v2404 = vld [vmem:[%s206 + $0x50] sm:$0xf]
      %v2405 = vld [vmem:[%s206 + $0x54] sm:$0xf]
      %v2406 = vld [vmem:[%s206 + $0x58] sm:$0xf]
      %v2407 = vld [vmem:[%s206 + $0x5c] sm:$0xf]
      %v2408 = vld [vmem:[%s206 + $0x60] sm:$0xf]
      %v2409 = vld [vmem:[%s206 + $0x64] sm:$0xf]
      %v2410 = vld [vmem:[%s206 + $0x68] sm:$0xf]
      %v2411 = vld [vmem:[%s206 + $0x6c] sm:$0xf]
      %v2412 = vld [vmem:[%s206 + $0x70] sm:$0xf]
      %v2413 = vld [vmem:[%s206 + $0x74] sm:$0xf]
      %v2414 = vld [vmem:[%s206 + $0x78] sm:$0xf]
      %v2415 = vld [vmem:[%s206 + $0x7c] sm:$0xf]
      %v2416 = vld [vmem:[%s206 + $0x80] sm:$0xf]
      %v2417 = vld [vmem:[%s206 + $0x84] sm:$0xf]
      %v2418 = vld [vmem:[%s206 + $0x88] sm:$0xf]
      %v2419 = vld [vmem:[%s206 + $0x8c] sm:$0xf]
      %v2420 = vld [vmem:[%s206 + $0x90] sm:$0xf]
      %v2421 = vld [vmem:[%s206 + $0x94] sm:$0xf]
      %v2422 = vld [vmem:[%s206 + $0x98] sm:$0xf]
      %v2423 = vld [vmem:[%s206 + $0x9c] sm:$0xf]
      %v2424 = vld [vmem:[%s206 + $0xa0] sm:$0x3]
      %v2462 = vrot.slane %v2388, 6
      %v2463 = vrot.slane %v2462, 4
      %v2464 = vrot.slane %v2389, 6
      %v2465 = vsel %vm2133, %v2463, %v2464
      %v2466 = vrot.slane %v2464, 4
      %v2467 = vrot.slane %v2390, 6
      %v2468 = vsel %vm2133, %v2466, %v2467
      %v2469 = vrot.slane %v2467, 4
      %v2470 = vrot.slane %v2391, 6
      %v2471 = vsel %vm2133, %v2469, %v2470
      %v2472 = vrot.slane %v2470, 4
      %v2473 = vrot.slane %v2392, 6
      %v2474 = vsel %vm2133, %v2472, %v2473
      %v2475 = vrot.slane %v2473, 4
      %v2476 = vrot.slane %v2393, 6
      %v2477 = vsel %vm2133, %v2475, %v2476
      %v2478 = vrot.slane %v2476, 4
      %v2479 = vrot.slane %v2394, 6
      %v2480 = vsel %vm2133, %v2478, %v2479
      %v2481 = vrot.slane %v2479, 4
      %v2482 = vrot.slane %v2395, 6
      %v2483 = vsel %vm2133, %v2481, %v2482
      %v2484 = vrot.slane %v2482, 4
      %v2485 = vrot.slane %v2396, 6
      %v2486 = vsel %vm2133, %v2484, %v2485
      %v2487 = vrot.slane %v2485, 4
      %v2488 = vrot.slane %v2397, 6
      %v2489 = vsel %vm2133, %v2487, %v2488
      %v2490 = vrot.slane %v2488, 4
      %v2491 = vrot.slane %v2398, 6
      %v2492 = vsel %vm2133, %v2490, %v2491
      %v2493 = vrot.slane %v2491, 4
      %v2494 = vrot.slane %v2399, 6
      %v2495 = vsel %vm2133, %v2493, %v2494
      %v2496 = vrot.slane %v2494, 4
      %v2497 = vrot.slane %v2400, 6
      %v2498 = vsel %vm2133, %v2496, %v2497
      %v2499 = vrot.slane %v2497, 4
      %v2500 = vrot.slane %v2401, 6
      %v2501 = vsel %vm2133, %v2499, %v2500
      %v2502 = vrot.slane %v2500, 4
      %v2503 = vrot.slane %v2402, 6
      %v2504 = vsel %vm2133, %v2502, %v2503
      %v2505 = vrot.slane %v2503, 4
      %v2506 = vrot.slane %v2403, 6
      %v2507 = vsel %vm2133, %v2505, %v2506
      %v2508 = vrot.slane %v2506, 4
      %v2509 = vrot.slane %v2404, 6
      %v2510 = vsel %vm2133, %v2508, %v2509
      %v2511 = vrot.slane %v2509, 4
      %v2512 = vrot.slane %v2405, 6
      %v2513 = vsel %vm2133, %v2511, %v2512
      %v2514 = vrot.slane %v2512, 4
      %v2515 = vrot.slane %v2406, 6
      %v2516 = vsel %vm2133, %v2514, %v2515
      %v2517 = vrot.slane %v2515, 4
      %v2518 = vrot.slane %v2407, 6
      %v2519 = vsel %vm2133, %v2517, %v2518
      %v2520 = vrot.slane %v2518, 4
      %v2521 = vrot.slane %v2408, 6
      %v2522 = vsel %vm2133, %v2520, %v2521
      %v2523 = vrot.slane %v2521, 4
      %v2524 = vrot.slane %v2409, 6
      %v2525 = vsel %vm2133, %v2523, %v2524
      %v2526 = vrot.slane %v2524, 4
      %v2527 = vrot.slane %v2410, 6
      %v2528 = vsel %vm2133, %v2526, %v2527
      %v2529 = vrot.slane %v2527, 4
      %v2530 = vrot.slane %v2411, 6
      %v2531 = vsel %vm2133, %v2529, %v2530
      %v2532 = vrot.slane %v2530, 4
      %v2533 = vrot.slane %v2412, 6
      %v2534 = vsel %vm2133, %v2532, %v2533
      %v2535 = vrot.slane %v2533, 4
      %v2536 = vrot.slane %v2413, 6
      %v2537 = vsel %vm2133, %v2535, %v2536
      %v2538 = vrot.slane %v2536, 4
      %v2539 = vrot.slane %v2414, 6
      %v2540 = vsel %vm2133, %v2538, %v2539
      %v2541 = vrot.slane %v2539, 4
      %v2542 = vrot.slane %v2415, 6
      %v2543 = vsel %vm2133, %v2541, %v2542
      %v2544 = vrot.slane %v2542, 4
      %v2545 = vrot.slane %v2416, 6
      %v2546 = vsel %vm2133, %v2544, %v2545
      %v2547 = vrot.slane %v2545, 4
      %v2548 = vrot.slane %v2417, 6
      %v2549 = vsel %vm2133, %v2547, %v2548
      %v2550 = vrot.slane %v2548, 4
      %v2551 = vrot.slane %v2418, 6
      %v2552 = vsel %vm2133, %v2550, %v2551
      %v2553 = vrot.slane %v2551, 4
      %v2554 = vrot.slane %v2419, 6
      %v2555 = vsel %vm2133, %v2553, %v2554
      %v2556 = vrot.slane %v2554, 4
      %v2557 = vrot.slane %v2420, 6
      %v2558 = vsel %vm2133, %v2556, %v2557
      %v2559 = vrot.slane %v2557, 4
      %v2560 = vrot.slane %v2421, 6
      %v2561 = vsel %vm2133, %v2559, %v2560
      %v2562 = vrot.slane %v2560, 4
      %v2563 = vrot.slane %v2422, 6
      %v2564 = vsel %vm2133, %v2562, %v2563
      %v2565 = vrot.slane %v2563, 4
      %v2566 = vrot.slane %v2423, 6
      %v2567 = vsel %vm2133, %v2565, %v2566
      %v2568 = vrot.slane %v2566, 4
      %v2569 = vrot.slane %v2424, 6
      %v2570 = vsel %vm2133, %v2568, %v2569
      %2571 = vrot.lane.b32.xlu0 %v2465, 24
      %v2572 = vpop.permute.xlu0 %2571
      %2573 = vrot.lane.b32.xlu0 %v2468, 24
      %v2574 = vpop.permute.xlu0 %2573
      %2575 = vrot.lane.b32.xlu0 %v2471, 24
      %v2576 = vpop.permute.xlu0 %2575
      %2577 = vrot.lane.b32.xlu0 %v2474, 24
      %v2578 = vpop.permute.xlu0 %2577
      %2579 = vrot.lane.b32.xlu0 %v2477, 24
      %v2580 = vpop.permute.xlu0 %2579
      %2581 = vrot.lane.b32.xlu0 %v2480, 24
      %v2582 = vpop.permute.xlu0 %2581
      %2583 = vrot.lane.b32.xlu0 %v2483, 24
      %v2584 = vpop.permute.xlu0 %2583
      %2585 = vrot.lane.b32.xlu0 %v2486, 24
      %v2586 = vpop.permute.xlu0 %2585
      %2587 = vrot.lane.b32.xlu0 %v2489, 24
      %v2588 = vpop.permute.xlu0 %2587
      %2589 = vrot.lane.b32.xlu0 %v2492, 24
      %v2590 = vpop.permute.xlu0 %2589
      %2591 = vrot.lane.b32.xlu0 %v2495, 24
      %v2592 = vpop.permute.xlu0 %2591
      %2593 = vrot.lane.b32.xlu0 %v2498, 24
      %v2594 = vpop.permute.xlu0 %2593
      %2595 = vrot.lane.b32.xlu0 %v2501, 24
      %v2596 = vpop.permute.xlu0 %2595
      %2597 = vrot.lane.b32.xlu0 %v2504, 24
      %v2598 = vpop.permute.xlu0 %2597
      %2599 = vrot.lane.b32.xlu0 %v2507, 24
      %v2600 = vpop.permute.xlu0 %2599
      %2601 = vrot.lane.b32.xlu0 %v2510, 24
      %v2602 = vpop.permute.xlu0 %2601
      %2603 = vrot.lane.b32.xlu0 %v2513, 24
      %v2604 = vpop.permute.xlu0 %2603
      %2605 = vrot.lane.b32.xlu0 %v2516, 24
      %v2606 = vpop.permute.xlu0 %2605
      %2607 = vrot.lane.b32.xlu0 %v2519, 24
      %v2608 = vpop.permute.xlu0 %2607
      %2609 = vrot.lane.b32.xlu0 %v2522, 24
      %v2610 = vpop.permute.xlu0 %2609
      %2611 = vrot.lane.b32.xlu0 %v2525, 24
      %v2612 = vpop.permute.xlu0 %2611
      %2613 = vrot.lane.b32.xlu0 %v2528, 24
      %v2614 = vpop.permute.xlu0 %2613
      %2615 = vrot.lane.b32.xlu0 %v2531, 24
      %v2616 = vpop.permute.xlu0 %2615
      %2617 = vrot.lane.b32.xlu0 %v2534, 24
      %v2618 = vpop.permute.xlu0 %2617
      %2619 = vrot.lane.b32.xlu0 %v2537, 24
      %v2620 = vpop.permute.xlu0 %2619
      %2621 = vrot.lane.b32.xlu0 %v2540, 24
      %v2622 = vpop.permute.xlu0 %2621
      %2623 = vrot.lane.b32.xlu0 %v2543, 24
      %v2624 = vpop.permute.xlu0 %2623
      %2625 = vrot.lane.b32.xlu0 %v2546, 24
      %v2626 = vpop.permute.xlu0 %2625
      %2627 = vrot.lane.b32.xlu0 %v2549, 24
      %v2628 = vpop.permute.xlu0 %2627
      %2629 = vrot.lane.b32.xlu0 %v2552, 24
      %v2630 = vpop.permute.xlu0 %2629
      %2631 = vrot.lane.b32.xlu0 %v2555, 24
      %v2632 = vpop.permute.xlu0 %2631
      %2633 = vrot.lane.b32.xlu0 %v2558, 24
      %v2634 = vpop.permute.xlu0 %2633
      %2635 = vrot.lane.b32.xlu0 %v2561, 24
      %v2636 = vpop.permute.xlu0 %2635
      %2637 = vrot.lane.b32.xlu0 %v2564, 24
      %v2638 = vpop.permute.xlu0 %2637
      %2639 = vrot.lane.b32.xlu0 %v2567, 24
      %v2640 = vpop.permute.xlu0 %2639
      %2641 = vrot.lane.b32.xlu0 %v2570, 24
      %v2642 = vpop.permute.xlu0 %2641
      %vm2679 = vcmask 224448
      %2680 = vst.msk [vmem:[#allocation2] sm:$0xf] %vm2679, %v2572
      %2681 = vst.msk [vmem:[#allocation2 + $0x4] sm:$0xf] %vm2679, %v2574
      %2682 = vst.msk [vmem:[#allocation2 + $0x8] sm:$0xf] %vm2679, %v2576
      %2683 = vst.msk [vmem:[#allocation2 + $0xc] sm:$0xf] %vm2679, %v2578
      %2684 = vst.msk [vmem:[#allocation2 + $0x10] sm:$0xf] %vm2679, %v2580
      %2685 = vst.msk [vmem:[#allocation2 + $0x14] sm:$0xf] %vm2679, %v2582
      %2686 = vst.msk [vmem:[#allocation2 + $0x18] sm:$0xf] %vm2679, %v2584
      %2687 = vst.msk [vmem:[#allocation2 + $0x1c] sm:$0xf] %vm2679, %v2586
      %2688 = vst.msk [vmem:[#allocation2 + $0x20] sm:$0xf] %vm2679, %v2588
      %2689 = vst.msk [vmem:[#allocation2 + $0x24] sm:$0xf] %vm2679, %v2590
      %2690 = vst.msk [vmem:[#allocation2 + $0x28] sm:$0xf] %vm2679, %v2592
      %2691 = vst.msk [vmem:[#allocation2 + $0x2c] sm:$0xf] %vm2679, %v2594
      %2692 = vst.msk [vmem:[#allocation2 + $0x30] sm:$0xf] %vm2679, %v2596
      %2693 = vst.msk [vmem:[#allocation2 + $0x34] sm:$0xf] %vm2679, %v2598
      %2694 = vst.msk [vmem:[#allocation2 + $0x38] sm:$0xf] %vm2679, %v2600
      %2695 = vst.msk [vmem:[#allocation2 + $0x3c] sm:$0xf] %vm2679, %v2602
      %2696 = vst.msk [vmem:[#allocation2 + $0x40] sm:$0xf] %vm2679, %v2604
      %2697 = vst.msk [vmem:[#allocation2 + $0x44] sm:$0xf] %vm2679, %v2606
      %2698 = vst.msk [vmem:[#allocation2 + $0x48] sm:$0xf] %vm2679, %v2608
      %2699 = vst.msk [vmem:[#allocation2 + $0x4c] sm:$0xf] %vm2679, %v2610
      %2700 = vst.msk [vmem:[#allocation2 + $0x50] sm:$0xf] %vm2679, %v2612
      %2701 = vst.msk [vmem:[#allocation2 + $0x54] sm:$0xf] %vm2679, %v2614
      %2702 = vst.msk [vmem:[#allocation2 + $0x58] sm:$0xf] %vm2679, %v2616
      %2703 = vst.msk [vmem:[#allocation2 + $0x5c] sm:$0xf] %vm2679, %v2618
      %2704 = vst.msk [vmem:[#allocation2 + $0x60] sm:$0xf] %vm2679, %v2620
      %2705 = vst.msk [vmem:[#allocation2 + $0x64] sm:$0xf] %vm2679, %v2622
      %2706 = vst.msk [vmem:[#allocation2 + $0x68] sm:$0xf] %vm2679, %v2624
      %2707 = vst.msk [vmem:[#allocation2 + $0x6c] sm:$0xf] %vm2679, %v2626
      %2708 = vst.msk [vmem:[#allocation2 + $0x70] sm:$0xf] %vm2679, %v2628
      %2709 = vst.msk [vmem:[#allocation2 + $0x74] sm:$0xf] %vm2679, %v2630
      %2710 = vst.msk [vmem:[#allocation2 + $0x78] sm:$0xf] %vm2679, %v2632
      %2711 = vst.msk [vmem:[#allocation2 + $0x7c] sm:$0xf] %vm2679, %v2634
      %2712 = vst.msk [vmem:[#allocation2 + $0x80] sm:$0xf] %vm2679, %v2636
      %2713 = vst.msk [vmem:[#allocation2 + $0x84] sm:$0xf] %vm2679, %v2638
      %2714 = vst.msk [vmem:[#allocation2 + $0x88] sm:$0xf] %vm2679, %v2640
      %2715 = vst.msk [vmem:[#allocation2 + $0x8c] sm:$0xf] %vm2679, %v2642
      %v2716 = vld [vmem:[%s206 + $0x10] sm:$0xc]
      %v2717 = vld [vmem:[%s206 + $0x14] sm:$0xf]
      %v2718 = vld [vmem:[%s206 + $0x18] sm:$0xf]
      %v2719 = vld [vmem:[%s206 + $0x1c] sm:$0xf]
      %v2720 = vld [vmem:[%s206 + $0x20] sm:$0xf]
      %v2721 = vld [vmem:[%s206 + $0x24] sm:$0xf]
      %v2722 = vld [vmem:[%s206 + $0x28] sm:$0xf]
      %v2723 = vld [vmem:[%s206 + $0x2c] sm:$0xf]
      %v2724 = vld [vmem:[%s206 + $0x30] sm:$0xf]
      %v2725 = vld [vmem:[%s206 + $0x34] sm:$0xf]
      %v2726 = vld [vmem:[%s206 + $0x38] sm:$0xf]
      %v2727 = vld [vmem:[%s206 + $0x3c] sm:$0xf]
      %v2728 = vld [vmem:[%s206 + $0x40] sm:$0xf]
      %v2729 = vld [vmem:[%s206 + $0x44] sm:$0xf]
      %v2730 = vld [vmem:[%s206 + $0x48] sm:$0xf]
      %v2731 = vld [vmem:[%s206 + $0x4c] sm:$0xf]
      %v2732 = vld [vmem:[%s206 + $0x50] sm:$0xf]
      %v2733 = vld [vmem:[%s206 + $0x54] sm:$0xf]
      %v2734 = vld [vmem:[%s206 + $0x58] sm:$0xf]
      %v2735 = vld [vmem:[%s206 + $0x5c] sm:$0xf]
      %v2736 = vld [vmem:[%s206 + $0x60] sm:$0xf]
      %v2737 = vld [vmem:[%s206 + $0x64] sm:$0xf]
      %v2738 = vld [vmem:[%s206 + $0x68] sm:$0xf]
      %v2739 = vld [vmem:[%s206 + $0x6c] sm:$0xf]
      %v2740 = vld [vmem:[%s206 + $0x70] sm:$0xf]
      %v2741 = vld [vmem:[%s206 + $0x74] sm:$0xf]
      %v2742 = vld [vmem:[%s206 + $0x78] sm:$0xf]
      %v2743 = vld [vmem:[%s206 + $0x7c] sm:$0xf]
      %v2744 = vld [vmem:[%s206 + $0x80] sm:$0xf]
      %v2745 = vld [vmem:[%s206 + $0x84] sm:$0xf]
      %v2746 = vld [vmem:[%s206 + $0x88] sm:$0xf]
      %v2747 = vld [vmem:[%s206 + $0x8c] sm:$0xf]
      %v2748 = vld [vmem:[%s206 + $0x90] sm:$0xf]
      %v2749 = vld [vmem:[%s206 + $0x94] sm:$0xf]
      %v2750 = vld [vmem:[%s206 + $0x98] sm:$0xf]
      %v2751 = vld [vmem:[%s206 + $0x9c] sm:$0xf]
      %v2752 = vld [vmem:[%s206 + $0xa0] sm:$0x7]
      %vm2753 = vsmask.f32 1280
      %vm2754 = vsmask.f32 5392
      %vm2755 = vmor %vm2753, %vm2754
      %v2757 = vshrl.u32 %v2716, 16
      %v2759 = vrot.slane %v2757, 6
      %v2760 = vshll.u32 %v2716, 16
      %v2762 = vrot.slane %v2760, 7
      %v2763 = vor.u32 %v2759, %v2762
      %v2764 = vrot.slane %v2763, 4
      %v2766 = vshrl.u32 %v2717, 16
      %v2768 = vrot.slane %v2766, 6
      %v2769 = vshll.u32 %v2717, 16
      %v2771 = vrot.slane %v2769, 7
      %v2772 = vor.u32 %v2768, %v2771
      %v2773 = vsel %vm2755, %v2764, %v2772
      %v2774 = vrot.slane %v2772, 4
      %v2776 = vshrl.u32 %v2718, 16
      %v2778 = vrot.slane %v2776, 6
      %v2779 = vshll.u32 %v2718, 16
      %v2781 = vrot.slane %v2779, 7
      %v2782 = vor.u32 %v2778, %v2781
      %v2783 = vsel %vm2755, %v2774, %v2782
      %v2784 = vrot.slane %v2782, 4
      %v2786 = vshrl.u32 %v2719, 16
      %v2788 = vrot.slane %v2786, 6
      %v2789 = vshll.u32 %v2719, 16
      %v2791 = vrot.slane %v2789, 7
      %v2792 = vor.u32 %v2788, %v2791
      %v2793 = vsel %vm2755, %v2784, %v2792
      %v2794 = vrot.slane %v2792, 4
      %v2796 = vshrl.u32 %v2720, 16
      %v2798 = vrot.slane %v2796, 6
      %v2799 = vshll.u32 %v2720, 16
      %v2801 = vrot.slane %v2799, 7
      %v2802 = vor.u32 %v2798, %v2801
      %v2803 = vsel %vm2755, %v2794, %v2802
      %v2804 = vrot.slane %v2802, 4
      %v2806 = vshrl.u32 %v2721, 16
      %v2808 = vrot.slane %v2806, 6
      %v2809 = vshll.u32 %v2721, 16
      %v2811 = vrot.slane %v2809, 7
      %v2812 = vor.u32 %v2808, %v2811
      %v2813 = vsel %vm2755, %v2804, %v2812
      %v2814 = vrot.slane %v2812, 4
      %v2816 = vshrl.u32 %v2722, 16
      %v2818 = vrot.slane %v2816, 6
      %v2819 = vshll.u32 %v2722, 16
      %v2821 = vrot.slane %v2819, 7
      %v2822 = vor.u32 %v2818, %v2821
      %v2823 = vsel %vm2755, %v2814, %v2822
      %v2824 = vrot.slane %v2822, 4
      %v2826 = vshrl.u32 %v2723, 16
      %v2828 = vrot.slane %v2826, 6
      %v2829 = vshll.u32 %v2723, 16
      %v2831 = vrot.slane %v2829, 7
      %v2832 = vor.u32 %v2828, %v2831
      %v2833 = vsel %vm2755, %v2824, %v2832
      %v2834 = vrot.slane %v2832, 4
      %v2836 = vshrl.u32 %v2724, 16
      %v2838 = vrot.slane %v2836, 6
      %v2839 = vshll.u32 %v2724, 16
      %v2841 = vrot.slane %v2839, 7
      %v2842 = vor.u32 %v2838, %v2841
      %v2843 = vsel %vm2755, %v2834, %v2842
      %v2844 = vrot.slane %v2842, 4
      %v2846 = vshrl.u32 %v2725, 16
      %v2848 = vrot.slane %v2846, 6
      %v2849 = vshll.u32 %v2725, 16
      %v2851 = vrot.slane %v2849, 7
      %v2852 = vor.u32 %v2848, %v2851
      %v2853 = vsel %vm2755, %v2844, %v2852
      %v2854 = vrot.slane %v2852, 4
      %v2856 = vshrl.u32 %v2726, 16
      %v2858 = vrot.slane %v2856, 6
      %v2859 = vshll.u32 %v2726, 16
      %v2861 = vrot.slane %v2859, 7
      %v2862 = vor.u32 %v2858, %v2861
      %v2863 = vsel %vm2755, %v2854, %v2862
      %v2864 = vrot.slane %v2862, 4
      %v2866 = vshrl.u32 %v2727, 16
      %v2868 = vrot.slane %v2866, 6
      %v2869 = vshll.u32 %v2727, 16
      %v2871 = vrot.slane %v2869, 7
      %v2872 = vor.u32 %v2868, %v2871
      %v2873 = vsel %vm2755, %v2864, %v2872
      %v2874 = vrot.slane %v2872, 4
      %v2876 = vshrl.u32 %v2728, 16
      %v2878 = vrot.slane %v2876, 6
      %v2879 = vshll.u32 %v2728, 16
      %v2881 = vrot.slane %v2879, 7
      %v2882 = vor.u32 %v2878, %v2881
      %v2883 = vsel %vm2755, %v2874, %v2882
      %v2884 = vrot.slane %v2882, 4
      %v2886 = vshrl.u32 %v2729, 16
      %v2888 = vrot.slane %v2886, 6
      %v2889 = vshll.u32 %v2729, 16
      %v2891 = vrot.slane %v2889, 7
      %v2892 = vor.u32 %v2888, %v2891
      %v2893 = vsel %vm2755, %v2884, %v2892
      %v2894 = vrot.slane %v2892, 4
      %v2896 = vshrl.u32 %v2730, 16
      %v2898 = vrot.slane %v2896, 6
      %v2899 = vshll.u32 %v2730, 16
      %v2901 = vrot.slane %v2899, 7
      %v2902 = vor.u32 %v2898, %v2901
      %v2903 = vsel %vm2755, %v2894, %v2902
      %v2904 = vrot.slane %v2902, 4
      %v2906 = vshrl.u32 %v2731, 16
      %v2908 = vrot.slane %v2906, 6
      %v2909 = vshll.u32 %v2731, 16
      %v2911 = vrot.slane %v2909, 7
      %v2912 = vor.u32 %v2908, %v2911
      %v2913 = vsel %vm2755, %v2904, %v2912
      %v2914 = vrot.slane %v2912, 4
      %v2916 = vshrl.u32 %v2732, 16
      %v2918 = vrot.slane %v2916, 6
      %v2919 = vshll.u32 %v2732, 16
      %v2921 = vrot.slane %v2919, 7
      %v2922 = vor.u32 %v2918, %v2921
      %v2923 = vsel %vm2755, %v2914, %v2922
      %v2924 = vrot.slane %v2922, 4
      %v2926 = vshrl.u32 %v2733, 16
      %v2928 = vrot.slane %v2926, 6
      %v2929 = vshll.u32 %v2733, 16
      %v2931 = vrot.slane %v2929, 7
      %v2932 = vor.u32 %v2928, %v2931
      %v2933 = vsel %vm2755, %v2924, %v2932
      %v2934 = vrot.slane %v2932, 4
      %v2936 = vshrl.u32 %v2734, 16
      %v2938 = vrot.slane %v2936, 6
      %v2939 = vshll.u32 %v2734, 16
      %v2941 = vrot.slane %v2939, 7
      %v2942 = vor.u32 %v2938, %v2941
      %v2943 = vsel %vm2755, %v2934, %v2942
      %v2944 = vrot.slane %v2942, 4
      %v2946 = vshrl.u32 %v2735, 16
      %v2948 = vrot.slane %v2946, 6
      %v2949 = vshll.u32 %v2735, 16
      %v2951 = vrot.slane %v2949, 7
      %v2952 = vor.u32 %v2948, %v2951
      %v2953 = vsel %vm2755, %v2944, %v2952
      %v2954 = vrot.slane %v2952, 4
      %v2956 = vshrl.u32 %v2736, 16
      %v2958 = vrot.slane %v2956, 6
      %v2959 = vshll.u32 %v2736, 16
      %v2961 = vrot.slane %v2959, 7
      %v2962 = vor.u32 %v2958, %v2961
      %v2963 = vsel %vm2755, %v2954, %v2962
      %v2964 = vrot.slane %v2962, 4
      %v2966 = vshrl.u32 %v2737, 16
      %v2968 = vrot.slane %v2966, 6
      %v2969 = vshll.u32 %v2737, 16
      %v2971 = vrot.slane %v2969, 7
      %v2972 = vor.u32 %v2968, %v2971
      %v2973 = vsel %vm2755, %v2964, %v2972
      %v2974 = vrot.slane %v2972, 4
      %v2976 = vshrl.u32 %v2738, 16
      %v2978 = vrot.slane %v2976, 6
      %v2979 = vshll.u32 %v2738, 16
      %v2981 = vrot.slane %v2979, 7
      %v2982 = vor.u32 %v2978, %v2981
      %v2983 = vsel %vm2755, %v2974, %v2982
      %v2984 = vrot.slane %v2982, 4
      %v2986 = vshrl.u32 %v2739, 16
      %v2988 = vrot.slane %v2986, 6
      %v2989 = vshll.u32 %v2739, 16
      %v2991 = vrot.slane %v2989, 7
      %v2992 = vor.u32 %v2988, %v2991
      %v2993 = vsel %vm2755, %v2984, %v2992
      %v2994 = vrot.slane %v2992, 4
      %v2996 = vshrl.u32 %v2740, 16
      %v2998 = vrot.slane %v2996, 6
      %v2999 = vshll.u32 %v2740, 16
      %v3001 = vrot.slane %v2999, 7
      %v3002 = vor.u32 %v2998, %v3001
      %v3003 = vsel %vm2755, %v2994, %v3002
      %v3004 = vrot.slane %v3002, 4
      %v3006 = vshrl.u32 %v2741, 16
      %v3008 = vrot.slane %v3006, 6
      %v3009 = vshll.u32 %v2741, 16
      %v3011 = vrot.slane %v3009, 7
      %v3012 = vor.u32 %v3008, %v3011
      %v3013 = vsel %vm2755, %v3004, %v3012
      %v3014 = vrot.slane %v3012, 4
      %v3016 = vshrl.u32 %v2742, 16
      %v3018 = vrot.slane %v3016, 6
      %v3019 = vshll.u32 %v2742, 16
      %v3021 = vrot.slane %v3019, 7
      %v3022 = vor.u32 %v3018, %v3021
      %v3023 = vsel %vm2755, %v3014, %v3022
      %v3024 = vrot.slane %v3022, 4
      %v3026 = vshrl.u32 %v2743, 16
      %v3028 = vrot.slane %v3026, 6
      %v3029 = vshll.u32 %v2743, 16
      %v3031 = vrot.slane %v3029, 7
      %v3032 = vor.u32 %v3028, %v3031
      %v3033 = vsel %vm2755, %v3024, %v3032
      %v3034 = vrot.slane %v3032, 4
      %v3036 = vshrl.u32 %v2744, 16
      %v3038 = vrot.slane %v3036, 6
      %v3039 = vshll.u32 %v2744, 16
      %v3041 = vrot.slane %v3039, 7
      %v3042 = vor.u32 %v3038, %v3041
      %v3043 = vsel %vm2755, %v3034, %v3042
      %v3044 = vrot.slane %v3042, 4
      %v3046 = vshrl.u32 %v2745, 16
      %v3048 = vrot.slane %v3046, 6
      %v3049 = vshll.u32 %v2745, 16
      %v3051 = vrot.slane %v3049, 7
      %v3052 = vor.u32 %v3048, %v3051
      %v3053 = vsel %vm2755, %v3044, %v3052
      %v3054 = vrot.slane %v3052, 4
      %v3056 = vshrl.u32 %v2746, 16
      %v3058 = vrot.slane %v3056, 6
      %v3059 = vshll.u32 %v2746, 16
      %v3061 = vrot.slane %v3059, 7
      %v3062 = vor.u32 %v3058, %v3061
      %v3063 = vsel %vm2755, %v3054, %v3062
      %v3064 = vrot.slane %v3062, 4
      %v3066 = vshrl.u32 %v2747, 16
      %v3068 = vrot.slane %v3066, 6
      %v3069 = vshll.u32 %v2747, 16
      %v3071 = vrot.slane %v3069, 7
      %v3072 = vor.u32 %v3068, %v3071
      %v3073 = vsel %vm2755, %v3064, %v3072
      %v3074 = vrot.slane %v3072, 4
      %v3076 = vshrl.u32 %v2748, 16
      %v3078 = vrot.slane %v3076, 6
      %v3079 = vshll.u32 %v2748, 16
      %v3081 = vrot.slane %v3079, 7
      %v3082 = vor.u32 %v3078, %v3081
      %v3083 = vsel %vm2755, %v3074, %v3082
      %v3084 = vrot.slane %v3082, 4
      %v3086 = vshrl.u32 %v2749, 16
      %v3088 = vrot.slane %v3086, 6
      %v3089 = vshll.u32 %v2749, 16
      %v3091 = vrot.slane %v3089, 7
      %v3092 = vor.u32 %v3088, %v3091
      %v3093 = vsel %vm2755, %v3084, %v3092
      %v3094 = vrot.slane %v3092, 4
      %v3096 = vshrl.u32 %v2750, 16
      %v3098 = vrot.slane %v3096, 6
      %v3099 = vshll.u32 %v2750, 16
      %v3101 = vrot.slane %v3099, 7
      %v3102 = vor.u32 %v3098, %v3101
      %v3103 = vsel %vm2755, %v3094, %v3102
      %v3104 = vrot.slane %v3102, 4
      %v3106 = vshrl.u32 %v2751, 16
      %v3108 = vrot.slane %v3106, 6
      %v3109 = vshll.u32 %v2751, 16
      %v3111 = vrot.slane %v3109, 7
      %v3112 = vor.u32 %v3108, %v3111
      %v3113 = vsel %vm2755, %v3104, %v3112
      %v3114 = vrot.slane %v3112, 4
      %v3116 = vshrl.u32 %v2752, 16
      %v3118 = vrot.slane %v3116, 6
      %v3119 = vshll.u32 %v2752, 16
      %v3121 = vrot.slane %v3119, 7
      %v3122 = vor.u32 %v3118, %v3121
      %v3123 = vsel %vm2755, %v3114, %v3122
      %3124 = vrot.lane.b32.xlu0 %v2773, 28
      %v3125 = vpop.permute.xlu0 %3124
      %3126 = vrot.lane.b32.xlu0 %v2783, 28
      %v3127 = vpop.permute.xlu0 %3126
      %3128 = vrot.lane.b32.xlu0 %v2793, 28
      %v3129 = vpop.permute.xlu0 %3128
      %3130 = vrot.lane.b32.xlu0 %v2803, 28
      %v3131 = vpop.permute.xlu0 %3130
      %3132 = vrot.lane.b32.xlu0 %v2813, 28
      %v3133 = vpop.permute.xlu0 %3132
      %3134 = vrot.lane.b32.xlu0 %v2823, 28
      %v3135 = vpop.permute.xlu0 %3134
      %3136 = vrot.lane.b32.xlu0 %v2833, 28
      %v3137 = vpop.permute.xlu0 %3136
      %3138 = vrot.lane.b32.xlu0 %v2843, 28
      %v3139 = vpop.permute.xlu0 %3138
      %3140 = vrot.lane.b32.xlu0 %v2853, 28
      %v3141 = vpop.permute.xlu0 %3140
      %3142 = vrot.lane.b32.xlu0 %v2863, 28
      %v3143 = vpop.permute.xlu0 %3142
      %3144 = vrot.lane.b32.xlu0 %v2873, 28
      %v3145 = vpop.permute.xlu0 %3144
      %3146 = vrot.lane.b32.xlu0 %v2883, 28
      %v3147 = vpop.permute.xlu0 %3146
      %3148 = vrot.lane.b32.xlu0 %v2893, 28
      %v3149 = vpop.permute.xlu0 %3148
      %3150 = vrot.lane.b32.xlu0 %v2903, 28
      %v3151 = vpop.permute.xlu0 %3150
      %3152 = vrot.lane.b32.xlu0 %v2913, 28
      %v3153 = vpop.permute.xlu0 %3152
      %3154 = vrot.lane.b32.xlu0 %v2923, 28
      %v3155 = vpop.permute.xlu0 %3154
      %3156 = vrot.lane.b32.xlu0 %v2933, 28
      %v3157 = vpop.permute.xlu0 %3156
      %3158 = vrot.lane.b32.xlu0 %v2943, 28
      %v3159 = vpop.permute.xlu0 %3158
      %3160 = vrot.lane.b32.xlu0 %v2953, 28
      %v3161 = vpop.permute.xlu0 %3160
      %3162 = vrot.lane.b32.xlu0 %v2963, 28
      %v3163 = vpop.permute.xlu0 %3162
      %3164 = vrot.lane.b32.xlu0 %v2973, 28
      %v3165 = vpop.permute.xlu0 %3164
      %3166 = vrot.lane.b32.xlu0 %v2983, 28
      %v3167 = vpop.permute.xlu0 %3166
      %3168 = vrot.lane.b32.xlu0 %v2993, 28
      %v3169 = vpop.permute.xlu0 %3168
      %3170 = vrot.lane.b32.xlu0 %v3003, 28
      %v3171 = vpop.permute.xlu0 %3170
      %3172 = vrot.lane.b32.xlu0 %v3013, 28
      %v3173 = vpop.permute.xlu0 %3172
      %3174 = vrot.lane.b32.xlu0 %v3023, 28
      %v3175 = vpop.permute.xlu0 %3174
      %3176 = vrot.lane.b32.xlu0 %v3033, 28
      %v3177 = vpop.permute.xlu0 %3176
      %3178 = vrot.lane.b32.xlu0 %v3043, 28
      %v3179 = vpop.permute.xlu0 %3178
      %3180 = vrot.lane.b32.xlu0 %v3053, 28
      %v3181 = vpop.permute.xlu0 %3180
      %3182 = vrot.lane.b32.xlu0 %v3063, 28
      %v3183 = vpop.permute.xlu0 %3182
      %3184 = vrot.lane.b32.xlu0 %v3073, 28
      %v3185 = vpop.permute.xlu0 %3184
      %3186 = vrot.lane.b32.xlu0 %v3083, 28
      %v3187 = vpop.permute.xlu0 %3186
      %3188 = vrot.lane.b32.xlu0 %v3093, 28
      %v3189 = vpop.permute.xlu0 %3188
      %3190 = vrot.lane.b32.xlu0 %v3103, 28
      %v3191 = vpop.permute.xlu0 %3190
      %3192 = vrot.lane.b32.xlu0 %v3113, 28
      %v3193 = vpop.permute.xlu0 %3192
      %3194 = vrot.lane.b32.xlu0 %v3123, 28
      %v3195 = vpop.permute.xlu0 %3194
      %vm3232 = vcmask 257248
      %3233 = vst.msk [vmem:[#allocation2] sm:$0xf] %vm3232, %v3125
      %3234 = vst.msk [vmem:[#allocation2 + $0x4] sm:$0xf] %vm3232, %v3127
      %3235 = vst.msk [vmem:[#allocation2 + $0x8] sm:$0xf] %vm3232, %v3129
      %3236 = vst.msk [vmem:[#allocation2 + $0xc] sm:$0xf] %vm3232, %v3131
      %3237 = vst.msk [vmem:[#allocation2 + $0x10] sm:$0xf] %vm3232, %v3133
      %3238 = vst.msk [vmem:[#allocation2 + $0x14] sm:$0xf] %vm3232, %v3135
      %3239 = vst.msk [vmem:[#allocation2 + $0x18] sm:$0xf] %vm3232, %v3137
      %3240 = vst.msk [vmem:[#allocation2 + $0x1c] sm:$0xf] %vm3232, %v3139
      %3241 = vst.msk [vmem:[#allocation2 + $0x20] sm:$0xf] %vm3232, %v3141
      %3242 = vst.msk [vmem:[#allocation2 + $0x24] sm:$0xf] %vm3232, %v3143
      %3243 = vst.msk [vmem:[#allocation2 + $0x28] sm:$0xf] %vm3232, %v3145
      %3244 = vst.msk [vmem:[#allocation2 + $0x2c] sm:$0xf] %vm3232, %v3147
      %3245 = vst.msk [vmem:[#allocation2 + $0x30] sm:$0xf] %vm3232, %v3149
      %3246 = vst.msk [vmem:[#allocation2 + $0x34] sm:$0xf] %vm3232, %v3151
      %3247 = vst.msk [vmem:[#allocation2 + $0x38] sm:$0xf] %vm3232, %v3153
      %3248 = vst.msk [vmem:[#allocation2 + $0x3c] sm:$0xf] %vm3232, %v3155
      %3249 = vst.msk [vmem:[#allocation2 + $0x40] sm:$0xf] %vm3232, %v3157
      %3250 = vst.msk [vmem:[#allocation2 + $0x44] sm:$0xf] %vm3232, %v3159
      %3251 = vst.msk [vmem:[#allocation2 + $0x48] sm:$0xf] %vm3232, %v3161
      %3252 = vst.msk [vmem:[#allocation2 + $0x4c] sm:$0xf] %vm3232, %v3163
      %3253 = vst.msk [vmem:[#allocation2 + $0x50] sm:$0xf] %vm3232, %v3165
      %3254 = vst.msk [vmem:[#allocation2 + $0x54] sm:$0xf] %vm3232, %v3167
      %3255 = vst.msk [vmem:[#allocation2 + $0x58] sm:$0xf] %vm3232, %v3169
      %3256 = vst.msk [vmem:[#allocation2 + $0x5c] sm:$0xf] %vm3232, %v3171
      %3257 = vst.msk [vmem:[#allocation2 + $0x60] sm:$0xf] %vm3232, %v3173
      %3258 = vst.msk [vmem:[#allocation2 + $0x64] sm:$0xf] %vm3232, %v3175
      %3259 = vst.msk [vmem:[#allocation2 + $0x68] sm:$0xf] %vm3232, %v3177
      %3260 = vst.msk [vmem:[#allocation2 + $0x6c] sm:$0xf] %vm3232, %v3179
      %3261 = vst.msk [vmem:[#allocation2 + $0x70] sm:$0xf] %vm3232, %v3181
      %3262 = vst.msk [vmem:[#allocation2 + $0x74] sm:$0xf] %vm3232, %v3183
      %3263 = vst.msk [vmem:[#allocation2 + $0x78] sm:$0xf] %vm3232, %v3185
      %3264 = vst.msk [vmem:[#allocation2 + $0x7c] sm:$0xf] %vm3232, %v3187
      %3265 = vst.msk [vmem:[#allocation2 + $0x80] sm:$0xf] %vm3232, %v3189
      %3266 = vst.msk [vmem:[#allocation2 + $0x84] sm:$0xf] %vm3232, %v3191
      %3267 = vst.msk [vmem:[#allocation2 + $0x88] sm:$0xf] %vm3232, %v3193
      %3268 = vst.msk [vmem:[#allocation2 + $0x8c] sm:$0xf] %vm3232, %v3195
      %v3269 = vld [vmem:[%s206 + $0x10] sm:$0x8]
      %v3270 = vld [vmem:[%s206 + $0x14] sm:$0xf]
      %v3271 = vld [vmem:[%s206 + $0x18] sm:$0xf]
      %v3272 = vld [vmem:[%s206 + $0x1c] sm:$0xf]
      %v3273 = vld [vmem:[%s206 + $0x20] sm:$0xf]
      %v3274 = vld [vmem:[%s206 + $0x24] sm:$0xf]
      %v3275 = vld [vmem:[%s206 + $0x28] sm:$0xf]
      %v3276 = vld [vmem:[%s206 + $0x2c] sm:$0xf]
      %v3277 = vld [vmem:[%s206 + $0x30] sm:$0xf]
      %v3278 = vld [vmem:[%s206 + $0x34] sm:$0xf]
      %v3279 = vld [vmem:[%s206 + $0x38] sm:$0xf]
      %v3280 = vld [vmem:[%s206 + $0x3c] sm:$0xf]
      %v3281 = vld [vmem:[%s206 + $0x40] sm:$0xf]
      %v3282 = vld [vmem:[%s206 + $0x44] sm:$0xf]
      %v3283 = vld [vmem:[%s206 + $0x48] sm:$0xf]
      %v3284 = vld [vmem:[%s206 + $0x4c] sm:$0xf]
      %v3285 = vld [vmem:[%s206 + $0x50] sm:$0xf]
      %v3286 = vld [vmem:[%s206 + $0x54] sm:$0xf]
      %v3287 = vld [vmem:[%s206 + $0x58] sm:$0xf]
      %v3288 = vld [vmem:[%s206 + $0x5c] sm:$0xf]
      %v3289 = vld [vmem:[%s206 + $0x60] sm:$0xf]
      %v3290 = vld [vmem:[%s206 + $0x64] sm:$0xf]
      %v3291 = vld [vmem:[%s206 + $0x68] sm:$0xf]
      %v3292 = vld [vmem:[%s206 + $0x6c] sm:$0xf]
      %v3293 = vld [vmem:[%s206 + $0x70] sm:$0xf]
      %v3294 = vld [vmem:[%s206 + $0x74] sm:$0xf]
      %v3295 = vld [vmem:[%s206 + $0x78] sm:$0xf]
      %v3296 = vld [vmem:[%s206 + $0x7c] sm:$0xf]
      %v3297 = vld [vmem:[%s206 + $0x80] sm:$0xf]
      %v3298 = vld [vmem:[%s206 + $0x84] sm:$0xf]
      %v3299 = vld [vmem:[%s206 + $0x88] sm:$0xf]
      %v3300 = vld [vmem:[%s206 + $0x8c] sm:$0xf]
      %v3301 = vld [vmem:[%s206 + $0x90] sm:$0xf]
      %v3302 = vld [vmem:[%s206 + $0x94] sm:$0xf]
      %v3303 = vld [vmem:[%s206 + $0x98] sm:$0xf]
      %v3304 = vld [vmem:[%s206 + $0x9c] sm:$0xf]
      %v3305 = vld [vmem:[%s206 + $0xa0] sm:$0x7]
      %vm3343 = vcmask 1040384
      %vm3344 = vcmask 1044484
      %vm3345 = vmor %vm3343, %vm3344
      %v3346 = vrot.slane %v3269, 7
      %v3347 = vrot.slane %v3346, 4
      %v3348 = vrot.slane %v3270, 7
      %v3349 = vsel %vm3345, %v3347, %v3348
      %v3350 = vrot.slane %v3348, 4
      %v3351 = vrot.slane %v3271, 7
      %v3352 = vsel %vm3345, %v3350, %v3351
      %v3353 = vrot.slane %v3351, 4
      %v3354 = vrot.slane %v3272, 7
      %v3355 = vsel %vm3345, %v3353, %v3354
      %v3356 = vrot.slane %v3354, 4
      %v3357 = vrot.slane %v3273, 7
      %v3358 = vsel %vm3345, %v3356, %v3357
      %v3359 = vrot.slane %v3357, 4
      %v3360 = vrot.slane %v3274, 7
      %v3361 = vsel %vm3345, %v3359, %v3360
      %v3362 = vrot.slane %v3360, 4
      %v3363 = vrot.slane %v3275, 7
      %v3364 = vsel %vm3345, %v3362, %v3363
      %v3365 = vrot.slane %v3363, 4
      %v3366 = vrot.slane %v3276, 7
      %v3367 = vsel %vm3345, %v3365, %v3366
      %v3368 = vrot.slane %v3366, 4
      %v3369 = vrot.slane %v3277, 7
      %v3370 = vsel %vm3345, %v3368, %v3369
      %v3371 = vrot.slane %v3369, 4
      %v3372 = vrot.slane %v3278, 7
      %v3373 = vsel %vm3345, %v3371, %v3372
      %v3374 = vrot.slane %v3372, 4
      %v3375 = vrot.slane %v3279, 7
      %v3376 = vsel %vm3345, %v3374, %v3375
      %v3377 = vrot.slane %v3375, 4
      %v3378 = vrot.slane %v3280, 7
      %v3379 = vsel %vm3345, %v3377, %v3378
      %v3380 = vrot.slane %v3378, 4
      %v3381 = vrot.slane %v3281, 7
      %v3382 = vsel %vm3345, %v3380, %v3381
      %v3383 = vrot.slane %v3381, 4
      %v3384 = vrot.slane %v3282, 7
      %v3385 = vsel %vm3345, %v3383, %v3384
      %v3386 = vrot.slane %v3384, 4
      %v3387 = vrot.slane %v3283, 7
      %v3388 = vsel %vm3345, %v3386, %v3387
      %v3389 = vrot.slane %v3387, 4
      %v3390 = vrot.slane %v3284, 7
      %v3391 = vsel %vm3345, %v3389, %v3390
      %v3392 = vrot.slane %v3390, 4
      %v3393 = vrot.slane %v3285, 7
      %v3394 = vsel %vm3345, %v3392, %v3393
      %v3395 = vrot.slane %v3393, 4
      %v3396 = vrot.slane %v3286, 7
      %v3397 = vsel %vm3345, %v3395, %v3396
      %v3398 = vrot.slane %v3396, 4
      %v3399 = vrot.slane %v3287, 7
      %v3400 = vsel %vm3345, %v3398, %v3399
      %v3401 = vrot.slane %v3399, 4
      %v3402 = vrot.slane %v3288, 7
      %v3403 = vsel %vm3345, %v3401, %v3402
      %v3404 = vrot.slane %v3402, 4
      %v3405 = vrot.slane %v3289, 7
      %v3406 = vsel %vm3345, %v3404, %v3405
      %v3407 = vrot.slane %v3405, 4
      %v3408 = vrot.slane %v3290, 7
      %v3409 = vsel %vm3345, %v3407, %v3408
      %v3410 = vrot.slane %v3408, 4
      %v3411 = vrot.slane %v3291, 7
      %v3412 = vsel %vm3345, %v3410, %v3411
      %v3413 = vrot.slane %v3411, 4
      %v3414 = vrot.slane %v3292, 7
      %v3415 = vsel %vm3345, %v3413, %v3414
      %v3416 = vrot.slane %v3414, 4
      %v3417 = vrot.slane %v3293, 7
      %v3418 = vsel %vm3345, %v3416, %v3417
      %v3419 = vrot.slane %v3417, 4
      %v3420 = vrot.slane %v3294, 7
      %v3421 = vsel %vm3345, %v3419, %v3420
      %v3422 = vrot.slane %v3420, 4
      %v3423 = vrot.slane %v3295, 7
      %v3424 = vsel %vm3345, %v3422, %v3423
      %v3425 = vrot.slane %v3423, 4
      %v3426 = vrot.slane %v3296, 7
      %v3427 = vsel %vm3345, %v3425, %v3426
      %v3428 = vrot.slane %v3426, 4
      %v3429 = vrot.slane %v3297, 7
      %v3430 = vsel %vm3345, %v3428, %v3429
      %v3431 = vrot.slane %v3429, 4
      %v3432 = vrot.slane %v3298, 7
      %v3433 = vsel %vm3345, %v3431, %v3432
      %v3434 = vrot.slane %v3432, 4
      %v3435 = vrot.slane %v3299, 7
      %v3436 = vsel %vm3345, %v3434, %v3435
      %v3437 = vrot.slane %v3435, 4
      %v3438 = vrot.slane %v3300, 7
      %v3439 = vsel %vm3345, %v3437, %v3438
      %v3440 = vrot.slane %v3438, 4
      %v3441 = vrot.slane %v3301, 7
      %v3442 = vsel %vm3345, %v3440, %v3441
      %v3443 = vrot.slane %v3441, 4
      %v3444 = vrot.slane %v3302, 7
      %v3445 = vsel %vm3345, %v3443, %v3444
      %v3446 = vrot.slane %v3444, 4
      %v3447 = vrot.slane %v3303, 7
      %v3448 = vsel %vm3345, %v3446, %v3447
      %v3449 = vrot.slane %v3447, 4
      %v3450 = vrot.slane %v3304, 7
      %v3451 = vsel %vm3345, %v3449, %v3450
      %v3452 = vrot.slane %v3450, 4
      %v3453 = vrot.slane %v3305, 7
      %v3454 = vsel %vm3345, %v3452, %v3453
      %3455 = vrot.lane.b32.xlu0 %v3349, 32
      %v3456 = vpop.permute.xlu0 %3455
      %3457 = vrot.lane.b32.xlu0 %v3352, 32
      %v3458 = vpop.permute.xlu0 %3457
      %3459 = vrot.lane.b32.xlu0 %v3355, 32
      %v3460 = vpop.permute.xlu0 %3459
      %3461 = vrot.lane.b32.xlu0 %v3358, 32
      %v3462 = vpop.permute.xlu0 %3461
      %3463 = vrot.lane.b32.xlu0 %v3361, 32
      %v3464 = vpop.permute.xlu0 %3463
      %3465 = vrot.lane.b32.xlu0 %v3364, 32
      %v3466 = vpop.permute.xlu0 %3465
      %3467 = vrot.lane.b32.xlu0 %v3367, 32
      %v3468 = vpop.permute.xlu0 %3467
      %3469 = vrot.lane.b32.xlu0 %v3370, 32
      %v3470 = vpop.permute.xlu0 %3469
      %3471 = vrot.lane.b32.xlu0 %v3373, 32
      %v3472 = vpop.permute.xlu0 %3471
      %3473 = vrot.lane.b32.xlu0 %v3376, 32
      %v3474 = vpop.permute.xlu0 %3473
      %3475 = vrot.lane.b32.xlu0 %v3379, 32
      %v3476 = vpop.permute.xlu0 %3475
      %3477 = vrot.lane.b32.xlu0 %v3382, 32
      %v3478 = vpop.permute.xlu0 %3477
      %3479 = vrot.lane.b32.xlu0 %v3385, 32
      %v3480 = vpop.permute.xlu0 %3479
      %3481 = vrot.lane.b32.xlu0 %v3388, 32
      %v3482 = vpop.permute.xlu0 %3481
      %3483 = vrot.lane.b32.xlu0 %v3391, 32
      %v3484 = vpop.permute.xlu0 %3483
      %3485 = vrot.lane.b32.xlu0 %v3394, 32
      %v3486 = vpop.permute.xlu0 %3485
      %3487 = vrot.lane.b32.xlu0 %v3397, 32
      %v3488 = vpop.permute.xlu0 %3487
      %3489 = vrot.lane.b32.xlu0 %v3400, 32
      %v3490 = vpop.permute.xlu0 %3489
      %3491 = vrot.lane.b32.xlu0 %v3403, 32
      %v3492 = vpop.permute.xlu0 %3491
      %3493 = vrot.lane.b32.xlu0 %v3406, 32
      %v3494 = vpop.permute.xlu0 %3493
      %3495 = vrot.lane.b32.xlu0 %v3409, 32
      %v3496 = vpop.permute.xlu0 %3495
      %3497 = vrot.lane.b32.xlu0 %v3412, 32
      %v3498 = vpop.permute.xlu0 %3497
      %3499 = vrot.lane.b32.xlu0 %v3415, 32
      %v3500 = vpop.permute.xlu0 %3499
      %3501 = vrot.lane.b32.xlu0 %v3418, 32
      %v3502 = vpop.permute.xlu0 %3501
      %3503 = vrot.lane.b32.xlu0 %v3421, 32
      %v3504 = vpop.permute.xlu0 %3503
      %3505 = vrot.lane.b32.xlu0 %v3424, 32
      %v3506 = vpop.permute.xlu0 %3505
      %3507 = vrot.lane.b32.xlu0 %v3427, 32
      %v3508 = vpop.permute.xlu0 %3507
      %3509 = vrot.lane.b32.xlu0 %v3430, 32
      %v3510 = vpop.permute.xlu0 %3509
      %3511 = vrot.lane.b32.xlu0 %v3433, 32
      %v3512 = vpop.permute.xlu0 %3511
      %3513 = vrot.lane.b32.xlu0 %v3436, 32
      %v3514 = vpop.permute.xlu0 %3513
      %3515 = vrot.lane.b32.xlu0 %v3439, 32
      %v3516 = vpop.permute.xlu0 %3515
      %3517 = vrot.lane.b32.xlu0 %v3442, 32
      %v3518 = vpop.permute.xlu0 %3517
      %3519 = vrot.lane.b32.xlu0 %v3445, 32
      %v3520 = vpop.permute.xlu0 %3519
      %3521 = vrot.lane.b32.xlu0 %v3448, 32
      %v3522 = vpop.permute.xlu0 %3521
      %3523 = vrot.lane.b32.xlu0 %v3451, 32
      %v3524 = vpop.permute.xlu0 %3523
      %3525 = vrot.lane.b32.xlu0 %v3454, 32
      %v3526 = vpop.permute.xlu0 %3525
      %vm3563 = vcmask 290048
      %3564 = vst.msk [vmem:[#allocation2] sm:$0xf] %vm3563, %v3456
      %3565 = vst.msk [vmem:[#allocation2 + $0x4] sm:$0xf] %vm3563, %v3458
      %3566 = vst.msk [vmem:[#allocation2 + $0x8] sm:$0xf] %vm3563, %v3460
      %3567 = vst.msk [vmem:[#allocation2 + $0xc] sm:$0xf] %vm3563, %v3462
      %3568 = vst.msk [vmem:[#allocation2 + $0x10] sm:$0xf] %vm3563, %v3464
      %3569 = vst.msk [vmem:[#allocation2 + $0x14] sm:$0xf] %vm3563, %v3466
      %3570 = vst.msk [vmem:[#allocation2 + $0x18] sm:$0xf] %vm3563, %v3468
      %3571 = vst.msk [vmem:[#allocation2 + $0x1c] sm:$0xf] %vm3563, %v3470
      %3572 = vst.msk [vmem:[#allocation2 + $0x20] sm:$0xf] %vm3563, %v3472
      %3573 = vst.msk [vmem:[#allocation2 + $0x24] sm:$0xf] %vm3563, %v3474
      %3574 = vst.msk [vmem:[#allocation2 + $0x28] sm:$0xf] %vm3563, %v3476
      %3575 = vst.msk [vmem:[#allocation2 + $0x2c] sm:$0xf] %vm3563, %v3478
      %3576 = vst.msk [vmem:[#allocation2 + $0x30] sm:$0xf] %vm3563, %v3480
      %3577 = vst.msk [vmem:[#allocation2 + $0x34] sm:$0xf] %vm3563, %v3482
      %3578 = vst.msk [vmem:[#allocation2 + $0x38] sm:$0xf] %vm3563, %v3484
      %3579 = vst.msk [vmem:[#allocation2 + $0x3c] sm:$0xf] %vm3563, %v3486
      %3580 = vst.msk [vmem:[#allocation2 + $0x40] sm:$0xf] %vm3563, %v3488
      %3581 = vst.msk [vmem:[#allocation2 + $0x44] sm:$0xf] %vm3563, %v3490
      %3582 = vst.msk [vmem:[#allocation2 + $0x48] sm:$0xf] %vm3563, %v3492
      %3583 = vst.msk [vmem:[#allocation2 + $0x4c] sm:$0xf] %vm3563, %v3494
      %3584 = vst.msk [vmem:[#allocation2 + $0x50] sm:$0xf] %vm3563, %v3496
      %3585 = vst.msk [vmem:[#allocation2 + $0x54] sm:$0xf] %vm3563, %v3498
      %3586 = vst.msk [vmem:[#allocation2 + $0x58] sm:$0xf] %vm3563, %v3500
      %3587 = vst.msk [vmem:[#allocation2 + $0x5c] sm:$0xf] %vm3563, %v3502
      %3588 = vst.msk [vmem:[#allocation2 + $0x60] sm:$0xf] %vm3563, %v3504
      %3589 = vst.msk [vmem:[#allocation2 + $0x64] sm:$0xf] %vm3563, %v3506
      %3590 = vst.msk [vmem:[#allocation2 + $0x68] sm:$0xf] %vm3563, %v3508
      %3591 = vst.msk [vmem:[#allocation2 + $0x6c] sm:$0xf] %vm3563, %v3510
      %3592 = vst.msk [vmem:[#allocation2 + $0x70] sm:$0xf] %vm3563, %v3512
      %3593 = vst.msk [vmem:[#allocation2 + $0x74] sm:$0xf] %vm3563, %v3514
      %3594 = vst.msk [vmem:[#allocation2 + $0x78] sm:$0xf] %vm3563, %v3516
      %3595 = vst.msk [vmem:[#allocation2 + $0x7c] sm:$0xf] %vm3563, %v3518
      %3596 = vst.msk [vmem:[#allocation2 + $0x80] sm:$0xf] %vm3563, %v3520
      %3597 = vst.msk [vmem:[#allocation2 + $0x84] sm:$0xf] %vm3563, %v3522
      %3598 = vst.msk [vmem:[#allocation2 + $0x88] sm:$0xf] %vm3563, %v3524
      %3599 = vst.msk [vmem:[#allocation2 + $0x8c] sm:$0xf] %vm3563, %v3526
      %v3600 = vld [vmem:[#allocation2] sm:$0xf]
      %v3601 = vld [vmem:[#allocation2 + $0x4] sm:$0xf]
      %v3602 = vld [vmem:[#allocation2 + $0x8] sm:$0xf]
      %v3603 = vld [vmem:[#allocation2 + $0xc] sm:$0xf]
      %v3604 = vld [vmem:[#allocation2 + $0x10] sm:$0xf]
      %v3605 = vld [vmem:[#allocation2 + $0x14] sm:$0xf]
      %v3606 = vld [vmem:[#allocation2 + $0x18] sm:$0xf]
      %v3607 = vld [vmem:[#allocation2 + $0x1c] sm:$0xf]
      %v3608 = vld [vmem:[#allocation2 + $0x20] sm:$0xf]
      %v3609 = vld [vmem:[#allocation2 + $0x24] sm:$0xf]
      %v3610 = vld [vmem:[#allocation2 + $0x28] sm:$0xf]
      %v3611 = vld [vmem:[#allocation2 + $0x2c] sm:$0xf]
      %v3612 = vld [vmem:[#allocation2 + $0x30] sm:$0xf]
      %v3613 = vld [vmem:[#allocation2 + $0x34] sm:$0xf]
      %v3614 = vld [vmem:[#allocation2 + $0x38] sm:$0xf]
      %v3615 = vld [vmem:[#allocation2 + $0x3c] sm:$0xf]
      %v3616 = vld [vmem:[#allocation2 + $0x40] sm:$0xf]
      %v3617 = vld [vmem:[#allocation2 + $0x44] sm:$0xf]
      %v3618 = vld [vmem:[#allocation2 + $0x48] sm:$0xf]
      %v3619 = vld [vmem:[#allocation2 + $0x4c] sm:$0xf]
      %v3620 = vld [vmem:[#allocation2 + $0x50] sm:$0xf]
      %v3621 = vld [vmem:[#allocation2 + $0x54] sm:$0xf]
      %v3622 = vld [vmem:[#allocation2 + $0x58] sm:$0xf]
      %v3623 = vld [vmem:[#allocation2 + $0x5c] sm:$0xf]
      %v3624 = vld [vmem:[#allocation2 + $0x60] sm:$0xf]
      %v3625 = vld [vmem:[#allocation2 + $0x64] sm:$0xf]
      %v3626 = vld [vmem:[#allocation2 + $0x68] sm:$0xf]
      %v3627 = vld [vmem:[#allocation2 + $0x6c] sm:$0xf]
      %v3628 = vld [vmem:[#allocation2 + $0x70] sm:$0xf]
      %v3629 = vld [vmem:[#allocation2 + $0x74] sm:$0xf]
      %v3630 = vld [vmem:[#allocation2 + $0x78] sm:$0xf]
      %v3631 = vld [vmem:[#allocation2 + $0x7c] sm:$0xf]
      %v3632 = vld [vmem:[#allocation2 + $0x80] sm:$0xf]
      %v3633 = vld [vmem:[#allocation2 + $0x84] sm:$0xf]
      %v3634 = vld [vmem:[#allocation2 + $0x88] sm:$0xf]
      %v3635 = vld [vmem:[#allocation2 + $0x8c] sm:$0xf]
      %v3636 = vld [vmem:[%s210] sm:$0xf]
      %v3637 = vld [vmem:[%s210 + $0x4] sm:$0xf]
      %v3638 = vld [vmem:[%s210 + $0x8] sm:$0xf]
      %v3639 = vld [vmem:[%s210 + $0xc] sm:$0xf]
      %v3640 = vld [vmem:[%s210 + $0x10] sm:$0x3]
      %v3641 = vld [vmem:[%s213] sm:$0x1]
      %v3643 = vlaneseq
      %v3644 = vshrl.u32 %v3643, 7
      %v3645 = vsub.s32 0, %v3644
      %v3646 = vrot.slane %v3641, %v3645
      %v3684 = vunpack.c.l.b16 %v3600
      %v3685 = vunpack.c.l.b16 %v3601
      %v3686 = vunpack.c.l.b16 %v3602
      %v3687 = vunpack.c.l.b16 %v3603
      %v3688 = vunpack.c.l.b16 %v3604
      %v3689 = vunpack.c.l.b16 %v3605
      %v3690 = vunpack.c.l.b16 %v3606
      %v3691 = vunpack.c.l.b16 %v3607
      %v3692 = vunpack.c.l.b16 %v3608
      %v3693 = vunpack.c.l.b16 %v3609
      %v3694 = vunpack.c.l.b16 %v3610
      %v3695 = vunpack.c.l.b16 %v3611
      %v3696 = vunpack.c.l.b16 %v3612
      %v3697 = vunpack.c.l.b16 %v3613
      %v3698 = vunpack.c.l.b16 %v3614
      %v3699 = vunpack.c.l.b16 %v3615
      %v3700 = vunpack.c.l.b16 %v3616
      %v3701 = vunpack.c.l.b16 %v3617
      %v3702 = vunpack.c.l.b16 %v3618
      %v3703 = vunpack.c.l.b16 %v3619
      %v3704 = vunpack.c.l.b16 %v3620
      %v3705 = vunpack.c.l.b16 %v3621
      %v3706 = vunpack.c.l.b16 %v3622
      %v3707 = vunpack.c.l.b16 %v3623
      %v3708 = vunpack.c.l.b16 %v3624
      %v3709 = vunpack.c.l.b16 %v3625
      %v3710 = vunpack.c.l.b16 %v3626
      %v3711 = vunpack.c.l.b16 %v3627
      %v3712 = vunpack.c.l.b16 %v3628
      %v3713 = vunpack.c.l.b16 %v3629
      %v3714 = vunpack.c.l.b16 %v3630
      %v3715 = vunpack.c.l.b16 %v3631
      %v3716 = vunpack.c.l.b16 %v3632
      %v3717 = vunpack.c.l.b16 %v3633
      %v3718 = vunpack.c.l.b16 %v3634
      %v3719 = vunpack.c.l.b16 %v3635
      %v3720 = vpack.c.b16 %v3685, %v3684
      %v3721 = vpack.c.b16 %v3687, %v3686
      %v3722 = vpack.c.b16 %v3689, %v3688
      %v3723 = vpack.c.b16 %v3691, %v3690
      %v3724 = vpack.c.b16 %v3693, %v3692
      %v3725 = vpack.c.b16 %v3695, %v3694
      %v3726 = vpack.c.b16 %v3697, %v3696
      %v3727 = vpack.c.b16 %v3699, %v3698
      %v3728 = vpack.c.b16 %v3701, %v3700
      %v3729 = vpack.c.b16 %v3703, %v3702
      %v3730 = vpack.c.b16 %v3705, %v3704
      %v3731 = vpack.c.b16 %v3707, %v3706
      %v3732 = vpack.c.b16 %v3709, %v3708
      %v3733 = vpack.c.b16 %v3711, %v3710
      %v3734 = vpack.c.b16 %v3713, %v3712
      %v3735 = vpack.c.b16 %v3715, %v3714
      %v3736 = vpack.c.b16 %v3717, %v3716
      %v3737 = vpack.c.b16 %v3719, %v3718
      %v3743 = vunpack.c.l.b16 %v3636
      %v3744 = vunpack.c.l.b16 %v3637
      %v3745 = vunpack.c.l.b16 %v3638
      %v3746 = vunpack.c.l.b16 %v3639
      %v3747 = vunpack.c.l.b16 %v3640
      %v3748 = vpack.c.b16 %v3744, %v3743
      %v3749 = vpack.c.b16 %v3746, %v3745
      %v3750 = vpack.c.b16 %v3747, %v3747
      %vm3753 = vcmask 293888
      %v3755 = vsel %vm3753, %v3720, 0
      %v3758 = vsel %vm3753, %v3721, 0
      %v3761 = vsel %vm3753, %v3722, 0
      %v3764 = vsel %vm3753, %v3723, 0
      %v3767 = vsel %vm3753, %v3724, 0
      %v3770 = vsel %vm3753, %v3725, 0
      %v3773 = vsel %vm3753, %v3726, 0
      %v3776 = vsel %vm3753, %v3727, 0
      %v3779 = vsel %vm3753, %v3728, 0
      %v3782 = vsel %vm3753, %v3729, 0
      %v3785 = vsel %vm3753, %v3730, 0
      %v3788 = vsel %vm3753, %v3731, 0
      %v3791 = vsel %vm3753, %v3732, 0
      %v3794 = vsel %vm3753, %v3733, 0
      %v3797 = vsel %vm3753, %v3734, 0
      %v3800 = vsel %vm3753, %v3735, 0
      %v3803 = vsel %vm3753, %v3736, 0
      %v3806 = vsel %vm3753, %v3737, 0
      %vm3808 = vcmask 1041408
      %v3810 = vsel %vm3808, %v3750, 0
      %3812 = vmatprep.subr.bf16.mxu0 0
      %3813 = vmatpush1.bf16.msra.mxu0 0
      %3814 = vmatprep.subr.bf16.mxu0 0
      %3815 = vmatpush1.bf16.msra.mxu0 0
      %3816 = vmatprep.subr.bf16.mxu0 0
      %3817 = vmatpush1.bf16.msra.mxu0 0
      %3818 = vmatprep.subr.bf16.mxu0 0
      %3819 = vmatpush1.bf16.msra.mxu0 0
      %3820 = vmatprep.subr.bf16.mxu0 0
      %3821 = vmatpush1.bf16.msra.mxu0 0
      %3822 = vmatprep.subr.bf16.mxu0 0
      %3823 = vmatpush1.bf16.msra.mxu0 %v3810
      %3824 = vmatprep.subr.bf16.mxu0 0
      %3825 = vmatpush1.bf16.msra.mxu0 %v3749
      %3826 = vmatprep.subr.bf16.mxu0 0
      %3827 = vmatpush1.bf16.msra.mxu0 %v3748
      %3828 = vmatprep.subr.bf16.mxu0 0
      %3829 = vmatpush2.bf16.msra.mxu0 0
      %3830 = vmatprep.subr.bf16.mxu0 0
      %3831 = vmatpush2.bf16.msra.mxu0 0
      %3832 = vmatprep.subr.bf16.mxu0 0
      %3833 = vmatpush2.bf16.msra.mxu0 0
      %3834 = vmatprep.subr.bf16.mxu0 0
      %3835 = vmatpush2.bf16.msra.mxu0 0
      %3836 = vmatprep.subr.bf16.mxu0 0
      %3837 = vmatpush2.bf16.msra.mxu0 0
      %3838 = vmatprep.subr.bf16.mxu0 0
      %3839 = vmatpush2.bf16.msra.mxu0 0
      %3840 = vmatprep.subr.bf16.mxu0 0
      %3841 = vmatpush2.bf16.msra.mxu0 0
      %3842 = vmatprep.subr.bf16.mxu0 0
      %3843 = vmatpush2.bf16.msra.mxu0 0
      %3844 = vmatprep.mubr.bf16.mxu0 0
      %3845 = vmatmul.mubr.bf16.gmra.mxu0 %v3755
      %v3846 = vpop.f32.mrf.mxu0
      %v3847 = vadd.f32 %v3646, %v3846
      %v3848 = vpop.f32.mrf.mxu0
      %v3849 = vpop.f32.mrf.mxu0
      %v3850 = vadd.f32 %v3646, %v3849
      %v3851 = vpop.f32.mrf.mxu0
      %3852 = vmatprep.mubr.bf16.mxu0 0
      %3853 = vmatmul.mubr.bf16.gmra.mxu0 %v3758
      %v3854 = vpop.f32.mrf.mxu0
      %v3855 = vadd.f32 %v3646, %v3854
      %v3856 = vpop.f32.mrf.mxu0
      %v3857 = vpop.f32.mrf.mxu0
      %v3858 = vadd.f32 %v3646, %v3857
      %v3859 = vpop.f32.mrf.mxu0
      %3860 = vmatprep.mubr.bf16.mxu0 0
      %3861 = vmatmul.mubr.bf16.gmra.mxu0 %v3761
      %v3862 = vpop.f32.mrf.mxu0
      %v3863 = vadd.f32 %v3646, %v3862
      %v3864 = vpop.f32.mrf.mxu0
      %v3865 = vpop.f32.mrf.mxu0
      %v3866 = vadd.f32 %v3646, %v3865
      %v3867 = vpop.f32.mrf.mxu0
      %3868 = vmatprep.mubr.bf16.mxu0 0
      %3869 = vmatmul.mubr.bf16.gmra.mxu0 %v3764
      %v3870 = vpop.f32.mrf.mxu0
      %v3871 = vadd.f32 %v3646, %v3870
      %v3872 = vpop.f32.mrf.mxu0
      %v3873 = vpop.f32.mrf.mxu0
      %v3874 = vadd.f32 %v3646, %v3873
      %v3875 = vpop.f32.mrf.mxu0
      %3876 = vmatprep.mubr.bf16.mxu0 0
      %3877 = vmatmul.mubr.bf16.gmra.mxu0 %v3767
      %v3878 = vpop.f32.mrf.mxu0
      %v3879 = vadd.f32 %v3646, %v3878
      %v3880 = vpop.f32.mrf.mxu0
      %v3881 = vpop.f32.mrf.mxu0
      %v3882 = vadd.f32 %v3646, %v3881
      %v3883 = vpop.f32.mrf.mxu0
      %3884 = vmatprep.mubr.bf16.mxu0 0
      %3885 = vmatmul.mubr.bf16.gmra.mxu0 %v3770
      %v3886 = vpop.f32.mrf.mxu0
      %v3887 = vadd.f32 %v3646, %v3886
      %v3888 = vpop.f32.mrf.mxu0
      %v3889 = vpop.f32.mrf.mxu0
      %v3890 = vadd.f32 %v3646, %v3889
      %v3891 = vpop.f32.mrf.mxu0
      %3892 = vmatprep.mubr.bf16.mxu0 0
      %3893 = vmatmul.mubr.bf16.gmra.mxu0 %v3773
      %v3894 = vpop.f32.mrf.mxu0
      %v3895 = vadd.f32 %v3646, %v3894
      %v3896 = vpop.f32.mrf.mxu0
      %v3897 = vpop.f32.mrf.mxu0
      %v3898 = vadd.f32 %v3646, %v3897
      %v3899 = vpop.f32.mrf.mxu0
      %3900 = vmatprep.mubr.bf16.mxu0 0
      %3901 = vmatmul.mubr.bf16.gmra.mxu0 %v3776
      %v3902 = vpop.f32.mrf.mxu0
      %v3903 = vadd.f32 %v3646, %v3902
      %v3904 = vpop.f32.mrf.mxu0
      %v3905 = vpop.f32.mrf.mxu0
      %v3906 = vadd.f32 %v3646, %v3905
      %v3907 = vpop.f32.mrf.mxu0
      %3908 = vmatprep.mubr.bf16.mxu0 0
      %3909 = vmatmul.mubr.bf16.gmra.mxu0 %v3779
      %v3910 = vpop.f32.mrf.mxu0
      %v3911 = vadd.f32 %v3646, %v3910
      %v3912 = vpop.f32.mrf.mxu0
      %v3913 = vpop.f32.mrf.mxu0
      %v3914 = vadd.f32 %v3646, %v3913
      %v3915 = vpop.f32.mrf.mxu0
      %3916 = vmatprep.mubr.bf16.mxu0 0
      %3917 = vmatmul.mubr.bf16.gmra.mxu0 %v3782
      %v3918 = vpop.f32.mrf.mxu0
      %v3919 = vadd.f32 %v3646, %v3918
      %v3920 = vpop.f32.mrf.mxu0
      %v3921 = vpop.f32.mrf.mxu0
      %v3922 = vadd.f32 %v3646, %v3921
      %v3923 = vpop.f32.mrf.mxu0
      %3924 = vmatprep.mubr.bf16.mxu0 0
      %3925 = vmatmul.mubr.bf16.gmra.mxu0 %v3785
      %v3926 = vpop.f32.mrf.mxu0
      %v3927 = vadd.f32 %v3646, %v3926
      %v3928 = vpop.f32.mrf.mxu0
      %v3929 = vpop.f32.mrf.mxu0
      %v3930 = vadd.f32 %v3646, %v3929
      %v3931 = vpop.f32.mrf.mxu0
      %3932 = vmatprep.mubr.bf16.mxu0 0
      %3933 = vmatmul.mubr.bf16.gmra.mxu0 %v3788
      %v3934 = vpop.f32.mrf.mxu0
      %v3935 = vadd.f32 %v3646, %v3934
      %v3936 = vpop.f32.mrf.mxu0
      %v3937 = vpop.f32.mrf.mxu0
      %v3938 = vadd.f32 %v3646, %v3937
      %v3939 = vpop.f32.mrf.mxu0
      %3940 = vmatprep.mubr.bf16.mxu0 0
      %3941 = vmatmul.mubr.bf16.gmra.mxu0 %v3791
      %v3942 = vpop.f32.mrf.mxu0
      %v3943 = vadd.f32 %v3646, %v3942
      %v3944 = vpop.f32.mrf.mxu0
      %v3945 = vpop.f32.mrf.mxu0
      %v3946 = vadd.f32 %v3646, %v3945
      %v3947 = vpop.f32.mrf.mxu0
      %3948 = vmatprep.mubr.bf16.mxu0 0
      %3949 = vmatmul.mubr.bf16.gmra.mxu0 %v3794
      %v3950 = vpop.f32.mrf.mxu0
      %v3951 = vadd.f32 %v3646, %v3950
      %v3952 = vpop.f32.mrf.mxu0
      %v3953 = vpop.f32.mrf.mxu0
      %v3954 = vadd.f32 %v3646, %v3953
      %v3955 = vpop.f32.mrf.mxu0
      %3956 = vmatprep.mubr.bf16.mxu0 0
      %3957 = vmatmul.mubr.bf16.gmra.mxu0 %v3797
      %v3958 = vpop.f32.mrf.mxu0
      %v3959 = vadd.f32 %v3646, %v3958
      %v3960 = vpop.f32.mrf.mxu0
      %v3961 = vpop.f32.mrf.mxu0
      %v3962 = vadd.f32 %v3646, %v3961
      %v3963 = vpop.f32.mrf.mxu0
      %3964 = vmatprep.mubr.bf16.mxu0 0
      %3965 = vmatmul.mubr.bf16.gmra.mxu0 %v3800
      %v3966 = vpop.f32.mrf.mxu0
      %v3967 = vadd.f32 %v3646, %v3966
      %v3968 = vpop.f32.mrf.mxu0
      %v3969 = vpop.f32.mrf.mxu0
      %v3970 = vadd.f32 %v3646, %v3969
      %v3971 = vpop.f32.mrf.mxu0
      %3972 = vmatprep.mubr.bf16.mxu0 0
      %3973 = vmatmul.mubr.bf16.gmra.mxu0 %v3803
      %v3974 = vpop.f32.mrf.mxu0
      %v3975 = vadd.f32 %v3646, %v3974
      %v3976 = vpop.f32.mrf.mxu0
      %v3977 = vpop.f32.mrf.mxu0
      %v3978 = vadd.f32 %v3646, %v3977
      %v3979 = vpop.f32.mrf.mxu0
      %3980 = vmatprep.mubr.bf16.mxu0 0
      %3981 = vmatmul.mubr.bf16.gmra.mxu0 %v3806
      %v3982 = vpop.f32.mrf.mxu0
      %v3983 = vadd.f32 %v3646, %v3982
      %v3984 = vpop.f32.mrf.mxu0
      %v3985 = vpop.f32.mrf.mxu0
      %v3986 = vadd.f32 %v3646, %v3985
      %v3987 = vpop.f32.mrf.mxu0
      %3988 = vdwg.mxu0
      %v3989 = vmax.f32 %v3847, 0.0
      %v3990 = vmax.f32 %v3850, 0.0
      %v3991 = vmax.f32 %v3855, 0.0
      %v3992 = vmax.f32 %v3858, 0.0
      %v3993 = vmax.f32 %v3863, 0.0
      %v3994 = vmax.f32 %v3866, 0.0
      %v3995 = vmax.f32 %v3871, 0.0
      %v3996 = vmax.f32 %v3874, 0.0
      %v3997 = vmax.f32 %v3879, 0.0
      %v3998 = vmax.f32 %v3882, 0.0
      %v3999 = vmax.f32 %v3887, 0.0
      %v4000 = vmax.f32 %v3890, 0.0
      %v4001 = vmax.f32 %v3895, 0.0
      %v4002 = vmax.f32 %v3898, 0.0
      %v4003 = vmax.f32 %v3903, 0.0
      %v4004 = vmax.f32 %v3906, 0.0
      %v4005 = vmax.f32 %v3911, 0.0
      %v4006 = vmax.f32 %v3914, 0.0
      %v4007 = vmax.f32 %v3919, 0.0
      %v4008 = vmax.f32 %v3922, 0.0
      %v4009 = vmax.f32 %v3927, 0.0
      %v4010 = vmax.f32 %v3930, 0.0
      %v4011 = vmax.f32 %v3935, 0.0
      %v4012 = vmax.f32 %v3938, 0.0
      %v4013 = vmax.f32 %v3943, 0.0
      %v4014 = vmax.f32 %v3946, 0.0
      %v4015 = vmax.f32 %v3951, 0.0
      %v4016 = vmax.f32 %v3954, 0.0
      %v4017 = vmax.f32 %v3959, 0.0
      %v4018 = vmax.f32 %v3962, 0.0
      %v4019 = vmax.f32 %v3967, 0.0
      %v4020 = vmax.f32 %v3970, 0.0
      %v4021 = vmax.f32 %v3975, 0.0
      %v4022 = vmax.f32 %v3978, 0.0
      %v4023 = vmax.f32 %v3983, 0.0
      %v4024 = vmax.f32 %v3986, 0.0
      %vm4025 = vcmask 64512
      %4026 = vst.msk [vmem:[%s221] sm:$0xff] %vm4025, %v3989
      %4027 = vst.msk [vmem:[%s221 + $0x8] sm:$0xff] %vm4025, %v3990
      %4028 = vst.msk [vmem:[%s221 + $0x10] sm:$0xff] %vm4025, %v3991
      %4029 = vst.msk [vmem:[%s221 + $0x18] sm:$0xff] %vm4025, %v3992
      %4030 = vst.msk [vmem:[%s221 + $0x20] sm:$0xff] %vm4025, %v3993
      %4031 = vst.msk [vmem:[%s221 + $0x28] sm:$0xff] %vm4025, %v3994
      %4032 = vst.msk [vmem:[%s221 + $0x30] sm:$0xff] %vm4025, %v3995
      %4033 = vst.msk [vmem:[%s221 + $0x38] sm:$0xff] %vm4025, %v3996
      %4034 = vst.msk [vmem:[%s221 + $0x40] sm:$0xff] %vm4025, %v3997
      %4035 = vst.msk [vmem:[%s221 + $0x48] sm:$0xff] %vm4025, %v3998
      %4036 = vst.msk [vmem:[%s221 + $0x50] sm:$0xff] %vm4025, %v3999
      %4037 = vst.msk [vmem:[%s221 + $0x58] sm:$0xff] %vm4025, %v4000
      %4038 = vst.msk [vmem:[%s221 + $0x60] sm:$0xff] %vm4025, %v4001
      %4039 = vst.msk [vmem:[%s221 + $0x68] sm:$0xff] %vm4025, %v4002
      %4040 = vst.msk [vmem:[%s221 + $0x70] sm:$0xff] %vm4025, %v4003
      %4041 = vst.msk [vmem:[%s221 + $0x78] sm:$0xff] %vm4025, %v4004
      %4042 = vst.msk [vmem:[%s221 + $0x80] sm:$0xff] %vm4025, %v4005
      %4043 = vst.msk [vmem:[%s221 + $0x88] sm:$0xff] %vm4025, %v4006
      %4044 = vst.msk [vmem:[%s221 + $0x90] sm:$0xff] %vm4025, %v4007
      %4045 = vst.msk [vmem:[%s221 + $0x98] sm:$0xff] %vm4025, %v4008
      %4046 = vst.msk [vmem:[%s221 + $0xa0] sm:$0xff] %vm4025, %v4009
      %4047 = vst.msk [vmem:[%s221 + $0xa8] sm:$0xff] %vm4025, %v4010
      %4048 = vst.msk [vmem:[%s221 + $0xb0] sm:$0xff] %vm4025, %v4011
      %4049 = vst.msk [vmem:[%s221 + $0xb8] sm:$0xff] %vm4025, %v4012
      %4050 = vst.msk [vmem:[%s221 + $0xc0] sm:$0xff] %vm4025, %v4013
      %4051 = vst.msk [vmem:[%s221 + $0xc8] sm:$0xff] %vm4025, %v4014
      %4052 = vst.msk [vmem:[%s221 + $0xd0] sm:$0xff] %vm4025, %v4015
      %4053 = vst.msk [vmem:[%s221 + $0xd8] sm:$0xff] %vm4025, %v4016
      %4054 = vst.msk [vmem:[%s221 + $0xe0] sm:$0xff] %vm4025, %v4017
      %4055 = vst.msk [vmem:[%s221 + $0xe8] sm:$0xff] %vm4025, %v4018
      %4056 = vst.msk [vmem:[%s221 + $0xf0] sm:$0xff] %vm4025, %v4019
      %4057 = vst.msk [vmem:[%s221 + $0xf8] sm:$0xff] %vm4025, %v4020
      %4058 = vst.msk [vmem:[%s221 + $0x100] sm:$0xff] %vm4025, %v4021
      %4059 = vst.msk [vmem:[%s221 + $0x108] sm:$0xff] %vm4025, %v4022
      %4060 = vst.msk [vmem:[%s221 + $0x110] sm:$0xff] %vm4025, %v4023
      %4061 = vst.msk [vmem:[%s221 + $0x118] sm:$0xff] %vm4025, %v4024
      %p4062 = scmp.lt.s32.totalorder %s18, 1
      %s4063 = scalar_select %p4062, %s18, 1
      %p4064 = scmp.lt.s32.totalorder %s19, 0
      %s4065 = scalar_select %p4064, %s19, 0
      %s4066 = smul.addr %s4063, 36
      %s4067 = sadd.s32 %s4065, %s4066
      %s4068 = smul.addr %s4067, 8
      %s4069 = scalar_lea.vmem %s3, %s4068
      // Predicated region
      $region33: #{tpu_custom_call.1} parent=31 // pred_check
        %p4070 = pneg %p124
      $region34: #{tpu_custom_call.1} parent=31 // pred_check_branch
        %4072 = sbr.rel (%p4070) target = $region36
      $region35: #{tpu_custom_call.1} parent=31 // pred_region
        _
      $region36: #{tpu_custom_call.1} parent=31 // pred_fallthru
        _
    $region32: #{tpu_custom_call.1} parent=5 // pred_fallthru
      _
    %p4073 = scmp.le.s32.totalorder 2, %s9
    // Predicated region
    $region37: #{tpu_custom_call.1} parent=5 // pred_check
      %p4074 = pneg %p4073
    $region38: #{tpu_custom_call.1} parent=5 // pred_check_branch
      %4076 = sbr.rel (%p4074) target = $region40
    $region39: #{tpu_custom_call.1} parent=5 // pred_region
      %s4077 = ssub.s32 %s9, 2
      // Predicated region
      $region41: #{tpu_custom_call.1} parent=39 // pred_check
        %p4078 = pneg %p130
      $region42: #{tpu_custom_call.1} parent=39 // pred_check_branch
        %4080 = sbr.rel (%p4078) target = $region44
      $region43: #{tpu_custom_call.1} parent=39 // pred_region
        %p4081 = scmp.lt.s32.totalorder %s20, 1
        %s4082 = scalar_select %p4081, %s20, 1
        %p4083 = scmp.lt.s32.totalorder %s21, 0
        %s4084 = scalar_select %p4083, %s21, 0
        %s4085 = smul.addr %s4082, 36
        %s4086 = sadd.s32 %s4084, %s4085
        %s4087 = smul.addr %s4086, 8
        %s4088 = scalar_lea.vmem %s3, %s4087
      $region44: #{tpu_custom_call.1} parent=39 // pred_fallthru
        _
    $region40: #{tpu_custom_call.1} parent=5 // pred_fallthru
      _
  $region6: #{tpu_custom_call.1} parent=0 // loop_footer
    %s13 = sadd.s32 1, %s9
  $region7: #{tpu_custom_call.1} parent=0 // loop_footer_branch
    %8 = sbr.rel target = $region3
  $region8: #{tpu_custom_call.1} parent=0 // loop_exit
    _

</llo_original>
